<compile_context>
chip_gen: v5e
topology: v5e:2x2
jax: 0.10.0
libtpu: 0.0.40
codegen_flags: <defaults>
</compile_context>

<pallas_src>
import numpy as np
import jax
import jax.numpy as jnp
from jax.experimental import pallas as pl
from jax.experimental.pallas import tpu as pltpu


def _round_up(x, m):
    return ((x + m - 1) // m) * m


_DEFAULT_TILE = 1024
# Conservative per-TensorCore VMEM budget for (table + one-hot + buffers):
# fits v7x's 64 MiB physical VMEM with headroom, and v5e/v6e comfortably.
_DEFAULT_VMEM_BUDGET = 36 * 1024 * 1024


# ---------------------------------------------------------------------------
# Kernels.
#
# Layout (flattened pixel-major, channel lane-dense):
#   idx    : (P_pad, 1)  int32   face index (-1 = background / padding)
#   bary   : (P_pad, 4)  f32     lanes 0..2 barycentric weights, lane 3 pad
#   table  : (num_chunks*3*Fc, C_pad) bf16  corner-major per face chunk:
#            row k*3*Fc + v*Fc + f  ==  face (k*Fc + f), corner v
#   out    : (P_pad, C_pad) f32
# ---------------------------------------------------------------------------
def _interp_kernel_resident(idx_ref, bary_ref, table_ref, out_ref):
    """Single-chunk fast path: table fully VMEM-resident, grid = (pixel tiles,)."""
    tp = idx_ref.shape[0]
    fc = table_ref.shape[0] // 3

    idx = idx_ref[...]                                           # (TP, 1) int32
    f_iota = jax.lax.broadcasted_iota(jnp.int32, (tp, fc), 1)
    # Exact 0/1 in bf16; background (-1) / out-of-range / padded faces never
    # match -> all-zero rows (background mask for free).  NOTE: pix_to_face
    # >= F silently yields zeros (indistinguishable from background).
    onehot = (idx == f_iota).astype(jnp.bfloat16)                # (TP, Fc) bf16

    bary = bary_ref[...]                                         # (TP, 4) f32
    acc = None
    for v in range(3):
        gathered = jnp.dot(onehot, table_ref[pl.ds(v * fc, fc), :],
                           preferred_element_type=jnp.float32)   # (TP, C_pad) f32
        term = bary[:, v:v + 1] * gathered                       # f32 bary scale
        acc = term if acc is None else acc + term
    out_ref[...] = acc.astype(out_ref.dtype)


def _interp_kernel_chunked(idx_ref, bary_ref, table_ref, out_ref, acc_ref):
    """Chunked path for large face tables: grid = (pixel tiles, face chunks)."""
    k = pl.program_id(1)
    tp = idx_ref.shape[0]
    fc = table_ref.shape[0] // 3

    @pl.when(k == 0)
    def _():
        acc_ref[...] = jnp.zeros_like(acc_ref)

    idx_local = idx_ref[...] - k * fc                            # index within chunk
    f_iota = jax.lax.broadcasted_iota(jnp.int32, (tp, fc), 1)
    onehot = (idx_local == f_iota).astype(jnp.bfloat16)          # (TP, Fc) bf16

    bary = bary_ref[...]                                         # (TP, 4) f32
    contrib = None
    for v in range(3):
        gathered = jnp.dot(onehot, table_ref[pl.ds(v * fc, fc), :],
                           preferred_element_type=jnp.float32)
        term = bary[:, v:v + 1] * gathered
        contrib = term if contrib is None else contrib + term
    acc_ref[...] += contrib

    @pl.when(k == pl.num_programs(1) - 1)
    def _():
        out_ref[...] = acc_ref[...].astype(out_ref.dtype)


# ---------------------------------------------------------------------------
# Layout derivation + table preparation (cacheable across forward() calls).
# ---------------------------------------------------------------------------
def _face_layout(F, C, tile, vmem_budget_bytes, max_faces_resident=None):
    C_pad = _round_up(C, 128)                      # lane-dense output (vst, not vst.msk)
    # Fixed VMEM (independent of F): double-buffered output, f32 accumulator /
    # per-corner result temporaries, tiny idx/bary double buffers.
    fixed = (2 * tile * C_pad * 4
             + 3 * tile * C_pad * 4
             + 2 * tile * (1 * 4 + 4 * 4))
    avail = max(vmem_budget_bytes - fixed, 1 << 20)

    # Resident path:  bf16 table rows (single-buffered) + one-hot column.
    per_face_res = 3 * C_pad * 2 + tile * 2
    res_cap = max((avail // per_face_res) // 256 * 256, 256)
    # Chunked path: table chunk is double-buffered (streams across chunks).
    per_face_chk = 2 * 3 * C_pad * 2 + tile * 2
    chk_cap = max((avail // per_face_chk) // 256 * 256, 256)

    if max_faces_resident is not None:             # override (mainly for tests)
        cap = max(_round_up(max(int(max_faces_resident), 1), 256), 256)
        res_cap = min(res_cap, cap)
        chk_cap = min(chk_cap, cap)

    F_pad = _round_up(max(F, 1), 256)
    if F_pad <= res_cap:
        fc, num_chunks = F_pad, 1
    else:
        fc = chk_cap
        num_chunks = _round_up(F, fc) // fc
        F_pad = num_chunks * fc
    return C_pad, fc, num_chunks, F_pad


def prepare_face_table(face_attrs, *, tile=_DEFAULT_TILE,
                       vmem_budget_bytes=_DEFAULT_VMEM_BUDGET,
                       max_faces_resident=None):
    """Pad + reorder (F,3,C) face memory into the kernel's corner-major bf16
    table.  Do this once per registration, not once per forward()."""
    F, three, C = face_attrs.shape
    assert three == 3
    C_pad, fc, num_chunks, F_pad = _face_layout(
        F, C, tile, vmem_budget_bytes, max_faces_resident)

    fa = face_attrs.astype(jnp.float32)
    if F_pad != F or C_pad != C:
        fa = jnp.pad(fa, ((0, F_pad - F), (0, 0), (0, C_pad - C)))
    table = (fa.reshape(num_chunks, fc, 3, C_pad)
               .transpose(0, 2, 1, 3)
               .reshape(num_chunks * 3 * fc, C_pad)
               .astype(jnp.bfloat16))
    return dict(table=table, F=F, C=C, C_pad=C_pad, fc=fc,
                num_chunks=num_chunks, tile=tile)


def interpolate_face_attributes_pallas(pix_to_face, bary_coords,
                                       face_attrs=None, *, prepared=None,
                                       tile=_DEFAULT_TILE,
                                       vmem_budget_bytes=_DEFAULT_VMEM_BUDGET,
                                       max_faces_resident=None):
    """pix_to_face (B,H,W,K) int32, bary_coords (B,H,W,K,3) f32,
       face_attrs (F,3,C) f32 (or a cached `prepared` table) -> (B,H,W,K,C) f32."""
    if prepared is None:
        prepared = prepare_face_table(face_attrs, tile=tile,
                                      vmem_budget_bytes=vmem_budget_bytes,
                                      max_faces_resident=max_faces_resident)
    table = prepared["table"]
    F, C, C_pad = prepared["F"], prepared["C"], prepared["C_pad"]
    fc, num_chunks, tile = prepared["fc"], prepared["num_chunks"], prepared["tile"]
    kdim = 3 * fc

    B, H, W, K = pix_to_face.shape
    P = B * H * W * K
    P_pad = _round_up(max(P, 1), tile)

    # Separate int32 index + f32 bary inputs (no packed-float round trip).
    idx = jnp.pad(pix_to_face.reshape(P, 1).astype(jnp.int32),
                  ((0, P_pad - P), (0, 0)), constant_values=-1)
    bary = jnp.pad(bary_coords.reshape(P, 3).astype(jnp.float32),
                   ((0, P_pad - P), (0, 1)))                 # pad pixels + lane 3

    # Explicit VMEM budget (scoped default is 16/32 MiB; v7x physical is 64).
    table_bufs = 1 if num_chunks == 1 else 2
    vmem_est = (table_bufs * kdim * C_pad * 2        # table buffer(s), bf16
                + tile * fc * 2                      # one-hot intermediate, bf16
                + 2 * tile * C_pad * 4               # double-buffered output
                + 3 * tile * C_pad * 4               # acc / per-corner f32 temps
                + 2 * tile * (1 * 4 + 4 * 4))        # idx + bary buffers
    vmem_limit = int(min(max(vmem_est + (8 << 20), 32 << 20), 56 << 20))

    if num_chunks == 1:
        # Resident fast path: table DMA'd once (constant index, single buffer),
        # no accumulator scratch, 1-D parallel grid over pixel tiles.
        out = pl.pallas_call(
            _interp_kernel_resident,
            out_shape=jax.ShapeDtypeStruct((P_pad, C_pad), jnp.float32),
            grid=(P_pad // tile,),
            in_specs=[
                pl.BlockSpec((tile, 1), lambda i: (i, 0)),        # pix_to_face
                pl.BlockSpec((tile, 4), lambda i: (i, 0)),        # bary
                pl.BlockSpec((kdim, C_pad), lambda i: (0, 0),
                             pipeline_mode=pl.Buffered(1)),        # resident table
            ],
            out_specs=pl.BlockSpec((tile, C_pad), lambda i: (i, 0)),
            compiler_params=pltpu.CompilerParams(
                dimension_semantics=("parallel",),
                vmem_limit_bytes=vmem_limit),
        )(idx, bary, table)
    else:
        out = pl.pallas_call(
            _interp_kernel_chunked,
            out_shape=jax.ShapeDtypeStruct((P_pad, C_pad), jnp.float32),
            grid=(P_pad // tile, num_chunks),
            in_specs=[
                pl.BlockSpec((tile, 1), lambda i, k: (i, 0)),     # pix_to_face
                pl.BlockSpec((tile, 4), lambda i, k: (i, 0)),     # bary
                pl.BlockSpec((kdim, C_pad), lambda i, k: (k, 0)), # table chunk
            ],
            out_specs=pl.BlockSpec((tile, C_pad), lambda i, k: (i, 0)),
            scratch_shapes=[pltpu.VMEM((tile, C_pad), jnp.float32)],
            compiler_params=pltpu.CompilerParams(
                dimension_semantics=("parallel", "arbitrary"),
                vmem_limit_bytes=vmem_limit),
        )(idx, bary, table)

    return out[:P, :C].reshape(B, H, W, K, C)


# ---------------------------------------------------------------------------
# Plain-JAX glue reproducing the module's registration logic.
# ---------------------------------------------------------------------------
def vertex_memory_to_face_memory(memory_bank, faces):
    # (V, C), (F, 3) int -> (F, 3, C)
    return memory_bank[faces]


class MultiMeshInterpolateModule:
    def __init__(self, verts, faces, memory_bank):
        assert isinstance(verts, list) and isinstance(faces, list)
        self.verts = verts          # list of (V_i, 3) f32
        self.faces = faces          # list of (F_i, 3) int32
        self.face_memory = None
        self.n_mesh = len(verts)
        self.reset()
        self.update_memory(memory_bank=memory_bank, faces=faces)

    def reset(self):
        self.verts_registered = None
        self.faces_registered = None
        self.face_mem_registered = None
        self._prepared_table = None

    def update_memory(self, memory_bank, faces=None):
        if faces is None:
            faces = self.faces
        if not isinstance(memory_bank, (list, tuple)):
            starts = np.cumsum([0] + [int(v.shape[0]) for v in self.verts])
            memory_bank = [memory_bank[starts[i]:starts[i + 1]]
                           for i in range(self.n_mesh)]
        self.face_memory = [vertex_memory_to_face_memory(m, f)
                            for m, f in zip(memory_bank, faces)]

    def register_verts(self, indexs, transforms=None):
        # TODO(synk): pytorch3d Transform3d.transform_points path (padded
        # transform of verts) is not reproduced; only the concat path is.
        all_verts = []
        for index_ in indexs:
            to_cat = [self.verts[i] for i in index_ if i != -1]
            all_verts.append(jnp.concatenate(to_cat, axis=0))
        self.verts_registered = all_verts

    def register_faces(self, indexs):
        # Mirrors the original PyTorch index arithmetic exactly (including its
        # behaviour when a -1 pad precedes a valid mesh index).
        all_faces, all_face_mems = [], []
        for index_ in indexs:
            n_obj = len(index_)
            shifts = np.cumsum(
                [0] + [int(self.verts[index_[i]].shape[0])
                       for i in range(n_obj - 1) if index_[i] != -1])
            all_faces.append(jnp.concatenate(
                [self.faces[index_[i]] + int(shifts[i])
                 for i in range(n_obj) if index_[i] != -1], axis=0))
            all_face_mems.append(jnp.concatenate(
                [self.face_memory[index_[i]]
                 for i in range(n_obj) if index_[i] != -1], axis=0))
        self.faces_registered = all_faces
        # packed across the whole batch -> matches global pix_to_face indices
        self.face_mem_registered = jnp.concatenate(all_face_mems, axis=0)
        # Precompute the padded, corner-major, bf16 kernel table once per
        # registration (avoids a full transpose/cast pass every forward()).
        self._prepared_table = prepare_face_table(self.face_mem_registered)

    def forward(self, indexs=None, transforms=None, fragments=None):
        if transforms is not None:
            assert indexs is not None
            self.register_verts(indexs, transforms)
        elif indexs is not None and self.verts_registered is None:
            self.register_verts(indexs)
        if indexs is not None and self.faces_registered is None:
            self.register_faces(indexs)
        # TODO(synk): pytorch3d MeshRasterizer (triangle rasterization) has no
        # Pallas equivalent; precomputed fragments (pix_to_face, bary_coords)
        # are taken as inputs instead.
        pix_to_face, bary_coords = fragments
        out_map = interpolate_face_attributes_pallas(
            pix_to_face, bary_coords, prepared=self._prepared_table)
        if out_map.shape[3] == 1:                 # .squeeze(3)
            out_map = jnp.squeeze(out_map, axis=3)
        return out_map


# ---------------------------------------------------------------------------
if __name__ == "__main__":
    key = jax.random.PRNGKey(0)
    keys = jax.random.split(key, 16)

    # ---- Test 1: module forward, resident-table fast path ------------------
    vert_counts = [12, 10, 9]
    face_counts = [20, 16, 12]
    C = 128                                   # feature-memory channels (lane-dense)

    verts, faces = [], []
    for i, (nv, nf) in enumerate(zip(vert_counts, face_counts)):
        verts.append(jax.random.normal(keys[i], (nv, 3), dtype=jnp.float32))
        faces.append(jax.random.randint(keys[3 + i], (nf, 3), 0, nv,
                                        dtype=jnp.int32))
    memory_bank = jax.random.normal(keys[6], (sum(vert_counts), C),
                                    dtype=jnp.float32)

    module = MultiMeshInterpolateModule(verts, faces, memory_bank)

    # two scenes: scene 0 has meshes [0, 1]; scene 1 has mesh 2 (one pad slot)
    indexs = [[0, 1], [2, -1]]
    F_total = (face_counts[0] + face_counts[1]) + face_counts[2]   # packed faces = 48

    # synthetic rasterizer fragments (deterministic)
    B, H, W, K = 2, 32, 32, 1
    pix_to_face = jax.random.randint(keys[7], (B, H, W, K), -1, F_total,
                                     dtype=jnp.int32)
    bary_raw = jax.random.uniform(keys[8], (B, H, W, K, 3),
                                  dtype=jnp.float32) + 1e-3
    bary_coords = bary_raw / bary_raw.sum(-1, keepdims=True)

    out = module.forward(indexs=indexs, fragments=(pix_to_face, bary_coords))
    out = jax.block_until_ready(out)            # (B, H, W, C)

    # pure-JAX reference: the face table is stored bf16 but the one-hot gather
    # is exact and the bary scaling stays f32, so only round the table.
    fa = module.face_mem_registered.astype(jnp.bfloat16).astype(jnp.float32)
    safe_idx = jnp.clip(pix_to_face, 0, None)
    gathered = fa[safe_idx]                     # (B, H, W, K, 3, C)
    ref = (bary_coords[..., None] * gathered).sum(-2)
    ref = jnp.where((pix_to_face < 0)[..., None], 0.0, ref)
    ref = jnp.squeeze(ref, axis=3)

    np.testing.assert_allclose(np.asarray(out), np.asarray(ref),
                               rtol=1e-4, atol=1e-5)
    assert out.shape == (B, H, W, C) and out.dtype == jnp.float32

    # ---- Test 2: chunked path (forced), channel + pixel padding ------------
    F2, C2 = 600, 64
    fa2 = jax.random.normal(keys[9], (F2, 3, C2), dtype=jnp.float32)
    B2, H2, W2, K2 = 1, 16, 16, 2
    p2f2 = jax.random.randint(keys[10], (B2, H2, W2, K2), -1, F2,
                              dtype=jnp.int32)
    b2raw = jax.random.uniform(keys[11], (B2, H2, W2, K2, 3),
                               dtype=jnp.float32) + 1e-3
    bc2 = b2raw / b2raw.sum(-1, keepdims=True)

    out2 = interpolate_face_attributes_pallas(p2f2, bc2, fa2,
                                              max_faces_resident=256)  # 3 chunks
    out2 = jax.block_until_ready(out2)

    fa2b = fa2.astype(jnp.bfloat16).astype(jnp.float32)
    g2 = fa2b[jnp.clip(p2f2, 0, None)]
    ref2 = (bc2[..., None] * g2).sum(-2)
    ref2 = jnp.where((p2f2 < 0)[..., None], 0.0, ref2)
    np.testing.assert_allclose(np.asarray(out2), np.asarray(ref2),
                               rtol=1e-4, atol=1e-5)
    assert out2.shape == (B2, H2, W2, K2, C2)

    print("KERNEL_OK")
</pallas_src>

<mosaic_0001>
module attributes {stable_mosaic.version = 11 : i64} {
  func.func @_interp_kernel_resident(%arg0: i32, %arg1: memref<1024x1xi32, #tpu.memory_space<vmem>>, %arg2: memref<1024x4xf32, #tpu.memory_space<vmem>>, %arg3: memref<768x128xbf16, #tpu.memory_space<vmem>>, %arg4: memref<1024x128xf32, #tpu.memory_space<vmem>>) attributes {dimension_semantics = [#tpu.dimension_semantics<parallel>], iteration_bounds = array<i64: 2>, scalar_prefetch = 0 : i64, scratch_operands = 0 : i64, tpu.core_type = #tpu.core_type<tc>, window_params = [{transform_indices = @transform_0, window_bounds = array<i64: 1024, 1>}, {transform_indices = @transform_1, window_bounds = array<i64: 1024, 4>}, {pipeline_mode = #tpu.pipeline_mode<synchronous>, transform_indices = @transform_2, window_bounds = array<i64: 768, 128>}, {transform_indices = @transform_3, window_bounds = array<i64: 1024, 128>}]} {
    %c0 = arith.constant 0 : index
    %c0_0 = arith.constant 0 : index
    %0 = vector.load %arg1[%c0, %c0_0] : memref<1024x1xi32, #tpu.memory_space<vmem>>, vector<1024x1xi32>
    %1 = tpu.iota {dimensions = array<i32: 1>} : vector<1024x256xi32>
    %2 = vector.broadcast %0 : vector<1024x1xi32> to vector<1024x256xi32>
    %3 = arith.cmpi eq, %2, %1 : vector<1024x256xi32>
    %4 = arith.extui %3 : vector<1024x256xi1> to vector<1024x256xi32>
    %5 = arith.sitofp %4 : vector<1024x256xi32> to vector<1024x256xf32>
    %6 = arith.truncf %5 : vector<1024x256xf32> to vector<1024x256xbf16>
    %c0_1 = arith.constant 0 : index
    %c0_2 = arith.constant 0 : index
    %7 = vector.load %arg2[%c0_1, %c0_2] : memref<1024x4xf32, #tpu.memory_space<vmem>>, vector<1024x4xf32>
    %c0_3 = arith.constant 0 : index
    %c0_4 = arith.constant 0 : index
    %8 = vector.load %arg3[%c0_3, %c0_4] : memref<768x128xbf16, #tpu.memory_space<vmem>>, vector<256x128xbf16>
    %cst = arith.constant dense<0.000000e+00> : vector<1024x128xf32>
    %9 = tpu.matmul %6, %8, %cst {dimension_numbers = #tpu.dot_dimension_numbers<[1], [0], [0], [1], [0, 0, 1, 1], [], []>} : vector<1024x256xbf16>, vector<256x128xbf16>, vector<1024x128xf32> -> vector<1024x128xf32>
    %10 = vector.extract_strided_slice %7 {offsets = [0, 0], sizes = [1024, 1], strides = [1, 1]} : vector<1024x4xf32> to vector<1024x1xf32>
    %11 = vector.broadcast %10 : vector<1024x1xf32> to vector<1024x128xf32>
    %12 = arith.mulf %11, %9 : vector<1024x128xf32>
    %c256 = arith.constant 256 : index
    %c0_5 = arith.constant 0 : index
    %13 = vector.load %arg3[%c256, %c0_5] : memref<768x128xbf16, #tpu.memory_space<vmem>>, vector<256x128xbf16>
    %cst_6 = arith.constant dense<0.000000e+00> : vector<1024x128xf32>
    %14 = tpu.matmul %6, %13, %cst_6 {dimension_numbers = #tpu.dot_dimension_numbers<[1], [0], [0], [1], [0, 0, 1, 1], [], []>} : vector<1024x256xbf16>, vector<256x128xbf16>, vector<1024x128xf32> -> vector<1024x128xf32>
    %15 = vector.extract_strided_slice %7 {offsets = [0, 1], sizes = [1024, 1], strides = [1, 1]} : vector<1024x4xf32> to vector<1024x1xf32>
    %16 = vector.broadcast %15 : vector<1024x1xf32> to vector<1024x128xf32>
    %17 = arith.mulf %16, %14 : vector<1024x128xf32>
    %18 = arith.addf %12, %17 : vector<1024x128xf32>
    %c512 = arith.constant 512 : index
    %c0_7 = arith.constant 0 : index
    %19 = vector.load %arg3[%c512, %c0_7] : memref<768x128xbf16, #tpu.memory_space<vmem>>, vector<256x128xbf16>
    %cst_8 = arith.constant dense<0.000000e+00> : vector<1024x128xf32>
    %20 = tpu.matmul %6, %19, %cst_8 {dimension_numbers = #tpu.dot_dimension_numbers<[1], [0], [0], [1], [0, 0, 1, 1], [], []>} : vector<1024x256xbf16>, vector<256x128xbf16>, vector<1024x128xf32> -> vector<1024x128xf32>
    %21 = vector.extract_strided_slice %7 {offsets = [0, 2], sizes = [1024, 1], strides = [1, 1]} : vector<1024x4xf32> to vector<1024x1xf32>
    %22 = vector.broadcast %21 : vector<1024x1xf32> to vector<1024x128xf32>
    %23 = arith.mulf %22, %20 : vector<1024x128xf32>
    %24 = arith.addf %18, %23 : vector<1024x128xf32>
    %c0_9 = arith.constant 0 : index
    %c0_10 = arith.constant 0 : index
    %25 = vector.load %arg4[%c0_9, %c0_10] : memref<1024x128xf32, #tpu.memory_space<vmem>>, vector<1024x128xf32>
    tpu.vector_store %arg4[%c0_9, %c0_10], %24 {strides = array<i32>} : memref<1024x128xf32, #tpu.memory_space<vmem>>, vector<1024x128xf32>,
    return
  }
  func.func @transform_0(%arg0: i32) -> (i32, i32) {
    %c0_i32 = arith.constant 0 : i32
    %c0_i32_0 = arith.constant 0 : i32
    return %arg0, %c0_i32 : i32, i32
  }
  func.func @transform_1(%arg0: i32) -> (i32, i32) {
    %c0_i32 = arith.constant 0 : i32
    %c0_i32_0 = arith.constant 0 : i32
    return %arg0, %c0_i32 : i32, i32
  }
  func.func @transform_2(%arg0: i32) -> (i32, i32) {
    %c0_i32 = arith.constant 0 : i32
    %c0_i32_0 = arith.constant 0 : i32
    %c0_i32_1 = arith.constant 0 : i32
    return %c0_i32, %c0_i32_0 : i32, i32
  }
  func.func @transform_3(%arg0: i32) -> (i32, i32) {
    %c0_i32 = arith.constant 0 : i32
    %c0_i32_0 = arith.constant 0 : i32
    return %arg0, %c0_i32 : i32, i32
  }
}

</mosaic_0001>

<llo_original>
// kernel: tpu_custom_call.1
$region0: #{tpu_custom_call.1}
  #allocation0 [shape = 'u32[]', space=smem, size = 0x4, offset = 0x4, fixed_abs, tag = 'smem constant byte address 0x4 - core index']
  #allocation1 [shape = 'u32[72,128]{1,0:T(1,128)}', space=vmem, size = 0x9000, scoped, tag = 'internal scratch']
  %s0 = inlined_call_operand.vmem [shape: s32[2048,1], index: 0, kind: input, shape index: {}]
  %s1 = inlined_call_operand.vmem [shape: f32[2048,4], index: 1, kind: input, shape index: {}]
  %s2 = inlined_call_operand.vmem [shape: bf16[768,128], index: 2, kind: input, shape index: {}]
  %s3 = inlined_call_operand.hbm [shape: f32[2048,128], index: 3, kind: output, shape index: {}]
  %s4 = sld [smem:[#allocation0]]
  $region45: #{tpu_custom_call.1} parent=0
    _
  %s6 = ssub.s32 1, %s4
  %s7 = scalar_select 0, %s6, %s4
  $region1: #{tpu_custom_call.1} parent=0
    #allocation2 [shape = 'u8[1048576]{0}', space=vmem, size = 0x100000, scoped, tag = 'output window, operand 0']
    #allocation3 [shape = 's32[2]{0}', space=sflag, size = 0x8, scoped, tag = 'scoped memory for tpu_custom_call.1']
    %8 = vsyncpa [#allocation3], 0
    %s9 = scalar_lea.sflag [#allocation3], 1
    %10 = vsyncpa %s9, 0
    loop: start=0, step=1, limit=4
    $region2: #{tpu_custom_call.1} parent=1 // loop_pre_header
      _
    $region3: #{tpu_custom_call.1} parent=1 // loop_header
      %s12 = sphi 0, %s16
      %p13 = scmp.ge.s32.totalorder %s12, 4
      %s22 = sphi 0, %s24
      %s25 = sphi 0, %s22
      %s26 = sphi 0, %s25
      %s42 = sphi 0, %s26
      %s48 = sphi 0, %s50
      %s51 = sphi 0, %s48
      %s52 = sphi 0, %s51
      %s68 = sphi 0, %s52
      %s72 = sphi 0, %s72
      %s74 = sphi 0, %s72
      %s75 = sphi 0, %s74
      %s89 = sphi 0, %s75
      %s95 = sphi 0, %s97
      %s98 = sphi 0, %s95
      %s99 = sphi 0, %s98
      %s115 = sphi 0, %s99
    $region4: #{tpu_custom_call.1} parent=1 // loop_header_branch
      %15 = sbr.rel (%p13) target = $region8
    $region5: #{tpu_custom_call.1} parent=1 // loop_body
      %s17 = ssub.s32 %s12, 1
      %s18 = ssub.s32 %s12, 2
      %s19 = sadd.s32 %s12, 1
      %s20 = ssub.s32 %s12, %s19
      %p21 = scmp.eq.s32.totalorder %s20, 0
      %s23 = sadd.s32 %s22, 1
      %s24 = scalar_select %p21, %s22, %s23
      %p27 = pneg %p21
      %p28 = scmp.eq.s32.totalorder %s12, 1
      %p29 = por %p27, %p28
      %p30 = scmp.ne.s32.totalorder %s22, %s25
      %p31 = scmp.eq.s32.totalorder %s12, 0
      %p32 = por %p30, %p31
      %p33 = scmp.ne.s32.totalorder %s22, %s25
      %p34 = scmp.eq.s32.totalorder %s17, 1
      %p35 = por %p33, %p34
      %p36 = scmp.ne.s32.totalorder %s25, %s26
      %p37 = scmp.eq.s32.totalorder %s17, 0
      %p38 = por %p36, %p37
      %p39 = scmp.ne.s32.totalorder %s25, %s26
      %p40 = scmp.eq.s32.totalorder %s18, 1
      %p41 = por %p39, %p40
      %p43 = scmp.ne.s32.totalorder %s26, %s42
      %p44 = scmp.eq.s32.totalorder %s18, 0
      %p45 = por %p43, %p44
      %s46 = ssub.s32 %s12, %s19
      %p47 = scmp.eq.s32.totalorder %s46, 0
      %s49 = sadd.s32 %s48, 1
      %s50 = scalar_select %p47, %s48, %s49
      %p53 = pneg %p47
      %p54 = scmp.eq.s32.totalorder %s12, 1
      %p55 = por %p53, %p54
      %p56 = scmp.ne.s32.totalorder %s48, %s51
      %p57 = scmp.eq.s32.totalorder %s12, 0
      %p58 = por %p56, %p57
      %p59 = scmp.ne.s32.totalorder %s48, %s51
      %p60 = scmp.eq.s32.totalorder %s17, 1
      %p61 = por %p59, %p60
      %p62 = scmp.ne.s32.totalorder %s51, %s52
      %p63 = scmp.eq.s32.totalorder %s17, 0
      %p64 = por %p62, %p63
      %p65 = scmp.ne.s32.totalorder %s51, %s52
      %p66 = scmp.eq.s32.totalorder %s18, 1
      %p67 = por %p65, %p66
      %p69 = scmp.ne.s32.totalorder %s52, %s68
      %p70 = scmp.eq.s32.totalorder %s18, 0
      %p71 = por %p69, %p70
      %s73 = sadd.s32 %s72, 1
      %p76 = scmp.eq.s32.totalorder %s12, 1
      %p77 = scmp.ne.s32.totalorder %s72, %s74
      %p78 = scmp.eq.s32.totalorder %s12, 0
      %p79 = por %p77, %p78
      %p80 = scmp.ne.s32.totalorder %s72, %s74
      %p81 = scmp.eq.s32.totalorder %s17, 1
      %p82 = por %p80, %p81
      %p83 = scmp.ne.s32.totalorder %s74, %s75
      %p84 = scmp.eq.s32.totalorder %s17, 0
      %p85 = por %p83, %p84
      %p86 = scmp.ne.s32.totalorder %s74, %s75
      %p87 = scmp.eq.s32.totalorder %s18, 1
      %p88 = por %p86, %p87
      %p90 = scmp.ne.s32.totalorder %s75, %s89
      %p91 = scmp.eq.s32.totalorder %s18, 0
      %p92 = por %p90, %p91
      %s93 = ssub.s32 %s12, %s19
      %p94 = scmp.eq.s32.totalorder %s93, 0
      %s96 = sadd.s32 %s95, 1
      %s97 = scalar_select %p94, %s95, %s96
      %p100 = pneg %p94
      %p101 = scmp.eq.s32.totalorder %s12, 1
      %p102 = por %p100, %p101
      %p103 = scmp.ne.s32.totalorder %s95, %s98
      %p104 = scmp.eq.s32.totalorder %s12, 0
      %p105 = por %p103, %p104
      %p106 = scmp.ne.s32.totalorder %s95, %s98
      %p107 = scmp.eq.s32.totalorder %s17, 1
      %p108 = por %p106, %p107
      %p109 = scmp.ne.s32.totalorder %s98, %s99
      %p110 = scmp.eq.s32.totalorder %s17, 0
      %p111 = por %p109, %p110
      %p112 = scmp.ne.s32.totalorder %s98, %s99
      %p113 = scmp.eq.s32.totalorder %s18, 1
      %p114 = por %p112, %p113
      %p116 = scmp.ne.s32.totalorder %s99, %s115
      %p117 = scmp.eq.s32.totalorder %s18, 0
      %p118 = por %p116, %p117
      %p119 = scmp.le.s32.totalorder 1, %s12
      %p120 = scmp.lt.s32.totalorder %s12, 3
      %p121 = pnand %p119, %p120
      %p122 = pneg %p121
      // Predicated region
      $region9: #{tpu_custom_call.1} parent=5 // pred_check
        _
      $region10: #{tpu_custom_call.1} parent=5 // pred_check_branch
        %124 = sbr.rel (%p121) target = $region12
      $region11: #{tpu_custom_call.1} parent=5 // pred_region
        %s125 = ssub.s32 %s12, 1
        // Predicated region
        $region13: #{tpu_custom_call.1} parent=11 // pred_check
          %p126 = pneg %p85
        $region14: #{tpu_custom_call.1} parent=11 // pred_check_branch
          %128 = sbr.rel (%p126) target = $region16
        $region15: #{tpu_custom_call.1} parent=11 // pred_region
          _
        $region16: #{tpu_custom_call.1} parent=11 // pred_fallthru
          _
      $region12: #{tpu_custom_call.1} parent=5 // pred_fallthru
        _
      %p129 = scmp.lt.s32.totalorder %s12, 2
      // Predicated region
      $region17: #{tpu_custom_call.1} parent=5 // pred_check
        %p130 = pneg %p129
      $region18: #{tpu_custom_call.1} parent=5 // pred_check_branch
        %132 = sbr.rel (%p130) target = $region20
      $region19: #{tpu_custom_call.1} parent=5 // pred_region
        // Predicated region
        $region21: #{tpu_custom_call.1} parent=19 // pred_check
          %p133 = pneg %p32
        $region22: #{tpu_custom_call.1} parent=19 // pred_check_branch
          %135 = sbr.rel (%p133) target = $region24
        $region23: #{tpu_custom_call.1} parent=19 // pred_region
          %s136 = smul.u32 128, %s12
          %p137 = scmp.lt.s32.totalorder %s136, 255
          %s138 = scalar_select %p137, %s136, 255
          %s139 = smul.addr %s138, 8
          %s140 = scalar_lea.vmem %s0, %s139
          %s141 = smul.u32 128, %s12
        $region24: #{tpu_custom_call.1} parent=19 // pred_fallthru
          _
        // Predicated region
        $region25: #{tpu_custom_call.1} parent=19 // pred_check
          %p142 = pneg %p58
        $region26: #{tpu_custom_call.1} parent=19 // pred_check_branch
          %144 = sbr.rel (%p142) target = $region28
        $region27: #{tpu_custom_call.1} parent=19 // pred_region
          %s145 = smul.u32 128, %s12
          %p146 = scmp.lt.s32.totalorder %s145, 255
          %s147 = scalar_select %p146, %s145, 255
          %s148 = smul.addr %s147, 8
          %s149 = scalar_lea.vmem %s1, %s148
          %s150 = smul.u32 128, %s12
        $region28: #{tpu_custom_call.1} parent=19 // pred_fallthru
          _
      $region20: #{tpu_custom_call.1} parent=5 // pred_fallthru
        _
      %p151 = scmp.le.s32.totalorder 1, %s12
      %p152 = scmp.lt.s32.totalorder %s12, 3
      %p153 = pnand %p151, %p152
      %p154 = pneg %p153
      // Predicated region
      $region29: #{tpu_custom_call.1} parent=5 // pred_check
        _
      $region30: #{tpu_custom_call.1} parent=5 // pred_check_branch
        %156 = sbr.rel (%p153) target = $region32
      $region31: #{tpu_custom_call.1} parent=5 // pred_region
        %s157 = ssub.s32 %s12, 1
        %s158 = smul.u32 128, %s17
        %p159 = scmp.lt.s32.totalorder %s158, 255
        %s160 = scalar_select %p159, %s158, 255
        %s161 = smul.addr %s160, 8
        %s162 = scalar_lea.vmem %s0, %s161
        %p163 = pneg %p38
        %p164 = pneg %p35
        %s165 = smul.u32 128, %s17
        %p166 = scmp.lt.s32.totalorder %s165, 255
        %s167 = scalar_select %p166, %s165, 255
        %s168 = smul.addr %s167, 8
        %s169 = scalar_lea.vmem %s1, %s168
        %p170 = pneg %p64
        %p171 = pneg %p61
        %p172 = pneg %p85
        %p173 = pneg %p82
        %p174 = pneg %p111
        %p175 = pneg %p108
        %s176 = sand.u32 %s98, 1
        %s177 = scalar_lea.sflag [#allocation3], %s176
        %s178 = sand.u32 %s98, 1
        %s179 = smul.addr %s178, 1024
        %s180 = scalar_lea.vmem [#allocation2], %s179
        %s181 = smul.u32 128, %s17
        %p182 = scmp.lt.s32.totalorder %s181, 255
        %s183 = scalar_select %p182, %s181, 255
        %s184 = smul.addr %s183, 8
        %s185 = scalar_lea.vmem %s0, %s184
        %s186 = smul.u32 128, %s17
        %s187 = smul.u32 128, %s17
        %p188 = scmp.lt.s32.totalorder %s187, 255
        %s189 = scalar_select %p188, %s187, 255
        %s190 = smul.addr %s189, 8
        %s191 = scalar_lea.vmem %s1, %s190
        %s192 = smul.u32 128, %s17
        %s193 = smul.u32 128, %s17
        %v194 = vld [vmem:[%s185] sm:$0xff]
        %v195 = vld [vmem:[%s185 + $0x8] sm:$0xff]
        %v196 = vld [vmem:[%s185 + $0x10] sm:$0xff]
        %v197 = vld [vmem:[%s185 + $0x18] sm:$0xff]
        %v198 = vld [vmem:[%s185 + $0x20] sm:$0xff]
        %v199 = vld [vmem:[%s185 + $0x28] sm:$0xff]
        %v200 = vld [vmem:[%s185 + $0x30] sm:$0xff]
        %v201 = vld [vmem:[%s185 + $0x38] sm:$0xff]
        %v202 = vld [vmem:[%s185 + $0x40] sm:$0xff]
        %v203 = vld [vmem:[%s185 + $0x48] sm:$0xff]
        %v204 = vld [vmem:[%s185 + $0x50] sm:$0xff]
        %v205 = vld [vmem:[%s185 + $0x58] sm:$0xff]
        %v206 = vld [vmem:[%s185 + $0x60] sm:$0xff]
        %v207 = vld [vmem:[%s185 + $0x68] sm:$0xff]
        %v208 = vld [vmem:[%s185 + $0x70] sm:$0xff]
        %v209 = vld [vmem:[%s185 + $0x78] sm:$0xff]
        %v210 = vld [vmem:[%s185 + $0x80] sm:$0xff]
        %v211 = vld [vmem:[%s185 + $0x88] sm:$0xff]
        %v212 = vld [vmem:[%s185 + $0x90] sm:$0xff]
        %v213 = vld [vmem:[%s185 + $0x98] sm:$0xff]
        %v214 = vld [vmem:[%s185 + $0xa0] sm:$0xff]
        %v215 = vld [vmem:[%s185 + $0xa8] sm:$0xff]
        %v216 = vld [vmem:[%s185 + $0xb0] sm:$0xff]
        %v217 = vld [vmem:[%s185 + $0xb8] sm:$0xff]
        %v218 = vld [vmem:[%s185 + $0xc0] sm:$0xff]
        %v219 = vld [vmem:[%s185 + $0xc8] sm:$0xff]
        %v220 = vld [vmem:[%s185 + $0xd0] sm:$0xff]
        %v221 = vld [vmem:[%s185 + $0xd8] sm:$0xff]
        %v222 = vld [vmem:[%s185 + $0xe0] sm:$0xff]
        %v223 = vld [vmem:[%s185 + $0xe8] sm:$0xff]
        %v224 = vld [vmem:[%s185 + $0xf0] sm:$0xff]
        %v225 = vld [vmem:[%s185 + $0xf8] sm:$0xff]
        %v226 = vld [vmem:[%s185 + $0x100] sm:$0xff]
        %v227 = vld [vmem:[%s185 + $0x108] sm:$0xff]
        %v228 = vld [vmem:[%s185 + $0x110] sm:$0xff]
        %v229 = vld [vmem:[%s185 + $0x118] sm:$0xff]
        %v230 = vld [vmem:[%s185 + $0x120] sm:$0xff]
        %v231 = vld [vmem:[%s185 + $0x128] sm:$0xff]
        %v232 = vld [vmem:[%s185 + $0x130] sm:$0xff]
        %v233 = vld [vmem:[%s185 + $0x138] sm:$0xff]
        %v234 = vld [vmem:[%s185 + $0x140] sm:$0xff]
        %v235 = vld [vmem:[%s185 + $0x148] sm:$0xff]
        %v236 = vld [vmem:[%s185 + $0x150] sm:$0xff]
        %v237 = vld [vmem:[%s185 + $0x158] sm:$0xff]
        %v238 = vld [vmem:[%s185 + $0x160] sm:$0xff]
        %v239 = vld [vmem:[%s185 + $0x168] sm:$0xff]
        %v240 = vld [vmem:[%s185 + $0x170] sm:$0xff]
        %v241 = vld [vmem:[%s185 + $0x178] sm:$0xff]
        %v242 = vld [vmem:[%s185 + $0x180] sm:$0xff]
        %v243 = vld [vmem:[%s185 + $0x188] sm:$0xff]
        %v244 = vld [vmem:[%s185 + $0x190] sm:$0xff]
        %v245 = vld [vmem:[%s185 + $0x198] sm:$0xff]
        %v246 = vld [vmem:[%s185 + $0x1a0] sm:$0xff]
        %v247 = vld [vmem:[%s185 + $0x1a8] sm:$0xff]
        %v248 = vld [vmem:[%s185 + $0x1b0] sm:$0xff]
        %v249 = vld [vmem:[%s185 + $0x1b8] sm:$0xff]
        %v250 = vld [vmem:[%s185 + $0x1c0] sm:$0xff]
        %v251 = vld [vmem:[%s185 + $0x1c8] sm:$0xff]
        %v252 = vld [vmem:[%s185 + $0x1d0] sm:$0xff]
        %v253 = vld [vmem:[%s185 + $0x1d8] sm:$0xff]
        %v254 = vld [vmem:[%s185 + $0x1e0] sm:$0xff]
        %v255 = vld [vmem:[%s185 + $0x1e8] sm:$0xff]
        %v256 = vld [vmem:[%s185 + $0x1f0] sm:$0xff]
        %v257 = vld [vmem:[%s185 + $0x1f8] sm:$0xff]
        %v258 = vld [vmem:[%s185 + $0x200] sm:$0xff]
        %v259 = vld [vmem:[%s185 + $0x208] sm:$0xff]
        %v260 = vld [vmem:[%s185 + $0x210] sm:$0xff]
        %v261 = vld [vmem:[%s185 + $0x218] sm:$0xff]
        %v262 = vld [vmem:[%s185 + $0x220] sm:$0xff]
        %v263 = vld [vmem:[%s185 + $0x228] sm:$0xff]
        %v264 = vld [vmem:[%s185 + $0x230] sm:$0xff]
        %v265 = vld [vmem:[%s185 + $0x238] sm:$0xff]
        %v266 = vld [vmem:[%s185 + $0x240] sm:$0xff]
        %v267 = vld [vmem:[%s185 + $0x248] sm:$0xff]
        %v268 = vld [vmem:[%s185 + $0x250] sm:$0xff]
        %v269 = vld [vmem:[%s185 + $0x258] sm:$0xff]
        %v270 = vld [vmem:[%s185 + $0x260] sm:$0xff]
        %v271 = vld [vmem:[%s185 + $0x268] sm:$0xff]
        %v272 = vld [vmem:[%s185 + $0x270] sm:$0xff]
        %v273 = vld [vmem:[%s185 + $0x278] sm:$0xff]
        %v274 = vld [vmem:[%s185 + $0x280] sm:$0xff]
        %v275 = vld [vmem:[%s185 + $0x288] sm:$0xff]
        %v276 = vld [vmem:[%s185 + $0x290] sm:$0xff]
        %v277 = vld [vmem:[%s185 + $0x298] sm:$0xff]
        %v278 = vld [vmem:[%s185 + $0x2a0] sm:$0xff]
        %v279 = vld [vmem:[%s185 + $0x2a8] sm:$0xff]
        %v280 = vld [vmem:[%s185 + $0x2b0] sm:$0xff]
        %v281 = vld [vmem:[%s185 + $0x2b8] sm:$0xff]
        %v282 = vld [vmem:[%s185 + $0x2c0] sm:$0xff]
        %v283 = vld [vmem:[%s185 + $0x2c8] sm:$0xff]
        %v284 = vld [vmem:[%s185 + $0x2d0] sm:$0xff]
        %v285 = vld [vmem:[%s185 + $0x2d8] sm:$0xff]
        %v286 = vld [vmem:[%s185 + $0x2e0] sm:$0xff]
        %v287 = vld [vmem:[%s185 + $0x2e8] sm:$0xff]
        %v288 = vld [vmem:[%s185 + $0x2f0] sm:$0xff]
        %v289 = vld [vmem:[%s185 + $0x2f8] sm:$0xff]
        %v290 = vld [vmem:[%s185 + $0x300] sm:$0xff]
        %v291 = vld [vmem:[%s185 + $0x308] sm:$0xff]
        %v292 = vld [vmem:[%s185 + $0x310] sm:$0xff]
        %v293 = vld [vmem:[%s185 + $0x318] sm:$0xff]
        %v294 = vld [vmem:[%s185 + $0x320] sm:$0xff]
        %v295 = vld [vmem:[%s185 + $0x328] sm:$0xff]
        %v296 = vld [vmem:[%s185 + $0x330] sm:$0xff]
        %v297 = vld [vmem:[%s185 + $0x338] sm:$0xff]
        %v298 = vld [vmem:[%s185 + $0x340] sm:$0xff]
        %v299 = vld [vmem:[%s185 + $0x348] sm:$0xff]
        %v300 = vld [vmem:[%s185 + $0x350] sm:$0xff]
        %v301 = vld [vmem:[%s185 + $0x358] sm:$0xff]
        %v302 = vld [vmem:[%s185 + $0x360] sm:$0xff]
        %v303 = vld [vmem:[%s185 + $0x368] sm:$0xff]
        %v304 = vld [vmem:[%s185 + $0x370] sm:$0xff]
        %v305 = vld [vmem:[%s185 + $0x378] sm:$0xff]
        %v306 = vld [vmem:[%s185 + $0x380] sm:$0xff]
        %v307 = vld [vmem:[%s185 + $0x388] sm:$0xff]
        %v308 = vld [vmem:[%s185 + $0x390] sm:$0xff]
        %v309 = vld [vmem:[%s185 + $0x398] sm:$0xff]
        %v310 = vld [vmem:[%s185 + $0x3a0] sm:$0xff]
        %v311 = vld [vmem:[%s185 + $0x3a8] sm:$0xff]
        %v312 = vld [vmem:[%s185 + $0x3b0] sm:$0xff]
        %v313 = vld [vmem:[%s185 + $0x3b8] sm:$0xff]
        %v314 = vld [vmem:[%s185 + $0x3c0] sm:$0xff]
        %v315 = vld [vmem:[%s185 + $0x3c8] sm:$0xff]
        %v316 = vld [vmem:[%s185 + $0x3d0] sm:$0xff]
        %v317 = vld [vmem:[%s185 + $0x3d8] sm:$0xff]
        %v318 = vld [vmem:[%s185 + $0x3e0] sm:$0xff]
        %v319 = vld [vmem:[%s185 + $0x3e8] sm:$0xff]
        %v320 = vld [vmem:[%s185 + $0x3f0] sm:$0xff]
        %v321 = vld [vmem:[%s185 + $0x3f8] sm:$0xff]
        %v322 = vlaneseq
        %v323 = vand.u32 %v322, 127
        %v324 = vadd.s32 %v323, 128
        %325 = vset.pattern.permute.xlu0 0
        %326 = vperm.xlu0 %325, %v194
        %v327 = vpop.permute.xlu0 %326
        %328 = vset.pattern.permute.xlu0 0
        %329 = vperm.xlu0 %328, %v195
        %v330 = vpop.permute.xlu0 %329
        %331 = vset.pattern.permute.xlu0 0
        %332 = vperm.xlu0 %331, %v196
        %v333 = vpop.permute.xlu0 %332
        %334 = vset.pattern.permute.xlu0 0
        %335 = vperm.xlu0 %334, %v197
        %v336 = vpop.permute.xlu0 %335
        %337 = vset.pattern.permute.xlu0 0
        %338 = vperm.xlu0 %337, %v198
        %v339 = vpop.permute.xlu0 %338
        %340 = vset.pattern.permute.xlu0 0
        %341 = vperm.xlu0 %340, %v199
        %v342 = vpop.permute.xlu0 %341
        %343 = vset.pattern.permute.xlu0 0
        %344 = vperm.xlu0 %343, %v200
        %v345 = vpop.permute.xlu0 %344
        %346 = vset.pattern.permute.xlu0 0
        %347 = vperm.xlu0 %346, %v201
        %v348 = vpop.permute.xlu0 %347
        %349 = vset.pattern.permute.xlu0 0
        %350 = vperm.xlu0 %349, %v202
        %v351 = vpop.permute.xlu0 %350
        %352 = vset.pattern.permute.xlu0 0
        %353 = vperm.xlu0 %352, %v203
        %v354 = vpop.permute.xlu0 %353
        %355 = vset.pattern.permute.xlu0 0
        %356 = vperm.xlu0 %355, %v204
        %v357 = vpop.permute.xlu0 %356
        %358 = vset.pattern.permute.xlu0 0
        %359 = vperm.xlu0 %358, %v205
        %v360 = vpop.permute.xlu0 %359
        %361 = vset.pattern.permute.xlu0 0
        %362 = vperm.xlu0 %361, %v206
        %v363 = vpop.permute.xlu0 %362
        %364 = vset.pattern.permute.xlu0 0
        %365 = vperm.xlu0 %364, %v207
        %v366 = vpop.permute.xlu0 %365
        %367 = vset.pattern.permute.xlu0 0
        %368 = vperm.xlu0 %367, %v208
        %v369 = vpop.permute.xlu0 %368
        %370 = vset.pattern.permute.xlu0 0
        %371 = vperm.xlu0 %370, %v209
        %v372 = vpop.permute.xlu0 %371
        %373 = vset.pattern.permute.xlu0 0
        %374 = vperm.xlu0 %373, %v210
        %v375 = vpop.permute.xlu0 %374
        %376 = vset.pattern.permute.xlu0 0
        %377 = vperm.xlu0 %376, %v211
        %v378 = vpop.permute.xlu0 %377
        %379 = vset.pattern.permute.xlu0 0
        %380 = vperm.xlu0 %379, %v212
        %v381 = vpop.permute.xlu0 %380
        %382 = vset.pattern.permute.xlu0 0
        %383 = vperm.xlu0 %382, %v213
        %v384 = vpop.permute.xlu0 %383
        %385 = vset.pattern.permute.xlu0 0
        %386 = vperm.xlu0 %385, %v214
        %v387 = vpop.permute.xlu0 %386
        %388 = vset.pattern.permute.xlu0 0
        %389 = vperm.xlu0 %388, %v215
        %v390 = vpop.permute.xlu0 %389
        %391 = vset.pattern.permute.xlu0 0
        %392 = vperm.xlu0 %391, %v216
        %v393 = vpop.permute.xlu0 %392
        %394 = vset.pattern.permute.xlu0 0
        %395 = vperm.xlu0 %394, %v217
        %v396 = vpop.permute.xlu0 %395
        %397 = vset.pattern.permute.xlu0 0
        %398 = vperm.xlu0 %397, %v218
        %v399 = vpop.permute.xlu0 %398
        %400 = vset.pattern.permute.xlu0 0
        %401 = vperm.xlu0 %400, %v219
        %v402 = vpop.permute.xlu0 %401
        %403 = vset.pattern.permute.xlu0 0
        %404 = vperm.xlu0 %403, %v220
        %v405 = vpop.permute.xlu0 %404
        %406 = vset.pattern.permute.xlu0 0
        %407 = vperm.xlu0 %406, %v221
        %v408 = vpop.permute.xlu0 %407
        %409 = vset.pattern.permute.xlu0 0
        %410 = vperm.xlu0 %409, %v222
        %v411 = vpop.permute.xlu0 %410
        %412 = vset.pattern.permute.xlu0 0
        %413 = vperm.xlu0 %412, %v223
        %v414 = vpop.permute.xlu0 %413
        %415 = vset.pattern.permute.xlu0 0
        %416 = vperm.xlu0 %415, %v224
        %v417 = vpop.permute.xlu0 %416
        %418 = vset.pattern.permute.xlu0 0
        %419 = vperm.xlu0 %418, %v225
        %v420 = vpop.permute.xlu0 %419
        %421 = vset.pattern.permute.xlu0 0
        %422 = vperm.xlu0 %421, %v226
        %v423 = vpop.permute.xlu0 %422
        %424 = vset.pattern.permute.xlu0 0
        %425 = vperm.xlu0 %424, %v227
        %v426 = vpop.permute.xlu0 %425
        %427 = vset.pattern.permute.xlu0 0
        %428 = vperm.xlu0 %427, %v228
        %v429 = vpop.permute.xlu0 %428
        %430 = vset.pattern.permute.xlu0 0
        %431 = vperm.xlu0 %430, %v229
        %v432 = vpop.permute.xlu0 %431
        %433 = vset.pattern.permute.xlu0 0
        %434 = vperm.xlu0 %433, %v230
        %v435 = vpop.permute.xlu0 %434
        %436 = vset.pattern.permute.xlu0 0
        %437 = vperm.xlu0 %436, %v231
        %v438 = vpop.permute.xlu0 %437
        %439 = vset.pattern.permute.xlu0 0
        %440 = vperm.xlu0 %439, %v232
        %v441 = vpop.permute.xlu0 %440
        %442 = vset.pattern.permute.xlu0 0
        %443 = vperm.xlu0 %442, %v233
        %v444 = vpop.permute.xlu0 %443
        %445 = vset.pattern.permute.xlu0 0
        %446 = vperm.xlu0 %445, %v234
        %v447 = vpop.permute.xlu0 %446
        %448 = vset.pattern.permute.xlu0 0
        %449 = vperm.xlu0 %448, %v235
        %v450 = vpop.permute.xlu0 %449
        %451 = vset.pattern.permute.xlu0 0
        %452 = vperm.xlu0 %451, %v236
        %v453 = vpop.permute.xlu0 %452
        %454 = vset.pattern.permute.xlu0 0
        %455 = vperm.xlu0 %454, %v237
        %v456 = vpop.permute.xlu0 %455
        %457 = vset.pattern.permute.xlu0 0
        %458 = vperm.xlu0 %457, %v238
        %v459 = vpop.permute.xlu0 %458
        %460 = vset.pattern.permute.xlu0 0
        %461 = vperm.xlu0 %460, %v239
        %v462 = vpop.permute.xlu0 %461
        %463 = vset.pattern.permute.xlu0 0
        %464 = vperm.xlu0 %463, %v240
        %v465 = vpop.permute.xlu0 %464
        %466 = vset.pattern.permute.xlu0 0
        %467 = vperm.xlu0 %466, %v241
        %v468 = vpop.permute.xlu0 %467
        %469 = vset.pattern.permute.xlu0 0
        %470 = vperm.xlu0 %469, %v242
        %v471 = vpop.permute.xlu0 %470
        %472 = vset.pattern.permute.xlu0 0
        %473 = vperm.xlu0 %472, %v243
        %v474 = vpop.permute.xlu0 %473
        %475 = vset.pattern.permute.xlu0 0
        %476 = vperm.xlu0 %475, %v244
        %v477 = vpop.permute.xlu0 %476
        %478 = vset.pattern.permute.xlu0 0
        %479 = vperm.xlu0 %478, %v245
        %v480 = vpop.permute.xlu0 %479
        %481 = vset.pattern.permute.xlu0 0
        %482 = vperm.xlu0 %481, %v246
        %v483 = vpop.permute.xlu0 %482
        %484 = vset.pattern.permute.xlu0 0
        %485 = vperm.xlu0 %484, %v247
        %v486 = vpop.permute.xlu0 %485
        %487 = vset.pattern.permute.xlu0 0
        %488 = vperm.xlu0 %487, %v248
        %v489 = vpop.permute.xlu0 %488
        %490 = vset.pattern.permute.xlu0 0
        %491 = vperm.xlu0 %490, %v249
        %v492 = vpop.permute.xlu0 %491
        %493 = vset.pattern.permute.xlu0 0
        %494 = vperm.xlu0 %493, %v250
        %v495 = vpop.permute.xlu0 %494
        %496 = vset.pattern.permute.xlu0 0
        %497 = vperm.xlu0 %496, %v251
        %v498 = vpop.permute.xlu0 %497
        %499 = vset.pattern.permute.xlu0 0
        %500 = vperm.xlu0 %499, %v252
        %v501 = vpop.permute.xlu0 %500
        %502 = vset.pattern.permute.xlu0 0
        %503 = vperm.xlu0 %502, %v253
        %v504 = vpop.permute.xlu0 %503
        %505 = vset.pattern.permute.xlu0 0
        %506 = vperm.xlu0 %505, %v254
        %v507 = vpop.permute.xlu0 %506
        %508 = vset.pattern.permute.xlu0 0
        %509 = vperm.xlu0 %508, %v255
        %v510 = vpop.permute.xlu0 %509
        %511 = vset.pattern.permute.xlu0 0
        %512 = vperm.xlu0 %511, %v256
        %v513 = vpop.permute.xlu0 %512
        %514 = vset.pattern.permute.xlu0 0
        %515 = vperm.xlu0 %514, %v257
        %v516 = vpop.permute.xlu0 %515
        %517 = vset.pattern.permute.xlu0 0
        %518 = vperm.xlu0 %517, %v258
        %v519 = vpop.permute.xlu0 %518
        %520 = vset.pattern.permute.xlu0 0
        %521 = vperm.xlu0 %520, %v259
        %v522 = vpop.permute.xlu0 %521
        %523 = vset.pattern.permute.xlu0 0
        %524 = vperm.xlu0 %523, %v260
        %v525 = vpop.permute.xlu0 %524
        %526 = vset.pattern.permute.xlu0 0
        %527 = vperm.xlu0 %526, %v261
        %v528 = vpop.permute.xlu0 %527
        %529 = vset.pattern.permute.xlu0 0
        %530 = vperm.xlu0 %529, %v262
        %v531 = vpop.permute.xlu0 %530
        %532 = vset.pattern.permute.xlu0 0
        %533 = vperm.xlu0 %532, %v263
        %v534 = vpop.permute.xlu0 %533
        %535 = vset.pattern.permute.xlu0 0
        %536 = vperm.xlu0 %535, %v264
        %v537 = vpop.permute.xlu0 %536
        %538 = vset.pattern.permute.xlu0 0
        %539 = vperm.xlu0 %538, %v265
        %v540 = vpop.permute.xlu0 %539
        %541 = vset.pattern.permute.xlu0 0
        %542 = vperm.xlu0 %541, %v266
        %v543 = vpop.permute.xlu0 %542
        %544 = vset.pattern.permute.xlu0 0
        %545 = vperm.xlu0 %544, %v267
        %v546 = vpop.permute.xlu0 %545
        %547 = vset.pattern.permute.xlu0 0
        %548 = vperm.xlu0 %547, %v268
        %v549 = vpop.permute.xlu0 %548
        %550 = vset.pattern.permute.xlu0 0
        %551 = vperm.xlu0 %550, %v269
        %v552 = vpop.permute.xlu0 %551
        %553 = vset.pattern.permute.xlu0 0
        %554 = vperm.xlu0 %553, %v270
        %v555 = vpop.permute.xlu0 %554
        %556 = vset.pattern.permute.xlu0 0
        %557 = vperm.xlu0 %556, %v271
        %v558 = vpop.permute.xlu0 %557
        %559 = vset.pattern.permute.xlu0 0
        %560 = vperm.xlu0 %559, %v272
        %v561 = vpop.permute.xlu0 %560
        %562 = vset.pattern.permute.xlu0 0
        %563 = vperm.xlu0 %562, %v273
        %v564 = vpop.permute.xlu0 %563
        %565 = vset.pattern.permute.xlu0 0
        %566 = vperm.xlu0 %565, %v274
        %v567 = vpop.permute.xlu0 %566
        %568 = vset.pattern.permute.xlu0 0
        %569 = vperm.xlu0 %568, %v275
        %v570 = vpop.permute.xlu0 %569
        %571 = vset.pattern.permute.xlu0 0
        %572 = vperm.xlu0 %571, %v276
        %v573 = vpop.permute.xlu0 %572
        %574 = vset.pattern.permute.xlu0 0
        %575 = vperm.xlu0 %574, %v277
        %v576 = vpop.permute.xlu0 %575
        %577 = vset.pattern.permute.xlu0 0
        %578 = vperm.xlu0 %577, %v278
        %v579 = vpop.permute.xlu0 %578
        %580 = vset.pattern.permute.xlu0 0
        %581 = vperm.xlu0 %580, %v279
        %v582 = vpop.permute.xlu0 %581
        %583 = vset.pattern.permute.xlu0 0
        %584 = vperm.xlu0 %583, %v280
        %v585 = vpop.permute.xlu0 %584
        %586 = vset.pattern.permute.xlu0 0
        %587 = vperm.xlu0 %586, %v281
        %v588 = vpop.permute.xlu0 %587
        %589 = vset.pattern.permute.xlu0 0
        %590 = vperm.xlu0 %589, %v282
        %v591 = vpop.permute.xlu0 %590
        %592 = vset.pattern.permute.xlu0 0
        %593 = vperm.xlu0 %592, %v283
        %v594 = vpop.permute.xlu0 %593
        %595 = vset.pattern.permute.xlu0 0
        %596 = vperm.xlu0 %595, %v284
        %v597 = vpop.permute.xlu0 %596
        %598 = vset.pattern.permute.xlu0 0
        %599 = vperm.xlu0 %598, %v285
        %v600 = vpop.permute.xlu0 %599
        %601 = vset.pattern.permute.xlu0 0
        %602 = vperm.xlu0 %601, %v286
        %v603 = vpop.permute.xlu0 %602
        %604 = vset.pattern.permute.xlu0 0
        %605 = vperm.xlu0 %604, %v287
        %v606 = vpop.permute.xlu0 %605
        %607 = vset.pattern.permute.xlu0 0
        %608 = vperm.xlu0 %607, %v288
        %v609 = vpop.permute.xlu0 %608
        %610 = vset.pattern.permute.xlu0 0
        %611 = vperm.xlu0 %610, %v289
        %v612 = vpop.permute.xlu0 %611
        %613 = vset.pattern.permute.xlu0 0
        %614 = vperm.xlu0 %613, %v290
        %v615 = vpop.permute.xlu0 %614
        %616 = vset.pattern.permute.xlu0 0
        %617 = vperm.xlu0 %616, %v291
        %v618 = vpop.permute.xlu0 %617
        %619 = vset.pattern.permute.xlu0 0
        %620 = vperm.xlu0 %619, %v292
        %v621 = vpop.permute.xlu0 %620
        %622 = vset.pattern.permute.xlu0 0
        %623 = vperm.xlu0 %622, %v293
        %v624 = vpop.permute.xlu0 %623
        %625 = vset.pattern.permute.xlu0 0
        %626 = vperm.xlu0 %625, %v294
        %v627 = vpop.permute.xlu0 %626
        %628 = vset.pattern.permute.xlu0 0
        %629 = vperm.xlu0 %628, %v295
        %v630 = vpop.permute.xlu0 %629
        %631 = vset.pattern.permute.xlu0 0
        %632 = vperm.xlu0 %631, %v296
        %v633 = vpop.permute.xlu0 %632
        %634 = vset.pattern.permute.xlu0 0
        %635 = vperm.xlu0 %634, %v297
        %v636 = vpop.permute.xlu0 %635
        %637 = vset.pattern.permute.xlu0 0
        %638 = vperm.xlu0 %637, %v298
        %v639 = vpop.permute.xlu0 %638
        %640 = vset.pattern.permute.xlu0 0
        %641 = vperm.xlu0 %640, %v299
        %v642 = vpop.permute.xlu0 %641
        %643 = vset.pattern.permute.xlu0 0
        %644 = vperm.xlu0 %643, %v300
        %v645 = vpop.permute.xlu0 %644
        %646 = vset.pattern.permute.xlu0 0
        %647 = vperm.xlu0 %646, %v301
        %v648 = vpop.permute.xlu0 %647
        %649 = vset.pattern.permute.xlu0 0
        %650 = vperm.xlu0 %649, %v302
        %v651 = vpop.permute.xlu0 %650
        %652 = vset.pattern.permute.xlu0 0
        %653 = vperm.xlu0 %652, %v303
        %v654 = vpop.permute.xlu0 %653
        %655 = vset.pattern.permute.xlu0 0
        %656 = vperm.xlu0 %655, %v304
        %v657 = vpop.permute.xlu0 %656
        %658 = vset.pattern.permute.xlu0 0
        %659 = vperm.xlu0 %658, %v305
        %v660 = vpop.permute.xlu0 %659
        %661 = vset.pattern.permute.xlu0 0
        %662 = vperm.xlu0 %661, %v306
        %v663 = vpop.permute.xlu0 %662
        %664 = vset.pattern.permute.xlu0 0
        %665 = vperm.xlu0 %664, %v307
        %v666 = vpop.permute.xlu0 %665
        %667 = vset.pattern.permute.xlu0 0
        %668 = vperm.xlu0 %667, %v308
        %v669 = vpop.permute.xlu0 %668
        %670 = vset.pattern.permute.xlu0 0
        %671 = vperm.xlu0 %670, %v309
        %v672 = vpop.permute.xlu0 %671
        %673 = vset.pattern.permute.xlu0 0
        %674 = vperm.xlu0 %673, %v310
        %v675 = vpop.permute.xlu0 %674
        %676 = vset.pattern.permute.xlu0 0
        %677 = vperm.xlu0 %676, %v311
        %v678 = vpop.permute.xlu0 %677
        %679 = vset.pattern.permute.xlu0 0
        %680 = vperm.xlu0 %679, %v312
        %v681 = vpop.permute.xlu0 %680
        %682 = vset.pattern.permute.xlu0 0
        %683 = vperm.xlu0 %682, %v313
        %v684 = vpop.permute.xlu0 %683
        %685 = vset.pattern.permute.xlu0 0
        %686 = vperm.xlu0 %685, %v314
        %v687 = vpop.permute.xlu0 %686
        %688 = vset.pattern.permute.xlu0 0
        %689 = vperm.xlu0 %688, %v315
        %v690 = vpop.permute.xlu0 %689
        %691 = vset.pattern.permute.xlu0 0
        %692 = vperm.xlu0 %691, %v316
        %v693 = vpop.permute.xlu0 %692
        %694 = vset.pattern.permute.xlu0 0
        %695 = vperm.xlu0 %694, %v317
        %v696 = vpop.permute.xlu0 %695
        %697 = vset.pattern.permute.xlu0 0
        %698 = vperm.xlu0 %697, %v318
        %v699 = vpop.permute.xlu0 %698
        %700 = vset.pattern.permute.xlu0 0
        %701 = vperm.xlu0 %700, %v319
        %v702 = vpop.permute.xlu0 %701
        %703 = vset.pattern.permute.xlu0 0
        %704 = vperm.xlu0 %703, %v320
        %v705 = vpop.permute.xlu0 %704
        %706 = vset.pattern.permute.xlu0 0
        %707 = vperm.xlu0 %706, %v321
        %v708 = vpop.permute.xlu0 %707
        %vm709 = vcmp.eq.s32.totalorder %v327, %v323
        %vm710 = vcmp.eq.s32.totalorder %v327, %v324
        %vm711 = vcmp.eq.s32.totalorder %v330, %v323
        %vm712 = vcmp.eq.s32.totalorder %v330, %v324
        %vm713 = vcmp.eq.s32.totalorder %v333, %v323
        %vm714 = vcmp.eq.s32.totalorder %v333, %v324
        %vm715 = vcmp.eq.s32.totalorder %v336, %v323
        %vm716 = vcmp.eq.s32.totalorder %v336, %v324
        %vm717 = vcmp.eq.s32.totalorder %v339, %v323
        %vm718 = vcmp.eq.s32.totalorder %v339, %v324
        %vm719 = vcmp.eq.s32.totalorder %v342, %v323
        %vm720 = vcmp.eq.s32.totalorder %v342, %v324
        %vm721 = vcmp.eq.s32.totalorder %v345, %v323
        %vm722 = vcmp.eq.s32.totalorder %v345, %v324
        %vm723 = vcmp.eq.s32.totalorder %v348, %v323
        %vm724 = vcmp.eq.s32.totalorder %v348, %v324
        %vm725 = vcmp.eq.s32.totalorder %v351, %v323
        %vm726 = vcmp.eq.s32.totalorder %v351, %v324
        %vm727 = vcmp.eq.s32.totalorder %v354, %v323
        %vm728 = vcmp.eq.s32.totalorder %v354, %v324
        %vm729 = vcmp.eq.s32.totalorder %v357, %v323
        %vm730 = vcmp.eq.s32.totalorder %v357, %v324
        %vm731 = vcmp.eq.s32.totalorder %v360, %v323
        %vm732 = vcmp.eq.s32.totalorder %v360, %v324
        %vm733 = vcmp.eq.s32.totalorder %v363, %v323
        %vm734 = vcmp.eq.s32.totalorder %v363, %v324
        %vm735 = vcmp.eq.s32.totalorder %v366, %v323
        %vm736 = vcmp.eq.s32.totalorder %v366, %v324
        %vm737 = vcmp.eq.s32.totalorder %v369, %v323
        %vm738 = vcmp.eq.s32.totalorder %v369, %v324
        %vm739 = vcmp.eq.s32.totalorder %v372, %v323
        %vm740 = vcmp.eq.s32.totalorder %v372, %v324
        %vm741 = vcmp.eq.s32.totalorder %v375, %v323
        %vm742 = vcmp.eq.s32.totalorder %v375, %v324
        %vm743 = vcmp.eq.s32.totalorder %v378, %v323
        %vm744 = vcmp.eq.s32.totalorder %v378, %v324
        %vm745 = vcmp.eq.s32.totalorder %v381, %v323
        %vm746 = vcmp.eq.s32.totalorder %v381, %v324
        %vm747 = vcmp.eq.s32.totalorder %v384, %v323
        %vm748 = vcmp.eq.s32.totalorder %v384, %v324
        %vm749 = vcmp.eq.s32.totalorder %v387, %v323
        %vm750 = vcmp.eq.s32.totalorder %v387, %v324
        %vm751 = vcmp.eq.s32.totalorder %v390, %v323
        %vm752 = vcmp.eq.s32.totalorder %v390, %v324
        %vm753 = vcmp.eq.s32.totalorder %v393, %v323
        %vm754 = vcmp.eq.s32.totalorder %v393, %v324
        %vm755 = vcmp.eq.s32.totalorder %v396, %v323
        %vm756 = vcmp.eq.s32.totalorder %v396, %v324
        %vm757 = vcmp.eq.s32.totalorder %v399, %v323
        %vm758 = vcmp.eq.s32.totalorder %v399, %v324
        %vm759 = vcmp.eq.s32.totalorder %v402, %v323
        %vm760 = vcmp.eq.s32.totalorder %v402, %v324
        %vm761 = vcmp.eq.s32.totalorder %v405, %v323
        %vm762 = vcmp.eq.s32.totalorder %v405, %v324
        %vm763 = vcmp.eq.s32.totalorder %v408, %v323
        %vm764 = vcmp.eq.s32.totalorder %v408, %v324
        %vm765 = vcmp.eq.s32.totalorder %v411, %v323
        %vm766 = vcmp.eq.s32.totalorder %v411, %v324
        %vm767 = vcmp.eq.s32.totalorder %v414, %v323
        %vm768 = vcmp.eq.s32.totalorder %v414, %v324
        %vm769 = vcmp.eq.s32.totalorder %v417, %v323
        %vm770 = vcmp.eq.s32.totalorder %v417, %v324
        %vm771 = vcmp.eq.s32.totalorder %v420, %v323
        %vm772 = vcmp.eq.s32.totalorder %v420, %v324
        %vm773 = vcmp.eq.s32.totalorder %v423, %v323
        %vm774 = vcmp.eq.s32.totalorder %v423, %v324
        %vm775 = vcmp.eq.s32.totalorder %v426, %v323
        %vm776 = vcmp.eq.s32.totalorder %v426, %v324
        %vm777 = vcmp.eq.s32.totalorder %v429, %v323
        %vm778 = vcmp.eq.s32.totalorder %v429, %v324
        %vm779 = vcmp.eq.s32.totalorder %v432, %v323
        %vm780 = vcmp.eq.s32.totalorder %v432, %v324
        %vm781 = vcmp.eq.s32.totalorder %v435, %v323
        %vm782 = vcmp.eq.s32.totalorder %v435, %v324
        %vm783 = vcmp.eq.s32.totalorder %v438, %v323
        %vm784 = vcmp.eq.s32.totalorder %v438, %v324
        %vm785 = vcmp.eq.s32.totalorder %v441, %v323
        %vm786 = vcmp.eq.s32.totalorder %v441, %v324
        %vm787 = vcmp.eq.s32.totalorder %v444, %v323
        %vm788 = vcmp.eq.s32.totalorder %v444, %v324
        %vm789 = vcmp.eq.s32.totalorder %v447, %v323
        %vm790 = vcmp.eq.s32.totalorder %v447, %v324
        %vm791 = vcmp.eq.s32.totalorder %v450, %v323
        %vm792 = vcmp.eq.s32.totalorder %v450, %v324
        %vm793 = vcmp.eq.s32.totalorder %v453, %v323
        %vm794 = vcmp.eq.s32.totalorder %v453, %v324
        %vm795 = vcmp.eq.s32.totalorder %v456, %v323
        %vm796 = vcmp.eq.s32.totalorder %v456, %v324
        %vm797 = vcmp.eq.s32.totalorder %v459, %v323
        %vm798 = vcmp.eq.s32.totalorder %v459, %v324
        %vm799 = vcmp.eq.s32.totalorder %v462, %v323
        %vm800 = vcmp.eq.s32.totalorder %v462, %v324
        %vm801 = vcmp.eq.s32.totalorder %v465, %v323
        %vm802 = vcmp.eq.s32.totalorder %v465, %v324
        %vm803 = vcmp.eq.s32.totalorder %v468, %v323
        %vm804 = vcmp.eq.s32.totalorder %v468, %v324
        %vm805 = vcmp.eq.s32.totalorder %v471, %v323
        %vm806 = vcmp.eq.s32.totalorder %v471, %v324
        %vm807 = vcmp.eq.s32.totalorder %v474, %v323
        %vm808 = vcmp.eq.s32.totalorder %v474, %v324
        %vm809 = vcmp.eq.s32.totalorder %v477, %v323
        %vm810 = vcmp.eq.s32.totalorder %v477, %v324
        %vm811 = vcmp.eq.s32.totalorder %v480, %v323
        %vm812 = vcmp.eq.s32.totalorder %v480, %v324
        %vm813 = vcmp.eq.s32.totalorder %v483, %v323
        %vm814 = vcmp.eq.s32.totalorder %v483, %v324
        %vm815 = vcmp.eq.s32.totalorder %v486, %v323
        %vm816 = vcmp.eq.s32.totalorder %v486, %v324
        %vm817 = vcmp.eq.s32.totalorder %v489, %v323
        %vm818 = vcmp.eq.s32.totalorder %v489, %v324
        %vm819 = vcmp.eq.s32.totalorder %v492, %v323
        %vm820 = vcmp.eq.s32.totalorder %v492, %v324
        %vm821 = vcmp.eq.s32.totalorder %v495, %v323
        %vm822 = vcmp.eq.s32.totalorder %v495, %v324
        %vm823 = vcmp.eq.s32.totalorder %v498, %v323
        %vm824 = vcmp.eq.s32.totalorder %v498, %v324
        %vm825 = vcmp.eq.s32.totalorder %v501, %v323
        %vm826 = vcmp.eq.s32.totalorder %v501, %v324
        %vm827 = vcmp.eq.s32.totalorder %v504, %v323
        %vm828 = vcmp.eq.s32.totalorder %v504, %v324
        %vm829 = vcmp.eq.s32.totalorder %v507, %v323
        %vm830 = vcmp.eq.s32.totalorder %v507, %v324
        %vm831 = vcmp.eq.s32.totalorder %v510, %v323
        %vm832 = vcmp.eq.s32.totalorder %v510, %v324
        %vm833 = vcmp.eq.s32.totalorder %v513, %v323
        %vm834 = vcmp.eq.s32.totalorder %v513, %v324
        %vm835 = vcmp.eq.s32.totalorder %v516, %v323
        %vm836 = vcmp.eq.s32.totalorder %v516, %v324
        %vm837 = vcmp.eq.s32.totalorder %v519, %v323
        %vm838 = vcmp.eq.s32.totalorder %v519, %v324
        %vm839 = vcmp.eq.s32.totalorder %v522, %v323
        %vm840 = vcmp.eq.s32.totalorder %v522, %v324
        %vm841 = vcmp.eq.s32.totalorder %v525, %v323
        %vm842 = vcmp.eq.s32.totalorder %v525, %v324
        %vm843 = vcmp.eq.s32.totalorder %v528, %v323
        %vm844 = vcmp.eq.s32.totalorder %v528, %v324
        %vm845 = vcmp.eq.s32.totalorder %v531, %v323
        %vm846 = vcmp.eq.s32.totalorder %v531, %v324
        %vm847 = vcmp.eq.s32.totalorder %v534, %v323
        %vm848 = vcmp.eq.s32.totalorder %v534, %v324
        %vm849 = vcmp.eq.s32.totalorder %v537, %v323
        %vm850 = vcmp.eq.s32.totalorder %v537, %v324
        %vm851 = vcmp.eq.s32.totalorder %v540, %v323
        %vm852 = vcmp.eq.s32.totalorder %v540, %v324
        %vm853 = vcmp.eq.s32.totalorder %v543, %v323
        %vm854 = vcmp.eq.s32.totalorder %v543, %v324
        %vm855 = vcmp.eq.s32.totalorder %v546, %v323
        %vm856 = vcmp.eq.s32.totalorder %v546, %v324
        %vm857 = vcmp.eq.s32.totalorder %v549, %v323
        %vm858 = vcmp.eq.s32.totalorder %v549, %v324
        %vm859 = vcmp.eq.s32.totalorder %v552, %v323
        %vm860 = vcmp.eq.s32.totalorder %v552, %v324
        %vm861 = vcmp.eq.s32.totalorder %v555, %v323
        %vm862 = vcmp.eq.s32.totalorder %v555, %v324
        %vm863 = vcmp.eq.s32.totalorder %v558, %v323
        %vm864 = vcmp.eq.s32.totalorder %v558, %v324
        %vm865 = vcmp.eq.s32.totalorder %v561, %v323
        %vm866 = vcmp.eq.s32.totalorder %v561, %v324
        %vm867 = vcmp.eq.s32.totalorder %v564, %v323
        %vm868 = vcmp.eq.s32.totalorder %v564, %v324
        %vm869 = vcmp.eq.s32.totalorder %v567, %v323
        %vm870 = vcmp.eq.s32.totalorder %v567, %v324
        %vm871 = vcmp.eq.s32.totalorder %v570, %v323
        %vm872 = vcmp.eq.s32.totalorder %v570, %v324
        %vm873 = vcmp.eq.s32.totalorder %v573, %v323
        %vm874 = vcmp.eq.s32.totalorder %v573, %v324
        %vm875 = vcmp.eq.s32.totalorder %v576, %v323
        %vm876 = vcmp.eq.s32.totalorder %v576, %v324
        %vm877 = vcmp.eq.s32.totalorder %v579, %v323
        %vm878 = vcmp.eq.s32.totalorder %v579, %v324
        %vm879 = vcmp.eq.s32.totalorder %v582, %v323
        %vm880 = vcmp.eq.s32.totalorder %v582, %v324
        %vm881 = vcmp.eq.s32.totalorder %v585, %v323
        %vm882 = vcmp.eq.s32.totalorder %v585, %v324
        %vm883 = vcmp.eq.s32.totalorder %v588, %v323
        %vm884 = vcmp.eq.s32.totalorder %v588, %v324
        %vm885 = vcmp.eq.s32.totalorder %v591, %v323
        %vm886 = vcmp.eq.s32.totalorder %v591, %v324
        %vm887 = vcmp.eq.s32.totalorder %v594, %v323
        %vm888 = vcmp.eq.s32.totalorder %v594, %v324
        %vm889 = vcmp.eq.s32.totalorder %v597, %v323
        %vm890 = vcmp.eq.s32.totalorder %v597, %v324
        %vm891 = vcmp.eq.s32.totalorder %v600, %v323
        %vm892 = vcmp.eq.s32.totalorder %v600, %v324
        %vm893 = vcmp.eq.s32.totalorder %v603, %v323
        %vm894 = vcmp.eq.s32.totalorder %v603, %v324
        %vm895 = vcmp.eq.s32.totalorder %v606, %v323
        %vm896 = vcmp.eq.s32.totalorder %v606, %v324
        %vm897 = vcmp.eq.s32.totalorder %v609, %v323
        %vm898 = vcmp.eq.s32.totalorder %v609, %v324
        %vm899 = vcmp.eq.s32.totalorder %v612, %v323
        %vm900 = vcmp.eq.s32.totalorder %v612, %v324
        %vm901 = vcmp.eq.s32.totalorder %v615, %v323
        %vm902 = vcmp.eq.s32.totalorder %v615, %v324
        %vm903 = vcmp.eq.s32.totalorder %v618, %v323
        %vm904 = vcmp.eq.s32.totalorder %v618, %v324
        %vm905 = vcmp.eq.s32.totalorder %v621, %v323
        %vm906 = vcmp.eq.s32.totalorder %v621, %v324
        %vm907 = vcmp.eq.s32.totalorder %v624, %v323
        %vm908 = vcmp.eq.s32.totalorder %v624, %v324
        %vm909 = vcmp.eq.s32.totalorder %v627, %v323
        %vm910 = vcmp.eq.s32.totalorder %v627, %v324
        %vm911 = vcmp.eq.s32.totalorder %v630, %v323
        %vm912 = vcmp.eq.s32.totalorder %v630, %v324
        %vm913 = vcmp.eq.s32.totalorder %v633, %v323
        %vm914 = vcmp.eq.s32.totalorder %v633, %v324
        %vm915 = vcmp.eq.s32.totalorder %v636, %v323
        %vm916 = vcmp.eq.s32.totalorder %v636, %v324
        %vm917 = vcmp.eq.s32.totalorder %v639, %v323
        %vm918 = vcmp.eq.s32.totalorder %v639, %v324
        %vm919 = vcmp.eq.s32.totalorder %v642, %v323
        %vm920 = vcmp.eq.s32.totalorder %v642, %v324
        %vm921 = vcmp.eq.s32.totalorder %v645, %v323
        %vm922 = vcmp.eq.s32.totalorder %v645, %v324
        %vm923 = vcmp.eq.s32.totalorder %v648, %v323
        %vm924 = vcmp.eq.s32.totalorder %v648, %v324
        %vm925 = vcmp.eq.s32.totalorder %v651, %v323
        %vm926 = vcmp.eq.s32.totalorder %v651, %v324
        %vm927 = vcmp.eq.s32.totalorder %v654, %v323
        %vm928 = vcmp.eq.s32.totalorder %v654, %v324
        %vm929 = vcmp.eq.s32.totalorder %v657, %v323
        %vm930 = vcmp.eq.s32.totalorder %v657, %v324
        %vm931 = vcmp.eq.s32.totalorder %v660, %v323
        %vm932 = vcmp.eq.s32.totalorder %v660, %v324
        %vm933 = vcmp.eq.s32.totalorder %v663, %v323
        %vm934 = vcmp.eq.s32.totalorder %v663, %v324
        %vm935 = vcmp.eq.s32.totalorder %v666, %v323
        %vm936 = vcmp.eq.s32.totalorder %v666, %v324
        %vm937 = vcmp.eq.s32.totalorder %v669, %v323
        %vm938 = vcmp.eq.s32.totalorder %v669, %v324
        %vm939 = vcmp.eq.s32.totalorder %v672, %v323
        %vm940 = vcmp.eq.s32.totalorder %v672, %v324
        %vm941 = vcmp.eq.s32.totalorder %v675, %v323
        %vm942 = vcmp.eq.s32.totalorder %v675, %v324
        %vm943 = vcmp.eq.s32.totalorder %v678, %v323
        %vm944 = vcmp.eq.s32.totalorder %v678, %v324
        %vm945 = vcmp.eq.s32.totalorder %v681, %v323
        %vm946 = vcmp.eq.s32.totalorder %v681, %v324
        %vm947 = vcmp.eq.s32.totalorder %v684, %v323
        %vm948 = vcmp.eq.s32.totalorder %v684, %v324
        %vm949 = vcmp.eq.s32.totalorder %v687, %v323
        %vm950 = vcmp.eq.s32.totalorder %v687, %v324
        %vm951 = vcmp.eq.s32.totalorder %v690, %v323
        %vm952 = vcmp.eq.s32.totalorder %v690, %v324
        %vm953 = vcmp.eq.s32.totalorder %v693, %v323
        %vm954 = vcmp.eq.s32.totalorder %v693, %v324
        %vm955 = vcmp.eq.s32.totalorder %v696, %v323
        %vm956 = vcmp.eq.s32.totalorder %v696, %v324
        %vm957 = vcmp.eq.s32.totalorder %v699, %v323
        %vm958 = vcmp.eq.s32.totalorder %v699, %v324
        %vm959 = vcmp.eq.s32.totalorder %v702, %v323
        %vm960 = vcmp.eq.s32.totalorder %v702, %v324
        %vm961 = vcmp.eq.s32.totalorder %v705, %v323
        %vm962 = vcmp.eq.s32.totalorder %v705, %v324
        %vm963 = vcmp.eq.s32.totalorder %v708, %v323
        %vm964 = vcmp.eq.s32.totalorder %v708, %v324
        %v965 = vsel %vm709, 1, 0
        %v966 = vsel %vm710, 1, 0
        %v967 = vsel %vm711, 1, 0
        %v968 = vsel %vm712, 1, 0
        %v969 = vsel %vm713, 1, 0
        %v970 = vsel %vm714, 1, 0
        %v971 = vsel %vm715, 1, 0
        %v972 = vsel %vm716, 1, 0
        %v973 = vsel %vm717, 1, 0
        %v974 = vsel %vm718, 1, 0
        %v975 = vsel %vm719, 1, 0
        %v976 = vsel %vm720, 1, 0
        %v977 = vsel %vm721, 1, 0
        %v978 = vsel %vm722, 1, 0
        %v979 = vsel %vm723, 1, 0
        %v980 = vsel %vm724, 1, 0
        %v981 = vsel %vm725, 1, 0
        %v982 = vsel %vm726, 1, 0
        %v983 = vsel %vm727, 1, 0
        %v984 = vsel %vm728, 1, 0
        %v985 = vsel %vm729, 1, 0
        %v986 = vsel %vm730, 1, 0
        %v987 = vsel %vm731, 1, 0
        %v988 = vsel %vm732, 1, 0
        %v989 = vsel %vm733, 1, 0
        %v990 = vsel %vm734, 1, 0
        %v991 = vsel %vm735, 1, 0
        %v992 = vsel %vm736, 1, 0
        %v993 = vsel %vm737, 1, 0
        %v994 = vsel %vm738, 1, 0
        %v995 = vsel %vm739, 1, 0
        %v996 = vsel %vm740, 1, 0
        %v997 = vsel %vm741, 1, 0
        %v998 = vsel %vm742, 1, 0
        %v999 = vsel %vm743, 1, 0
        %v1000 = vsel %vm744, 1, 0
        %v1001 = vsel %vm745, 1, 0
        %v1002 = vsel %vm746, 1, 0
        %v1003 = vsel %vm747, 1, 0
        %v1004 = vsel %vm748, 1, 0
        %v1005 = vsel %vm749, 1, 0
        %v1006 = vsel %vm750, 1, 0
        %v1007 = vsel %vm751, 1, 0
        %v1008 = vsel %vm752, 1, 0
        %v1009 = vsel %vm753, 1, 0
        %v1010 = vsel %vm754, 1, 0
        %v1011 = vsel %vm755, 1, 0
        %v1012 = vsel %vm756, 1, 0
        %v1013 = vsel %vm757, 1, 0
        %v1014 = vsel %vm758, 1, 0
        %v1015 = vsel %vm759, 1, 0
        %v1016 = vsel %vm760, 1, 0
        %v1017 = vsel %vm761, 1, 0
        %v1018 = vsel %vm762, 1, 0
        %v1019 = vsel %vm763, 1, 0
        %v1020 = vsel %vm764, 1, 0
        %v1021 = vsel %vm765, 1, 0
        %v1022 = vsel %vm766, 1, 0
        %v1023 = vsel %vm767, 1, 0
        %v1024 = vsel %vm768, 1, 0
        %v1025 = vsel %vm769, 1, 0
        %v1026 = vsel %vm770, 1, 0
        %v1027 = vsel %vm771, 1, 0
        %v1028 = vsel %vm772, 1, 0
        %v1029 = vsel %vm773, 1, 0
        %v1030 = vsel %vm774, 1, 0
        %v1031 = vsel %vm775, 1, 0
        %v1032 = vsel %vm776, 1, 0
        %v1033 = vsel %vm777, 1, 0
        %v1034 = vsel %vm778, 1, 0
        %v1035 = vsel %vm779, 1, 0
        %v1036 = vsel %vm780, 1, 0
        %v1037 = vsel %vm781, 1, 0
        %v1038 = vsel %vm782, 1, 0
        %v1039 = vsel %vm783, 1, 0
        %v1040 = vsel %vm784, 1, 0
        %v1041 = vsel %vm785, 1, 0
        %v1042 = vsel %vm786, 1, 0
        %v1043 = vsel %vm787, 1, 0
        %v1044 = vsel %vm788, 1, 0
        %v1045 = vsel %vm789, 1, 0
        %v1046 = vsel %vm790, 1, 0
        %v1047 = vsel %vm791, 1, 0
        %v1048 = vsel %vm792, 1, 0
        %v1049 = vsel %vm793, 1, 0
        %v1050 = vsel %vm794, 1, 0
        %v1051 = vsel %vm795, 1, 0
        %v1052 = vsel %vm796, 1, 0
        %v1053 = vsel %vm797, 1, 0
        %v1054 = vsel %vm798, 1, 0
        %v1055 = vsel %vm799, 1, 0
        %v1056 = vsel %vm800, 1, 0
        %v1057 = vsel %vm801, 1, 0
        %v1058 = vsel %vm802, 1, 0
        %v1059 = vsel %vm803, 1, 0
        %v1060 = vsel %vm804, 1, 0
        %v1061 = vsel %vm805, 1, 0
        %v1062 = vsel %vm806, 1, 0
        %v1063 = vsel %vm807, 1, 0
        %v1064 = vsel %vm808, 1, 0
        %v1065 = vsel %vm809, 1, 0
        %v1066 = vsel %vm810, 1, 0
        %v1067 = vsel %vm811, 1, 0
        %v1068 = vsel %vm812, 1, 0
        %v1069 = vsel %vm813, 1, 0
        %v1070 = vsel %vm814, 1, 0
        %v1071 = vsel %vm815, 1, 0
        %v1072 = vsel %vm816, 1, 0
        %v1073 = vsel %vm817, 1, 0
        %v1074 = vsel %vm818, 1, 0
        %v1075 = vsel %vm819, 1, 0
        %v1076 = vsel %vm820, 1, 0
        %v1077 = vsel %vm821, 1, 0
        %v1078 = vsel %vm822, 1, 0
        %v1079 = vsel %vm823, 1, 0
        %v1080 = vsel %vm824, 1, 0
        %v1081 = vsel %vm825, 1, 0
        %v1082 = vsel %vm826, 1, 0
        %v1083 = vsel %vm827, 1, 0
        %v1084 = vsel %vm828, 1, 0
        %v1085 = vsel %vm829, 1, 0
        %v1086 = vsel %vm830, 1, 0
        %v1087 = vsel %vm831, 1, 0
        %v1088 = vsel %vm832, 1, 0
        %v1089 = vsel %vm833, 1, 0
        %v1090 = vsel %vm834, 1, 0
        %v1091 = vsel %vm835, 1, 0
        %v1092 = vsel %vm836, 1, 0
        %v1093 = vsel %vm837, 1, 0
        %v1094 = vsel %vm838, 1, 0
        %v1095 = vsel %vm839, 1, 0
        %v1096 = vsel %vm840, 1, 0
        %v1097 = vsel %vm841, 1, 0
        %v1098 = vsel %vm842, 1, 0
        %v1099 = vsel %vm843, 1, 0
        %v1100 = vsel %vm844, 1, 0
        %v1101 = vsel %vm845, 1, 0
        %v1102 = vsel %vm846, 1, 0
        %v1103 = vsel %vm847, 1, 0
        %v1104 = vsel %vm848, 1, 0
        %v1105 = vsel %vm849, 1, 0
        %v1106 = vsel %vm850, 1, 0
        %v1107 = vsel %vm851, 1, 0
        %v1108 = vsel %vm852, 1, 0
        %v1109 = vsel %vm853, 1, 0
        %v1110 = vsel %vm854, 1, 0
        %v1111 = vsel %vm855, 1, 0
        %v1112 = vsel %vm856, 1, 0
        %v1113 = vsel %vm857, 1, 0
        %v1114 = vsel %vm858, 1, 0
        %v1115 = vsel %vm859, 1, 0
        %v1116 = vsel %vm860, 1, 0
        %v1117 = vsel %vm861, 1, 0
        %v1118 = vsel %vm862, 1, 0
        %v1119 = vsel %vm863, 1, 0
        %v1120 = vsel %vm864, 1, 0
        %v1121 = vsel %vm865, 1, 0
        %v1122 = vsel %vm866, 1, 0
        %v1123 = vsel %vm867, 1, 0
        %v1124 = vsel %vm868, 1, 0
        %v1125 = vsel %vm869, 1, 0
        %v1126 = vsel %vm870, 1, 0
        %v1127 = vsel %vm871, 1, 0
        %v1128 = vsel %vm872, 1, 0
        %v1129 = vsel %vm873, 1, 0
        %v1130 = vsel %vm874, 1, 0
        %v1131 = vsel %vm875, 1, 0
        %v1132 = vsel %vm876, 1, 0
        %v1133 = vsel %vm877, 1, 0
        %v1134 = vsel %vm878, 1, 0
        %v1135 = vsel %vm879, 1, 0
        %v1136 = vsel %vm880, 1, 0
        %v1137 = vsel %vm881, 1, 0
        %v1138 = vsel %vm882, 1, 0
        %v1139 = vsel %vm883, 1, 0
        %v1140 = vsel %vm884, 1, 0
        %v1141 = vsel %vm885, 1, 0
        %v1142 = vsel %vm886, 1, 0
        %v1143 = vsel %vm887, 1, 0
        %v1144 = vsel %vm888, 1, 0
        %v1145 = vsel %vm889, 1, 0
        %v1146 = vsel %vm890, 1, 0
        %v1147 = vsel %vm891, 1, 0
        %v1148 = vsel %vm892, 1, 0
        %v1149 = vsel %vm893, 1, 0
        %v1150 = vsel %vm894, 1, 0
        %v1151 = vsel %vm895, 1, 0
        %v1152 = vsel %vm896, 1, 0
        %v1153 = vsel %vm897, 1, 0
        %v1154 = vsel %vm898, 1, 0
        %v1155 = vsel %vm899, 1, 0
        %v1156 = vsel %vm900, 1, 0
        %v1157 = vsel %vm901, 1, 0
        %v1158 = vsel %vm902, 1, 0
        %v1159 = vsel %vm903, 1, 0
        %v1160 = vsel %vm904, 1, 0
        %v1161 = vsel %vm905, 1, 0
        %v1162 = vsel %vm906, 1, 0
        %v1163 = vsel %vm907, 1, 0
        %v1164 = vsel %vm908, 1, 0
        %v1165 = vsel %vm909, 1, 0
        %v1166 = vsel %vm910, 1, 0
        %v1167 = vsel %vm911, 1, 0
        %v1168 = vsel %vm912, 1, 0
        %v1169 = vsel %vm913, 1, 0
        %v1170 = vsel %vm914, 1, 0
        %v1171 = vsel %vm915, 1, 0
        %v1172 = vsel %vm916, 1, 0
        %v1173 = vsel %vm917, 1, 0
        %v1174 = vsel %vm918, 1, 0
        %v1175 = vsel %vm919, 1, 0
        %v1176 = vsel %vm920, 1, 0
        %v1177 = vsel %vm921, 1, 0
        %v1178 = vsel %vm922, 1, 0
        %v1179 = vsel %vm923, 1, 0
        %v1180 = vsel %vm924, 1, 0
        %v1181 = vsel %vm925, 1, 0
        %v1182 = vsel %vm926, 1, 0
        %v1183 = vsel %vm927, 1, 0
        %v1184 = vsel %vm928, 1, 0
        %v1185 = vsel %vm929, 1, 0
        %v1186 = vsel %vm930, 1, 0
        %v1187 = vsel %vm931, 1, 0
        %v1188 = vsel %vm932, 1, 0
        %v1189 = vsel %vm933, 1, 0
        %v1190 = vsel %vm934, 1, 0
        %v1191 = vsel %vm935, 1, 0
        %v1192 = vsel %vm936, 1, 0
        %v1193 = vsel %vm937, 1, 0
        %v1194 = vsel %vm938, 1, 0
        %v1195 = vsel %vm939, 1, 0
        %v1196 = vsel %vm940, 1, 0
        %v1197 = vsel %vm941, 1, 0
        %v1198 = vsel %vm942, 1, 0
        %v1199 = vsel %vm943, 1, 0
        %v1200 = vsel %vm944, 1, 0
        %v1201 = vsel %vm945, 1, 0
        %v1202 = vsel %vm946, 1, 0
        %v1203 = vsel %vm947, 1, 0
        %v1204 = vsel %vm948, 1, 0
        %v1205 = vsel %vm949, 1, 0
        %v1206 = vsel %vm950, 1, 0
        %v1207 = vsel %vm951, 1, 0
        %v1208 = vsel %vm952, 1, 0
        %v1209 = vsel %vm953, 1, 0
        %v1210 = vsel %vm954, 1, 0
        %v1211 = vsel %vm955, 1, 0
        %v1212 = vsel %vm956, 1, 0
        %v1213 = vsel %vm957, 1, 0
        %v1214 = vsel %vm958, 1, 0
        %v1215 = vsel %vm959, 1, 0
        %v1216 = vsel %vm960, 1, 0
        %v1217 = vsel %vm961, 1, 0
        %v1218 = vsel %vm962, 1, 0
        %v1219 = vsel %vm963, 1, 0
        %v1220 = vsel %vm964, 1, 0
        %v1221 = vcvt.s32.f32 %v965
        %v1222 = vcvt.s32.f32 %v966
        %v1223 = vcvt.s32.f32 %v967
        %v1224 = vcvt.s32.f32 %v968
        %v1225 = vcvt.s32.f32 %v969
        %v1226 = vcvt.s32.f32 %v970
        %v1227 = vcvt.s32.f32 %v971
        %v1228 = vcvt.s32.f32 %v972
        %v1229 = vcvt.s32.f32 %v973
        %v1230 = vcvt.s32.f32 %v974
        %v1231 = vcvt.s32.f32 %v975
        %v1232 = vcvt.s32.f32 %v976
        %v1233 = vcvt.s32.f32 %v977
        %v1234 = vcvt.s32.f32 %v978
        %v1235 = vcvt.s32.f32 %v979
        %v1236 = vcvt.s32.f32 %v980
        %v1237 = vcvt.s32.f32 %v981
        %v1238 = vcvt.s32.f32 %v982
        %v1239 = vcvt.s32.f32 %v983
        %v1240 = vcvt.s32.f32 %v984
        %v1241 = vcvt.s32.f32 %v985
        %v1242 = vcvt.s32.f32 %v986
        %v1243 = vcvt.s32.f32 %v987
        %v1244 = vcvt.s32.f32 %v988
        %v1245 = vcvt.s32.f32 %v989
        %v1246 = vcvt.s32.f32 %v990
        %v1247 = vcvt.s32.f32 %v991
        %v1248 = vcvt.s32.f32 %v992
        %v1249 = vcvt.s32.f32 %v993
        %v1250 = vcvt.s32.f32 %v994
        %v1251 = vcvt.s32.f32 %v995
        %v1252 = vcvt.s32.f32 %v996
        %v1253 = vcvt.s32.f32 %v997
        %v1254 = vcvt.s32.f32 %v998
        %v1255 = vcvt.s32.f32 %v999
        %v1256 = vcvt.s32.f32 %v1000
        %v1257 = vcvt.s32.f32 %v1001
        %v1258 = vcvt.s32.f32 %v1002
        %v1259 = vcvt.s32.f32 %v1003
        %v1260 = vcvt.s32.f32 %v1004
        %v1261 = vcvt.s32.f32 %v1005
        %v1262 = vcvt.s32.f32 %v1006
        %v1263 = vcvt.s32.f32 %v1007
        %v1264 = vcvt.s32.f32 %v1008
        %v1265 = vcvt.s32.f32 %v1009
        %v1266 = vcvt.s32.f32 %v1010
        %v1267 = vcvt.s32.f32 %v1011
        %v1268 = vcvt.s32.f32 %v1012
        %v1269 = vcvt.s32.f32 %v1013
        %v1270 = vcvt.s32.f32 %v1014
        %v1271 = vcvt.s32.f32 %v1015
        %v1272 = vcvt.s32.f32 %v1016
        %v1273 = vcvt.s32.f32 %v1017
        %v1274 = vcvt.s32.f32 %v1018
        %v1275 = vcvt.s32.f32 %v1019
        %v1276 = vcvt.s32.f32 %v1020
        %v1277 = vcvt.s32.f32 %v1021
        %v1278 = vcvt.s32.f32 %v1022
        %v1279 = vcvt.s32.f32 %v1023
        %v1280 = vcvt.s32.f32 %v1024
        %v1281 = vcvt.s32.f32 %v1025
        %v1282 = vcvt.s32.f32 %v1026
        %v1283 = vcvt.s32.f32 %v1027
        %v1284 = vcvt.s32.f32 %v1028
        %v1285 = vcvt.s32.f32 %v1029
        %v1286 = vcvt.s32.f32 %v1030
        %v1287 = vcvt.s32.f32 %v1031
        %v1288 = vcvt.s32.f32 %v1032
        %v1289 = vcvt.s32.f32 %v1033
        %v1290 = vcvt.s32.f32 %v1034
        %v1291 = vcvt.s32.f32 %v1035
        %v1292 = vcvt.s32.f32 %v1036
        %v1293 = vcvt.s32.f32 %v1037
        %v1294 = vcvt.s32.f32 %v1038
        %v1295 = vcvt.s32.f32 %v1039
        %v1296 = vcvt.s32.f32 %v1040
        %v1297 = vcvt.s32.f32 %v1041
        %v1298 = vcvt.s32.f32 %v1042
        %v1299 = vcvt.s32.f32 %v1043
        %v1300 = vcvt.s32.f32 %v1044
        %v1301 = vcvt.s32.f32 %v1045
        %v1302 = vcvt.s32.f32 %v1046
        %v1303 = vcvt.s32.f32 %v1047
        %v1304 = vcvt.s32.f32 %v1048
        %v1305 = vcvt.s32.f32 %v1049
        %v1306 = vcvt.s32.f32 %v1050
        %v1307 = vcvt.s32.f32 %v1051
        %v1308 = vcvt.s32.f32 %v1052
        %v1309 = vcvt.s32.f32 %v1053
        %v1310 = vcvt.s32.f32 %v1054
        %v1311 = vcvt.s32.f32 %v1055
        %v1312 = vcvt.s32.f32 %v1056
        %v1313 = vcvt.s32.f32 %v1057
        %v1314 = vcvt.s32.f32 %v1058
        %v1315 = vcvt.s32.f32 %v1059
        %v1316 = vcvt.s32.f32 %v1060
        %v1317 = vcvt.s32.f32 %v1061
        %v1318 = vcvt.s32.f32 %v1062
        %v1319 = vcvt.s32.f32 %v1063
        %v1320 = vcvt.s32.f32 %v1064
        %v1321 = vcvt.s32.f32 %v1065
        %v1322 = vcvt.s32.f32 %v1066
        %v1323 = vcvt.s32.f32 %v1067
        %v1324 = vcvt.s32.f32 %v1068
        %v1325 = vcvt.s32.f32 %v1069
        %v1326 = vcvt.s32.f32 %v1070
        %v1327 = vcvt.s32.f32 %v1071
        %v1328 = vcvt.s32.f32 %v1072
        %v1329 = vcvt.s32.f32 %v1073
        %v1330 = vcvt.s32.f32 %v1074
        %v1331 = vcvt.s32.f32 %v1075
        %v1332 = vcvt.s32.f32 %v1076
        %v1333 = vcvt.s32.f32 %v1077
        %v1334 = vcvt.s32.f32 %v1078
        %v1335 = vcvt.s32.f32 %v1079
        %v1336 = vcvt.s32.f32 %v1080
        %v1337 = vcvt.s32.f32 %v1081
        %v1338 = vcvt.s32.f32 %v1082
        %v1339 = vcvt.s32.f32 %v1083
        %v1340 = vcvt.s32.f32 %v1084
        %v1341 = vcvt.s32.f32 %v1085
        %v1342 = vcvt.s32.f32 %v1086
        %v1343 = vcvt.s32.f32 %v1087
        %v1344 = vcvt.s32.f32 %v1088
        %v1345 = vcvt.s32.f32 %v1089
        %v1346 = vcvt.s32.f32 %v1090
        %v1347 = vcvt.s32.f32 %v1091
        %v1348 = vcvt.s32.f32 %v1092
        %v1349 = vcvt.s32.f32 %v1093
        %v1350 = vcvt.s32.f32 %v1094
        %v1351 = vcvt.s32.f32 %v1095
        %v1352 = vcvt.s32.f32 %v1096
        %v1353 = vcvt.s32.f32 %v1097
        %v1354 = vcvt.s32.f32 %v1098
        %v1355 = vcvt.s32.f32 %v1099
        %v1356 = vcvt.s32.f32 %v1100
        %v1357 = vcvt.s32.f32 %v1101
        %v1358 = vcvt.s32.f32 %v1102
        %v1359 = vcvt.s32.f32 %v1103
        %v1360 = vcvt.s32.f32 %v1104
        %v1361 = vcvt.s32.f32 %v1105
        %v1362 = vcvt.s32.f32 %v1106
        %v1363 = vcvt.s32.f32 %v1107
        %v1364 = vcvt.s32.f32 %v1108
        %v1365 = vcvt.s32.f32 %v1109
        %v1366 = vcvt.s32.f32 %v1110
        %v1367 = vcvt.s32.f32 %v1111
        %v1368 = vcvt.s32.f32 %v1112
        %v1369 = vcvt.s32.f32 %v1113
        %v1370 = vcvt.s32.f32 %v1114
        %v1371 = vcvt.s32.f32 %v1115
        %v1372 = vcvt.s32.f32 %v1116
        %v1373 = vcvt.s32.f32 %v1117
        %v1374 = vcvt.s32.f32 %v1118
        %v1375 = vcvt.s32.f32 %v1119
        %v1376 = vcvt.s32.f32 %v1120
        %v1377 = vcvt.s32.f32 %v1121
        %v1378 = vcvt.s32.f32 %v1122
        %v1379 = vcvt.s32.f32 %v1123
        %v1380 = vcvt.s32.f32 %v1124
        %v1381 = vcvt.s32.f32 %v1125
        %v1382 = vcvt.s32.f32 %v1126
        %v1383 = vcvt.s32.f32 %v1127
        %v1384 = vcvt.s32.f32 %v1128
        %v1385 = vcvt.s32.f32 %v1129
        %v1386 = vcvt.s32.f32 %v1130
        %v1387 = vcvt.s32.f32 %v1131
        %v1388 = vcvt.s32.f32 %v1132
        %v1389 = vcvt.s32.f32 %v1133
        %v1390 = vcvt.s32.f32 %v1134
        %v1391 = vcvt.s32.f32 %v1135
        %v1392 = vcvt.s32.f32 %v1136
        %v1393 = vcvt.s32.f32 %v1137
        %v1394 = vcvt.s32.f32 %v1138
        %v1395 = vcvt.s32.f32 %v1139
        %v1396 = vcvt.s32.f32 %v1140
        %v1397 = vcvt.s32.f32 %v1141
        %v1398 = vcvt.s32.f32 %v1142
        %v1399 = vcvt.s32.f32 %v1143
        %v1400 = vcvt.s32.f32 %v1144
        %v1401 = vcvt.s32.f32 %v1145
        %v1402 = vcvt.s32.f32 %v1146
        %v1403 = vcvt.s32.f32 %v1147
        %v1404 = vcvt.s32.f32 %v1148
        %v1405 = vcvt.s32.f32 %v1149
        %v1406 = vcvt.s32.f32 %v1150
        %v1407 = vcvt.s32.f32 %v1151
        %v1408 = vcvt.s32.f32 %v1152
        %v1409 = vcvt.s32.f32 %v1153
        %v1410 = vcvt.s32.f32 %v1154
        %v1411 = vcvt.s32.f32 %v1155
        %v1412 = vcvt.s32.f32 %v1156
        %v1413 = vcvt.s32.f32 %v1157
        %v1414 = vcvt.s32.f32 %v1158
        %v1415 = vcvt.s32.f32 %v1159
        %v1416 = vcvt.s32.f32 %v1160
        %v1417 = vcvt.s32.f32 %v1161
        %v1418 = vcvt.s32.f32 %v1162
        %v1419 = vcvt.s32.f32 %v1163
        %v1420 = vcvt.s32.f32 %v1164
        %v1421 = vcvt.s32.f32 %v1165
        %v1422 = vcvt.s32.f32 %v1166
        %v1423 = vcvt.s32.f32 %v1167
        %v1424 = vcvt.s32.f32 %v1168
        %v1425 = vcvt.s32.f32 %v1169
        %v1426 = vcvt.s32.f32 %v1170
        %v1427 = vcvt.s32.f32 %v1171
        %v1428 = vcvt.s32.f32 %v1172
        %v1429 = vcvt.s32.f32 %v1173
        %v1430 = vcvt.s32.f32 %v1174
        %v1431 = vcvt.s32.f32 %v1175
        %v1432 = vcvt.s32.f32 %v1176
        %v1433 = vcvt.s32.f32 %v1177
        %v1434 = vcvt.s32.f32 %v1178
        %v1435 = vcvt.s32.f32 %v1179
        %v1436 = vcvt.s32.f32 %v1180
        %v1437 = vcvt.s32.f32 %v1181
        %v1438 = vcvt.s32.f32 %v1182
        %v1439 = vcvt.s32.f32 %v1183
        %v1440 = vcvt.s32.f32 %v1184
        %v1441 = vcvt.s32.f32 %v1185
        %v1442 = vcvt.s32.f32 %v1186
        %v1443 = vcvt.s32.f32 %v1187
        %v1444 = vcvt.s32.f32 %v1188
        %v1445 = vcvt.s32.f32 %v1189
        %v1446 = vcvt.s32.f32 %v1190
        %v1447 = vcvt.s32.f32 %v1191
        %v1448 = vcvt.s32.f32 %v1192
        %v1449 = vcvt.s32.f32 %v1193
        %v1450 = vcvt.s32.f32 %v1194
        %v1451 = vcvt.s32.f32 %v1195
        %v1452 = vcvt.s32.f32 %v1196
        %v1453 = vcvt.s32.f32 %v1197
        %v1454 = vcvt.s32.f32 %v1198
        %v1455 = vcvt.s32.f32 %v1199
        %v1456 = vcvt.s32.f32 %v1200
        %v1457 = vcvt.s32.f32 %v1201
        %v1458 = vcvt.s32.f32 %v1202
        %v1459 = vcvt.s32.f32 %v1203
        %v1460 = vcvt.s32.f32 %v1204
        %v1461 = vcvt.s32.f32 %v1205
        %v1462 = vcvt.s32.f32 %v1206
        %v1463 = vcvt.s32.f32 %v1207
        %v1464 = vcvt.s32.f32 %v1208
        %v1465 = vcvt.s32.f32 %v1209
        %v1466 = vcvt.s32.f32 %v1210
        %v1467 = vcvt.s32.f32 %v1211
        %v1468 = vcvt.s32.f32 %v1212
        %v1469 = vcvt.s32.f32 %v1213
        %v1470 = vcvt.s32.f32 %v1214
        %v1471 = vcvt.s32.f32 %v1215
        %v1472 = vcvt.s32.f32 %v1216
        %v1473 = vcvt.s32.f32 %v1217
        %v1474 = vcvt.s32.f32 %v1218
        %v1475 = vcvt.s32.f32 %v1219
        %v1476 = vcvt.s32.f32 %v1220
        %v1477 = vpack.c.bf16 %v1223, %v1221
        %v1478 = vpack.c.bf16 %v1224, %v1222
        %v1479 = vpack.c.bf16 %v1227, %v1225
        %v1480 = vpack.c.bf16 %v1228, %v1226
        %v1481 = vpack.c.bf16 %v1231, %v1229
        %v1482 = vpack.c.bf16 %v1232, %v1230
        %v1483 = vpack.c.bf16 %v1235, %v1233
        %v1484 = vpack.c.bf16 %v1236, %v1234
        %v1485 = vpack.c.bf16 %v1239, %v1237
        %v1486 = vpack.c.bf16 %v1240, %v1238
        %v1487 = vpack.c.bf16 %v1243, %v1241
        %v1488 = vpack.c.bf16 %v1244, %v1242
        %v1489 = vpack.c.bf16 %v1247, %v1245
        %v1490 = vpack.c.bf16 %v1248, %v1246
        %v1491 = vpack.c.bf16 %v1251, %v1249
        %v1492 = vpack.c.bf16 %v1252, %v1250
        %v1493 = vpack.c.bf16 %v1255, %v1253
        %v1494 = vpack.c.bf16 %v1256, %v1254
        %v1495 = vpack.c.bf16 %v1259, %v1257
        %v1496 = vpack.c.bf16 %v1260, %v1258
        %v1497 = vpack.c.bf16 %v1263, %v1261
        %v1498 = vpack.c.bf16 %v1264, %v1262
        %v1499 = vpack.c.bf16 %v1267, %v1265
        %v1500 = vpack.c.bf16 %v1268, %v1266
        %v1501 = vpack.c.bf16 %v1271, %v1269
        %v1502 = vpack.c.bf16 %v1272, %v1270
        %v1503 = vpack.c.bf16 %v1275, %v1273
        %v1504 = vpack.c.bf16 %v1276, %v1274
        %v1505 = vpack.c.bf16 %v1279, %v1277
        %v1506 = vpack.c.bf16 %v1280, %v1278
        %v1507 = vpack.c.bf16 %v1283, %v1281
        %v1508 = vpack.c.bf16 %v1284, %v1282
        %v1509 = vpack.c.bf16 %v1287, %v1285
        %v1510 = vpack.c.bf16 %v1288, %v1286
        %v1511 = vpack.c.bf16 %v1291, %v1289
        %v1512 = vpack.c.bf16 %v1292, %v1290
        %v1513 = vpack.c.bf16 %v1295, %v1293
        %v1514 = vpack.c.bf16 %v1296, %v1294
        %v1515 = vpack.c.bf16 %v1299, %v1297
        %v1516 = vpack.c.bf16 %v1300, %v1298
        %v1517 = vpack.c.bf16 %v1303, %v1301
        %v1518 = vpack.c.bf16 %v1304, %v1302
        %v1519 = vpack.c.bf16 %v1307, %v1305
        %v1520 = vpack.c.bf16 %v1308, %v1306
        %v1521 = vpack.c.bf16 %v1311, %v1309
        %v1522 = vpack.c.bf16 %v1312, %v1310
        %v1523 = vpack.c.bf16 %v1315, %v1313
        %v1524 = vpack.c.bf16 %v1316, %v1314
        %v1525 = vpack.c.bf16 %v1319, %v1317
        %v1526 = vpack.c.bf16 %v1320, %v1318
        %v1527 = vpack.c.bf16 %v1323, %v1321
        %v1528 = vpack.c.bf16 %v1324, %v1322
        %v1529 = vpack.c.bf16 %v1327, %v1325
        %v1530 = vpack.c.bf16 %v1328, %v1326
        %v1531 = vpack.c.bf16 %v1331, %v1329
        %v1532 = vpack.c.bf16 %v1332, %v1330
        %v1533 = vpack.c.bf16 %v1335, %v1333
        %v1534 = vpack.c.bf16 %v1336, %v1334
        %v1535 = vpack.c.bf16 %v1339, %v1337
        %v1536 = vpack.c.bf16 %v1340, %v1338
        %v1537 = vpack.c.bf16 %v1343, %v1341
        %v1538 = vpack.c.bf16 %v1344, %v1342
        %v1539 = vpack.c.bf16 %v1347, %v1345
        %v1540 = vpack.c.bf16 %v1348, %v1346
        %v1541 = vpack.c.bf16 %v1351, %v1349
        %v1542 = vpack.c.bf16 %v1352, %v1350
        %v1543 = vpack.c.bf16 %v1355, %v1353
        %v1544 = vpack.c.bf16 %v1356, %v1354
        %v1545 = vpack.c.bf16 %v1359, %v1357
        %v1546 = vpack.c.bf16 %v1360, %v1358
        %v1547 = vpack.c.bf16 %v1363, %v1361
        %v1548 = vpack.c.bf16 %v1364, %v1362
        %v1549 = vpack.c.bf16 %v1367, %v1365
        %v1550 = vpack.c.bf16 %v1368, %v1366
        %v1551 = vpack.c.bf16 %v1371, %v1369
        %v1552 = vpack.c.bf16 %v1372, %v1370
        %v1553 = vpack.c.bf16 %v1375, %v1373
        %v1554 = vpack.c.bf16 %v1376, %v1374
        %v1555 = vpack.c.bf16 %v1379, %v1377
        %v1556 = vpack.c.bf16 %v1380, %v1378
        %v1557 = vpack.c.bf16 %v1383, %v1381
        %v1558 = vpack.c.bf16 %v1384, %v1382
        %v1559 = vpack.c.bf16 %v1387, %v1385
        %v1560 = vpack.c.bf16 %v1388, %v1386
        %v1561 = vpack.c.bf16 %v1391, %v1389
        %v1562 = vpack.c.bf16 %v1392, %v1390
        %v1563 = vpack.c.bf16 %v1395, %v1393
        %v1564 = vpack.c.bf16 %v1396, %v1394
        %v1565 = vpack.c.bf16 %v1399, %v1397
        %v1566 = vpack.c.bf16 %v1400, %v1398
        %v1567 = vpack.c.bf16 %v1403, %v1401
        %v1568 = vpack.c.bf16 %v1404, %v1402
        %v1569 = vpack.c.bf16 %v1407, %v1405
        %v1570 = vpack.c.bf16 %v1408, %v1406
        %v1571 = vpack.c.bf16 %v1411, %v1409
        %v1572 = vpack.c.bf16 %v1412, %v1410
        %v1573 = vpack.c.bf16 %v1415, %v1413
        %v1574 = vpack.c.bf16 %v1416, %v1414
        %v1575 = vpack.c.bf16 %v1419, %v1417
        %v1576 = vpack.c.bf16 %v1420, %v1418
        %v1577 = vpack.c.bf16 %v1423, %v1421
        %v1578 = vpack.c.bf16 %v1424, %v1422
        %v1579 = vpack.c.bf16 %v1427, %v1425
        %v1580 = vpack.c.bf16 %v1428, %v1426
        %v1581 = vpack.c.bf16 %v1431, %v1429
        %v1582 = vpack.c.bf16 %v1432, %v1430
        %v1583 = vpack.c.bf16 %v1435, %v1433
        %v1584 = vpack.c.bf16 %v1436, %v1434
        %v1585 = vpack.c.bf16 %v1439, %v1437
        %v1586 = vpack.c.bf16 %v1440, %v1438
        %v1587 = vpack.c.bf16 %v1443, %v1441
        %v1588 = vpack.c.bf16 %v1444, %v1442
        %v1589 = vpack.c.bf16 %v1447, %v1445
        %v1590 = vpack.c.bf16 %v1448, %v1446
        %v1591 = vpack.c.bf16 %v1451, %v1449
        %v1592 = vpack.c.bf16 %v1452, %v1450
        %v1593 = vpack.c.bf16 %v1455, %v1453
        %v1594 = vpack.c.bf16 %v1456, %v1454
        %v1595 = vpack.c.bf16 %v1459, %v1457
        %v1596 = vpack.c.bf16 %v1460, %v1458
        %v1597 = vpack.c.bf16 %v1463, %v1461
        %v1598 = vpack.c.bf16 %v1464, %v1462
        %v1599 = vpack.c.bf16 %v1467, %v1465
        %v1600 = vpack.c.bf16 %v1468, %v1466
        %v1601 = vpack.c.bf16 %v1471, %v1469
        %v1602 = vpack.c.bf16 %v1472, %v1470
        %v1603 = vpack.c.bf16 %v1475, %v1473
        %v1604 = vpack.c.bf16 %v1476, %v1474
        %v1605 = vld [vmem:[%s191] sm:$0xff]
        %v1606 = vld [vmem:[%s191 + $0x8] sm:$0xff]
        %v1607 = vld [vmem:[%s191 + $0x10] sm:$0xff]
        %v1608 = vld [vmem:[%s191 + $0x18] sm:$0xff]
        %v1609 = vld [vmem:[%s191 + $0x20] sm:$0xff]
        %v1610 = vld [vmem:[%s191 + $0x28] sm:$0xff]
        %v1611 = vld [vmem:[%s191 + $0x30] sm:$0xff]
        %v1612 = vld [vmem:[%s191 + $0x38] sm:$0xff]
        %v1613 = vld [vmem:[%s191 + $0x40] sm:$0xff]
        %v1614 = vld [vmem:[%s191 + $0x48] sm:$0xff]
        %v1615 = vld [vmem:[%s191 + $0x50] sm:$0xff]
        %v1616 = vld [vmem:[%s191 + $0x58] sm:$0xff]
        %v1617 = vld [vmem:[%s191 + $0x60] sm:$0xff]
        %v1618 = vld [vmem:[%s191 + $0x68] sm:$0xff]
        %v1619 = vld [vmem:[%s191 + $0x70] sm:$0xff]
        %v1620 = vld [vmem:[%s191 + $0x78] sm:$0xff]
        %v1621 = vld [vmem:[%s191 + $0x80] sm:$0xff]
        %v1622 = vld [vmem:[%s191 + $0x88] sm:$0xff]
        %v1623 = vld [vmem:[%s191 + $0x90] sm:$0xff]
        %v1624 = vld [vmem:[%s191 + $0x98] sm:$0xff]
        %v1625 = vld [vmem:[%s191 + $0xa0] sm:$0xff]
        %v1626 = vld [vmem:[%s191 + $0xa8] sm:$0xff]
        %v1627 = vld [vmem:[%s191 + $0xb0] sm:$0xff]
        %v1628 = vld [vmem:[%s191 + $0xb8] sm:$0xff]
        %v1629 = vld [vmem:[%s191 + $0xc0] sm:$0xff]
        %v1630 = vld [vmem:[%s191 + $0xc8] sm:$0xff]
        %v1631 = vld [vmem:[%s191 + $0xd0] sm:$0xff]
        %v1632 = vld [vmem:[%s191 + $0xd8] sm:$0xff]
        %v1633 = vld [vmem:[%s191 + $0xe0] sm:$0xff]
        %v1634 = vld [vmem:[%s191 + $0xe8] sm:$0xff]
        %v1635 = vld [vmem:[%s191 + $0xf0] sm:$0xff]
        %v1636 = vld [vmem:[%s191 + $0xf8] sm:$0xff]
        %v1637 = vld [vmem:[%s191 + $0x100] sm:$0xff]
        %v1638 = vld [vmem:[%s191 + $0x108] sm:$0xff]
        %v1639 = vld [vmem:[%s191 + $0x110] sm:$0xff]
        %v1640 = vld [vmem:[%s191 + $0x118] sm:$0xff]
        %v1641 = vld [vmem:[%s191 + $0x120] sm:$0xff]
        %v1642 = vld [vmem:[%s191 + $0x128] sm:$0xff]
        %v1643 = vld [vmem:[%s191 + $0x130] sm:$0xff]
        %v1644 = vld [vmem:[%s191 + $0x138] sm:$0xff]
        %v1645 = vld [vmem:[%s191 + $0x140] sm:$0xff]
        %v1646 = vld [vmem:[%s191 + $0x148] sm:$0xff]
        %v1647 = vld [vmem:[%s191 + $0x150] sm:$0xff]
        %v1648 = vld [vmem:[%s191 + $0x158] sm:$0xff]
        %v1649 = vld [vmem:[%s191 + $0x160] sm:$0xff]
        %v1650 = vld [vmem:[%s191 + $0x168] sm:$0xff]
        %v1651 = vld [vmem:[%s191 + $0x170] sm:$0xff]
        %v1652 = vld [vmem:[%s191 + $0x178] sm:$0xff]
        %v1653 = vld [vmem:[%s191 + $0x180] sm:$0xff]
        %v1654 = vld [vmem:[%s191 + $0x188] sm:$0xff]
        %v1655 = vld [vmem:[%s191 + $0x190] sm:$0xff]
        %v1656 = vld [vmem:[%s191 + $0x198] sm:$0xff]
        %v1657 = vld [vmem:[%s191 + $0x1a0] sm:$0xff]
        %v1658 = vld [vmem:[%s191 + $0x1a8] sm:$0xff]
        %v1659 = vld [vmem:[%s191 + $0x1b0] sm:$0xff]
        %v1660 = vld [vmem:[%s191 + $0x1b8] sm:$0xff]
        %v1661 = vld [vmem:[%s191 + $0x1c0] sm:$0xff]
        %v1662 = vld [vmem:[%s191 + $0x1c8] sm:$0xff]
        %v1663 = vld [vmem:[%s191 + $0x1d0] sm:$0xff]
        %v1664 = vld [vmem:[%s191 + $0x1d8] sm:$0xff]
        %v1665 = vld [vmem:[%s191 + $0x1e0] sm:$0xff]
        %v1666 = vld [vmem:[%s191 + $0x1e8] sm:$0xff]
        %v1667 = vld [vmem:[%s191 + $0x1f0] sm:$0xff]
        %v1668 = vld [vmem:[%s191 + $0x1f8] sm:$0xff]
        %v1669 = vld [vmem:[%s191 + $0x200] sm:$0xff]
        %v1670 = vld [vmem:[%s191 + $0x208] sm:$0xff]
        %v1671 = vld [vmem:[%s191 + $0x210] sm:$0xff]
        %v1672 = vld [vmem:[%s191 + $0x218] sm:$0xff]
        %v1673 = vld [vmem:[%s191 + $0x220] sm:$0xff]
        %v1674 = vld [vmem:[%s191 + $0x228] sm:$0xff]
        %v1675 = vld [vmem:[%s191 + $0x230] sm:$0xff]
        %v1676 = vld [vmem:[%s191 + $0x238] sm:$0xff]
        %v1677 = vld [vmem:[%s191 + $0x240] sm:$0xff]
        %v1678 = vld [vmem:[%s191 + $0x248] sm:$0xff]
        %v1679 = vld [vmem:[%s191 + $0x250] sm:$0xff]
        %v1680 = vld [vmem:[%s191 + $0x258] sm:$0xff]
        %v1681 = vld [vmem:[%s191 + $0x260] sm:$0xff]
        %v1682 = vld [vmem:[%s191 + $0x268] sm:$0xff]
        %v1683 = vld [vmem:[%s191 + $0x270] sm:$0xff]
        %v1684 = vld [vmem:[%s191 + $0x278] sm:$0xff]
        %v1685 = vld [vmem:[%s191 + $0x280] sm:$0xff]
        %v1686 = vld [vmem:[%s191 + $0x288] sm:$0xff]
        %v1687 = vld [vmem:[%s191 + $0x290] sm:$0xff]
        %v1688 = vld [vmem:[%s191 + $0x298] sm:$0xff]
        %v1689 = vld [vmem:[%s191 + $0x2a0] sm:$0xff]
        %v1690 = vld [vmem:[%s191 + $0x2a8] sm:$0xff]
        %v1691 = vld [vmem:[%s191 + $0x2b0] sm:$0xff]
        %v1692 = vld [vmem:[%s191 + $0x2b8] sm:$0xff]
        %v1693 = vld [vmem:[%s191 + $0x2c0] sm:$0xff]
        %v1694 = vld [vmem:[%s191 + $0x2c8] sm:$0xff]
        %v1695 = vld [vmem:[%s191 + $0x2d0] sm:$0xff]
        %v1696 = vld [vmem:[%s191 + $0x2d8] sm:$0xff]
        %v1697 = vld [vmem:[%s191 + $0x2e0] sm:$0xff]
        %v1698 = vld [vmem:[%s191 + $0x2e8] sm:$0xff]
        %v1699 = vld [vmem:[%s191 + $0x2f0] sm:$0xff]
        %v1700 = vld [vmem:[%s191 + $0x2f8] sm:$0xff]
        %v1701 = vld [vmem:[%s191 + $0x300] sm:$0xff]
        %v1702 = vld [vmem:[%s191 + $0x308] sm:$0xff]
        %v1703 = vld [vmem:[%s191 + $0x310] sm:$0xff]
        %v1704 = vld [vmem:[%s191 + $0x318] sm:$0xff]
        %v1705 = vld [vmem:[%s191 + $0x320] sm:$0xff]
        %v1706 = vld [vmem:[%s191 + $0x328] sm:$0xff]
        %v1707 = vld [vmem:[%s191 + $0x330] sm:$0xff]
        %v1708 = vld [vmem:[%s191 + $0x338] sm:$0xff]
        %v1709 = vld [vmem:[%s191 + $0x340] sm:$0xff]
        %v1710 = vld [vmem:[%s191 + $0x348] sm:$0xff]
        %v1711 = vld [vmem:[%s191 + $0x350] sm:$0xff]
        %v1712 = vld [vmem:[%s191 + $0x358] sm:$0xff]
        %v1713 = vld [vmem:[%s191 + $0x360] sm:$0xff]
        %v1714 = vld [vmem:[%s191 + $0x368] sm:$0xff]
        %v1715 = vld [vmem:[%s191 + $0x370] sm:$0xff]
        %v1716 = vld [vmem:[%s191 + $0x378] sm:$0xff]
        %v1717 = vld [vmem:[%s191 + $0x380] sm:$0xff]
        %v1718 = vld [vmem:[%s191 + $0x388] sm:$0xff]
        %v1719 = vld [vmem:[%s191 + $0x390] sm:$0xff]
        %v1720 = vld [vmem:[%s191 + $0x398] sm:$0xff]
        %v1721 = vld [vmem:[%s191 + $0x3a0] sm:$0xff]
        %v1722 = vld [vmem:[%s191 + $0x3a8] sm:$0xff]
        %v1723 = vld [vmem:[%s191 + $0x3b0] sm:$0xff]
        %v1724 = vld [vmem:[%s191 + $0x3b8] sm:$0xff]
        %v1725 = vld [vmem:[%s191 + $0x3c0] sm:$0xff]
        %v1726 = vld [vmem:[%s191 + $0x3c8] sm:$0xff]
        %v1727 = vld [vmem:[%s191 + $0x3d0] sm:$0xff]
        %v1728 = vld [vmem:[%s191 + $0x3d8] sm:$0xff]
        %v1729 = vld [vmem:[%s191 + $0x3e0] sm:$0xff]
        %v1730 = vld [vmem:[%s191 + $0x3e8] sm:$0xff]
        %v1731 = vld [vmem:[%s191 + $0x3f0] sm:$0xff]
        %v1732 = vld [vmem:[%s191 + $0x3f8] sm:$0xff]
        %v1733 = vld [vmem:[%s2] sm:$0xf]
        %v1734 = vld [vmem:[%s2 + $0x4] sm:$0xf]
        %v1735 = vld [vmem:[%s2 + $0x8] sm:$0xf]
        %v1736 = vld [vmem:[%s2 + $0xc] sm:$0xf]
        %v1737 = vld [vmem:[%s2 + $0x10] sm:$0xf]
        %v1738 = vld [vmem:[%s2 + $0x14] sm:$0xf]
        %v1739 = vld [vmem:[%s2 + $0x18] sm:$0xf]
        %v1740 = vld [vmem:[%s2 + $0x1c] sm:$0xf]
        %v1741 = vld [vmem:[%s2 + $0x20] sm:$0xf]
        %v1742 = vld [vmem:[%s2 + $0x24] sm:$0xf]
        %v1743 = vld [vmem:[%s2 + $0x28] sm:$0xf]
        %v1744 = vld [vmem:[%s2 + $0x2c] sm:$0xf]
        %v1745 = vld [vmem:[%s2 + $0x30] sm:$0xf]
        %v1746 = vld [vmem:[%s2 + $0x34] sm:$0xf]
        %v1747 = vld [vmem:[%s2 + $0x38] sm:$0xf]
        %v1748 = vld [vmem:[%s2 + $0x3c] sm:$0xf]
        %v1749 = vld [vmem:[%s2 + $0x40] sm:$0xf]
        %v1750 = vld [vmem:[%s2 + $0x44] sm:$0xf]
        %v1751 = vld [vmem:[%s2 + $0x48] sm:$0xf]
        %v1752 = vld [vmem:[%s2 + $0x4c] sm:$0xf]
        %v1753 = vld [vmem:[%s2 + $0x50] sm:$0xf]
        %v1754 = vld [vmem:[%s2 + $0x54] sm:$0xf]
        %v1755 = vld [vmem:[%s2 + $0x58] sm:$0xf]
        %v1756 = vld [vmem:[%s2 + $0x5c] sm:$0xf]
        %v1757 = vld [vmem:[%s2 + $0x60] sm:$0xf]
        %v1758 = vld [vmem:[%s2 + $0x64] sm:$0xf]
        %v1759 = vld [vmem:[%s2 + $0x68] sm:$0xf]
        %v1760 = vld [vmem:[%s2 + $0x6c] sm:$0xf]
        %v1761 = vld [vmem:[%s2 + $0x70] sm:$0xf]
        %v1762 = vld [vmem:[%s2 + $0x74] sm:$0xf]
        %v1763 = vld [vmem:[%s2 + $0x78] sm:$0xf]
        %v1764 = vld [vmem:[%s2 + $0x7c] sm:$0xf]
        %v1797 = vunpack.c.l.b16 %v1733
        %v1798 = vunpack.c.l.b16 %v1734
        %v1799 = vunpack.c.l.b16 %v1735
        %v1800 = vunpack.c.l.b16 %v1736
        %v1801 = vunpack.c.l.b16 %v1737
        %v1802 = vunpack.c.l.b16 %v1738
        %v1803 = vunpack.c.l.b16 %v1739
        %v1804 = vunpack.c.l.b16 %v1740
        %v1805 = vunpack.c.l.b16 %v1741
        %v1806 = vunpack.c.l.b16 %v1742
        %v1807 = vunpack.c.l.b16 %v1743
        %v1808 = vunpack.c.l.b16 %v1744
        %v1809 = vunpack.c.l.b16 %v1745
        %v1810 = vunpack.c.l.b16 %v1746
        %v1811 = vunpack.c.l.b16 %v1747
        %v1812 = vunpack.c.l.b16 %v1748
        %v1813 = vunpack.c.l.b16 %v1749
        %v1814 = vunpack.c.l.b16 %v1750
        %v1815 = vunpack.c.l.b16 %v1751
        %v1816 = vunpack.c.l.b16 %v1752
        %v1817 = vunpack.c.l.b16 %v1753
        %v1818 = vunpack.c.l.b16 %v1754
        %v1819 = vunpack.c.l.b16 %v1755
        %v1820 = vunpack.c.l.b16 %v1756
        %v1821 = vunpack.c.l.b16 %v1757
        %v1822 = vunpack.c.l.b16 %v1758
        %v1823 = vunpack.c.l.b16 %v1759
        %v1824 = vunpack.c.l.b16 %v1760
        %v1825 = vunpack.c.l.b16 %v1761
        %v1826 = vunpack.c.l.b16 %v1762
        %v1827 = vunpack.c.l.b16 %v1763
        %v1828 = vunpack.c.l.b16 %v1764
        %v1829 = vpack.c.b16 %v1798, %v1797
        %v1830 = vpack.c.b16 %v1800, %v1799
        %v1831 = vpack.c.b16 %v1802, %v1801
        %v1832 = vpack.c.b16 %v1804, %v1803
        %v1833 = vpack.c.b16 %v1806, %v1805
        %v1834 = vpack.c.b16 %v1808, %v1807
        %v1835 = vpack.c.b16 %v1810, %v1809
        %v1836 = vpack.c.b16 %v1812, %v1811
        %v1837 = vpack.c.b16 %v1814, %v1813
        %v1838 = vpack.c.b16 %v1816, %v1815
        %v1839 = vpack.c.b16 %v1818, %v1817
        %v1840 = vpack.c.b16 %v1820, %v1819
        %v1841 = vpack.c.b16 %v1822, %v1821
        %v1842 = vpack.c.b16 %v1824, %v1823
        %v1843 = vpack.c.b16 %v1826, %v1825
        %v1844 = vpack.c.b16 %v1828, %v1827
        %1861 = vmatpush.bf16.msra.mxu0 %v1836
        %1862 = vmatpush.bf16.msra.mxu0 %v1835
        %1863 = vmatpush.bf16.msra.mxu0 %v1834
        %1864 = vmatpush.bf16.msra.mxu0 %v1833
        %1865 = vmatpush.bf16.msra.mxu0 %v1832
        %1866 = vmatpush.bf16.msra.mxu0 %v1831
        %1867 = vmatpush.bf16.msra.mxu0 %v1830
        %1868 = vmatpush.bf16.msra.mxu0 %v1829
        %1869 = vmatmul.bf16.gmra.mxu0 %v1477
        %v1870 = vpop.f32.mrf.mxu0
        %v1871 = vadd.f32 0.0, %v1870
        %v1872 = vpop.f32.mrf.mxu0
        %v1873 = vadd.f32 0.0, %v1872
        %1874 = vmatmul.bf16.gmra.mxu0 %v1479
        %v1875 = vpop.f32.mrf.mxu0
        %v1876 = vadd.f32 0.0, %v1875
        %v1877 = vpop.f32.mrf.mxu0
        %v1878 = vadd.f32 0.0, %v1877
        %1879 = vmatmul.bf16.gmra.mxu0 %v1481
        %v1880 = vpop.f32.mrf.mxu0
        %v1881 = vadd.f32 0.0, %v1880
        %v1882 = vpop.f32.mrf.mxu0
        %v1883 = vadd.f32 0.0, %v1882
        %1884 = vmatmul.bf16.gmra.mxu0 %v1483
        %v1885 = vpop.f32.mrf.mxu0
        %v1886 = vadd.f32 0.0, %v1885
        %v1887 = vpop.f32.mrf.mxu0
        %v1888 = vadd.f32 0.0, %v1887
        %1889 = vmatmul.bf16.gmra.mxu0 %v1485
        %v1890 = vpop.f32.mrf.mxu0
        %v1891 = vadd.f32 0.0, %v1890
        %v1892 = vpop.f32.mrf.mxu0
        %v1893 = vadd.f32 0.0, %v1892
        %1894 = vmatmul.bf16.gmra.mxu0 %v1487
        %v1895 = vpop.f32.mrf.mxu0
        %v1896 = vadd.f32 0.0, %v1895
        %v1897 = vpop.f32.mrf.mxu0
        %v1898 = vadd.f32 0.0, %v1897
        %1899 = vmatmul.bf16.gmra.mxu0 %v1489
        %v1900 = vpop.f32.mrf.mxu0
        %v1901 = vadd.f32 0.0, %v1900
        %v1902 = vpop.f32.mrf.mxu0
        %v1903 = vadd.f32 0.0, %v1902
        %1904 = vmatmul.bf16.gmra.mxu0 %v1491
        %v1905 = vpop.f32.mrf.mxu0
        %v1906 = vadd.f32 0.0, %v1905
        %v1907 = vpop.f32.mrf.mxu0
        %v1908 = vadd.f32 0.0, %v1907
        %1909 = vmatmul.bf16.gmra.mxu0 %v1493
        %v1910 = vpop.f32.mrf.mxu0
        %v1911 = vadd.f32 0.0, %v1910
        %v1912 = vpop.f32.mrf.mxu0
        %v1913 = vadd.f32 0.0, %v1912
        %1914 = vmatmul.bf16.gmra.mxu0 %v1495
        %v1915 = vpop.f32.mrf.mxu0
        %v1916 = vadd.f32 0.0, %v1915
        %v1917 = vpop.f32.mrf.mxu0
        %v1918 = vadd.f32 0.0, %v1917
        %1919 = vmatmul.bf16.gmra.mxu0 %v1497
        %v1920 = vpop.f32.mrf.mxu0
        %v1921 = vadd.f32 0.0, %v1920
        %v1922 = vpop.f32.mrf.mxu0
        %v1923 = vadd.f32 0.0, %v1922
        %1924 = vmatmul.bf16.gmra.mxu0 %v1499
        %v1925 = vpop.f32.mrf.mxu0
        %v1926 = vadd.f32 0.0, %v1925
        %v1927 = vpop.f32.mrf.mxu0
        %v1928 = vadd.f32 0.0, %v1927
        %1929 = vmatmul.bf16.gmra.mxu0 %v1501
        %v1930 = vpop.f32.mrf.mxu0
        %v1931 = vadd.f32 0.0, %v1930
        %v1932 = vpop.f32.mrf.mxu0
        %v1933 = vadd.f32 0.0, %v1932
        %1934 = vmatmul.bf16.gmra.mxu0 %v1503
        %v1935 = vpop.f32.mrf.mxu0
        %v1936 = vadd.f32 0.0, %v1935
        %v1937 = vpop.f32.mrf.mxu0
        %v1938 = vadd.f32 0.0, %v1937
        %1939 = vmatmul.bf16.gmra.mxu0 %v1505
        %v1940 = vpop.f32.mrf.mxu0
        %v1941 = vadd.f32 0.0, %v1940
        %v1942 = vpop.f32.mrf.mxu0
        %v1943 = vadd.f32 0.0, %v1942
        %1944 = vmatmul.bf16.gmra.mxu0 %v1507
        %v1945 = vpop.f32.mrf.mxu0
        %v1946 = vadd.f32 0.0, %v1945
        %v1947 = vpop.f32.mrf.mxu0
        %v1948 = vadd.f32 0.0, %v1947
        %1949 = vmatmul.bf16.gmra.mxu0 %v1509
        %v1950 = vpop.f32.mrf.mxu0
        %v1951 = vadd.f32 0.0, %v1950
        %v1952 = vpop.f32.mrf.mxu0
        %v1953 = vadd.f32 0.0, %v1952
        %1954 = vmatmul.bf16.gmra.mxu0 %v1511
        %v1955 = vpop.f32.mrf.mxu0
        %v1956 = vadd.f32 0.0, %v1955
        %v1957 = vpop.f32.mrf.mxu0
        %v1958 = vadd.f32 0.0, %v1957
        %1959 = vmatmul.bf16.gmra.mxu0 %v1513
        %v1960 = vpop.f32.mrf.mxu0
        %v1961 = vadd.f32 0.0, %v1960
        %v1962 = vpop.f32.mrf.mxu0
        %v1963 = vadd.f32 0.0, %v1962
        %1964 = vmatmul.bf16.gmra.mxu0 %v1515
        %v1965 = vpop.f32.mrf.mxu0
        %v1966 = vadd.f32 0.0, %v1965
        %v1967 = vpop.f32.mrf.mxu0
        %v1968 = vadd.f32 0.0, %v1967
        %1969 = vmatmul.bf16.gmra.mxu0 %v1517
        %v1970 = vpop.f32.mrf.mxu0
        %v1971 = vadd.f32 0.0, %v1970
        %v1972 = vpop.f32.mrf.mxu0
        %v1973 = vadd.f32 0.0, %v1972
        %1974 = vmatmul.bf16.gmra.mxu0 %v1519
        %v1975 = vpop.f32.mrf.mxu0
        %v1976 = vadd.f32 0.0, %v1975
        %v1977 = vpop.f32.mrf.mxu0
        %v1978 = vadd.f32 0.0, %v1977
        %1979 = vmatmul.bf16.gmra.mxu0 %v1521
        %v1980 = vpop.f32.mrf.mxu0
        %v1981 = vadd.f32 0.0, %v1980
        %v1982 = vpop.f32.mrf.mxu0
        %v1983 = vadd.f32 0.0, %v1982
        %1984 = vmatmul.bf16.gmra.mxu0 %v1523
        %v1985 = vpop.f32.mrf.mxu0
        %v1986 = vadd.f32 0.0, %v1985
        %v1987 = vpop.f32.mrf.mxu0
        %v1988 = vadd.f32 0.0, %v1987
        %1989 = vmatmul.bf16.gmra.mxu0 %v1525
        %v1990 = vpop.f32.mrf.mxu0
        %v1991 = vadd.f32 0.0, %v1990
        %v1992 = vpop.f32.mrf.mxu0
        %v1993 = vadd.f32 0.0, %v1992
        %1994 = vmatmul.bf16.gmra.mxu0 %v1527
        %v1995 = vpop.f32.mrf.mxu0
        %v1996 = vadd.f32 0.0, %v1995
        %v1997 = vpop.f32.mrf.mxu0
        %v1998 = vadd.f32 0.0, %v1997
        %1999 = vmatmul.bf16.gmra.mxu0 %v1529
        %v2000 = vpop.f32.mrf.mxu0
        %v2001 = vadd.f32 0.0, %v2000
        %v2002 = vpop.f32.mrf.mxu0
        %v2003 = vadd.f32 0.0, %v2002
        %2004 = vmatmul.bf16.gmra.mxu0 %v1531
        %v2005 = vpop.f32.mrf.mxu0
        %v2006 = vadd.f32 0.0, %v2005
        %v2007 = vpop.f32.mrf.mxu0
        %v2008 = vadd.f32 0.0, %v2007
        %2009 = vmatmul.bf16.gmra.mxu0 %v1533
        %v2010 = vpop.f32.mrf.mxu0
        %v2011 = vadd.f32 0.0, %v2010
        %v2012 = vpop.f32.mrf.mxu0
        %v2013 = vadd.f32 0.0, %v2012
        %2014 = vmatmul.bf16.gmra.mxu0 %v1535
        %v2015 = vpop.f32.mrf.mxu0
        %v2016 = vadd.f32 0.0, %v2015
        %v2017 = vpop.f32.mrf.mxu0
        %v2018 = vadd.f32 0.0, %v2017
        %2019 = vmatmul.bf16.gmra.mxu0 %v1537
        %v2020 = vpop.f32.mrf.mxu0
        %v2021 = vadd.f32 0.0, %v2020
        %v2022 = vpop.f32.mrf.mxu0
        %v2023 = vadd.f32 0.0, %v2022
        %2024 = vmatmul.bf16.gmra.mxu0 %v1539
        %v2025 = vpop.f32.mrf.mxu0
        %v2026 = vadd.f32 0.0, %v2025
        %v2027 = vpop.f32.mrf.mxu0
        %v2028 = vadd.f32 0.0, %v2027
        %2029 = vmatmul.bf16.gmra.mxu0 %v1541
        %v2030 = vpop.f32.mrf.mxu0
        %v2031 = vadd.f32 0.0, %v2030
        %v2032 = vpop.f32.mrf.mxu0
        %v2033 = vadd.f32 0.0, %v2032
        %2034 = vmatmul.bf16.gmra.mxu0 %v1543
        %v2035 = vpop.f32.mrf.mxu0
        %v2036 = vadd.f32 0.0, %v2035
        %v2037 = vpop.f32.mrf.mxu0
        %v2038 = vadd.f32 0.0, %v2037
        %2039 = vmatmul.bf16.gmra.mxu0 %v1545
        %v2040 = vpop.f32.mrf.mxu0
        %v2041 = vadd.f32 0.0, %v2040
        %v2042 = vpop.f32.mrf.mxu0
        %v2043 = vadd.f32 0.0, %v2042
        %2044 = vmatmul.bf16.gmra.mxu0 %v1547
        %v2045 = vpop.f32.mrf.mxu0
        %v2046 = vadd.f32 0.0, %v2045
        %v2047 = vpop.f32.mrf.mxu0
        %v2048 = vadd.f32 0.0, %v2047
        %2049 = vmatmul.bf16.gmra.mxu0 %v1549
        %v2050 = vpop.f32.mrf.mxu0
        %v2051 = vadd.f32 0.0, %v2050
        %v2052 = vpop.f32.mrf.mxu0
        %v2053 = vadd.f32 0.0, %v2052
        %2054 = vmatmul.bf16.gmra.mxu0 %v1551
        %v2055 = vpop.f32.mrf.mxu0
        %v2056 = vadd.f32 0.0, %v2055
        %v2057 = vpop.f32.mrf.mxu0
        %v2058 = vadd.f32 0.0, %v2057
        %2059 = vmatmul.bf16.gmra.mxu0 %v1553
        %v2060 = vpop.f32.mrf.mxu0
        %v2061 = vadd.f32 0.0, %v2060
        %v2062 = vpop.f32.mrf.mxu0
        %v2063 = vadd.f32 0.0, %v2062
        %2064 = vmatmul.bf16.gmra.mxu0 %v1555
        %v2065 = vpop.f32.mrf.mxu0
        %v2066 = vadd.f32 0.0, %v2065
        %v2067 = vpop.f32.mrf.mxu0
        %v2068 = vadd.f32 0.0, %v2067
        %2069 = vmatmul.bf16.gmra.mxu0 %v1557
        %v2070 = vpop.f32.mrf.mxu0
        %v2071 = vadd.f32 0.0, %v2070
        %v2072 = vpop.f32.mrf.mxu0
        %v2073 = vadd.f32 0.0, %v2072
        %2074 = vmatmul.bf16.gmra.mxu0 %v1559
        %v2075 = vpop.f32.mrf.mxu0
        %v2076 = vadd.f32 0.0, %v2075
        %v2077 = vpop.f32.mrf.mxu0
        %v2078 = vadd.f32 0.0, %v2077
        %2079 = vmatmul.bf16.gmra.mxu0 %v1561
        %v2080 = vpop.f32.mrf.mxu0
        %v2081 = vadd.f32 0.0, %v2080
        %v2082 = vpop.f32.mrf.mxu0
        %v2083 = vadd.f32 0.0, %v2082
        %2084 = vmatmul.bf16.gmra.mxu0 %v1563
        %v2085 = vpop.f32.mrf.mxu0
        %v2086 = vadd.f32 0.0, %v2085
        %v2087 = vpop.f32.mrf.mxu0
        %v2088 = vadd.f32 0.0, %v2087
        %2089 = vmatmul.bf16.gmra.mxu0 %v1565
        %v2090 = vpop.f32.mrf.mxu0
        %v2091 = vadd.f32 0.0, %v2090
        %v2092 = vpop.f32.mrf.mxu0
        %v2093 = vadd.f32 0.0, %v2092
        %2094 = vmatmul.bf16.gmra.mxu0 %v1567
        %v2095 = vpop.f32.mrf.mxu0
        %v2096 = vadd.f32 0.0, %v2095
        %v2097 = vpop.f32.mrf.mxu0
        %v2098 = vadd.f32 0.0, %v2097
        %2099 = vmatmul.bf16.gmra.mxu0 %v1569
        %v2100 = vpop.f32.mrf.mxu0
        %v2101 = vadd.f32 0.0, %v2100
        %v2102 = vpop.f32.mrf.mxu0
        %v2103 = vadd.f32 0.0, %v2102
        %2104 = vmatmul.bf16.gmra.mxu0 %v1571
        %v2105 = vpop.f32.mrf.mxu0
        %v2106 = vadd.f32 0.0, %v2105
        %v2107 = vpop.f32.mrf.mxu0
        %v2108 = vadd.f32 0.0, %v2107
        %2109 = vmatmul.bf16.gmra.mxu0 %v1573
        %v2110 = vpop.f32.mrf.mxu0
        %v2111 = vadd.f32 0.0, %v2110
        %v2112 = vpop.f32.mrf.mxu0
        %v2113 = vadd.f32 0.0, %v2112
        %2114 = vmatmul.bf16.gmra.mxu0 %v1575
        %v2115 = vpop.f32.mrf.mxu0
        %v2116 = vadd.f32 0.0, %v2115
        %v2117 = vpop.f32.mrf.mxu0
        %v2118 = vadd.f32 0.0, %v2117
        %2119 = vmatmul.bf16.gmra.mxu0 %v1577
        %v2120 = vpop.f32.mrf.mxu0
        %v2121 = vadd.f32 0.0, %v2120
        %v2122 = vpop.f32.mrf.mxu0
        %v2123 = vadd.f32 0.0, %v2122
        %2124 = vmatmul.bf16.gmra.mxu0 %v1579
        %v2125 = vpop.f32.mrf.mxu0
        %v2126 = vadd.f32 0.0, %v2125
        %v2127 = vpop.f32.mrf.mxu0
        %v2128 = vadd.f32 0.0, %v2127
        %2129 = vmatmul.bf16.gmra.mxu0 %v1581
        %v2130 = vpop.f32.mrf.mxu0
        %v2131 = vadd.f32 0.0, %v2130
        %v2132 = vpop.f32.mrf.mxu0
        %v2133 = vadd.f32 0.0, %v2132
        %2134 = vmatmul.bf16.gmra.mxu0 %v1583
        %v2135 = vpop.f32.mrf.mxu0
        %v2136 = vadd.f32 0.0, %v2135
        %v2137 = vpop.f32.mrf.mxu0
        %v2138 = vadd.f32 0.0, %v2137
        %2139 = vmatmul.bf16.gmra.mxu0 %v1585
        %v2140 = vpop.f32.mrf.mxu0
        %v2141 = vadd.f32 0.0, %v2140
        %v2142 = vpop.f32.mrf.mxu0
        %v2143 = vadd.f32 0.0, %v2142
        %2144 = vmatmul.bf16.gmra.mxu0 %v1587
        %v2145 = vpop.f32.mrf.mxu0
        %v2146 = vadd.f32 0.0, %v2145
        %v2147 = vpop.f32.mrf.mxu0
        %v2148 = vadd.f32 0.0, %v2147
        %2149 = vmatmul.bf16.gmra.mxu0 %v1589
        %v2150 = vpop.f32.mrf.mxu0
        %v2151 = vadd.f32 0.0, %v2150
        %v2152 = vpop.f32.mrf.mxu0
        %v2153 = vadd.f32 0.0, %v2152
        %2154 = vmatmul.bf16.gmra.mxu0 %v1591
        %v2155 = vpop.f32.mrf.mxu0
        %v2156 = vadd.f32 0.0, %v2155
        %v2157 = vpop.f32.mrf.mxu0
        %v2158 = vadd.f32 0.0, %v2157
        %2159 = vmatmul.bf16.gmra.mxu0 %v1593
        %v2160 = vpop.f32.mrf.mxu0
        %v2161 = vadd.f32 0.0, %v2160
        %v2162 = vpop.f32.mrf.mxu0
        %v2163 = vadd.f32 0.0, %v2162
        %2164 = vmatmul.bf16.gmra.mxu0 %v1595
        %v2165 = vpop.f32.mrf.mxu0
        %v2166 = vadd.f32 0.0, %v2165
        %v2167 = vpop.f32.mrf.mxu0
        %v2168 = vadd.f32 0.0, %v2167
        %2169 = vmatmul.bf16.gmra.mxu0 %v1597
        %v2170 = vpop.f32.mrf.mxu0
        %v2171 = vadd.f32 0.0, %v2170
        %v2172 = vpop.f32.mrf.mxu0
        %v2173 = vadd.f32 0.0, %v2172
        %2174 = vmatmul.bf16.gmra.mxu0 %v1599
        %v2175 = vpop.f32.mrf.mxu0
        %v2176 = vadd.f32 0.0, %v2175
        %v2177 = vpop.f32.mrf.mxu0
        %v2178 = vadd.f32 0.0, %v2177
        %2179 = vmatmul.bf16.gmra.mxu0 %v1601
        %v2180 = vpop.f32.mrf.mxu0
        %v2181 = vadd.f32 0.0, %v2180
        %v2182 = vpop.f32.mrf.mxu0
        %v2183 = vadd.f32 0.0, %v2182
        %2184 = vmatmul.bf16.gmra.mxu0 %v1603
        %v2185 = vpop.f32.mrf.mxu0
        %v2186 = vadd.f32 0.0, %v2185
        %v2187 = vpop.f32.mrf.mxu0
        %v2188 = vadd.f32 0.0, %v2187
        %2189 = vdwg.mxu0
        %2190 = vmatpush.bf16.msra.mxu0 %v1844
        %2191 = vmatpush.bf16.msra.mxu0 %v1843
        %2192 = vmatpush.bf16.msra.mxu0 %v1842
        %2193 = vmatpush.bf16.msra.mxu0 %v1841
        %2194 = vmatpush.bf16.msra.mxu0 %v1840
        %2195 = vmatpush.bf16.msra.mxu0 %v1839
        %2196 = vmatpush.bf16.msra.mxu0 %v1838
        %2197 = vmatpush.bf16.msra.mxu0 %v1837
        %2198 = vmatmul.bf16.gmra.mxu0 %v1478
        %v2199 = vpop.f32.mrf.mxu0
        %v2200 = vadd.f32 %v1871, %v2199
        %v2201 = vpop.f32.mrf.mxu0
        %v2202 = vadd.f32 %v1873, %v2201
        %2203 = vmatmul.bf16.gmra.mxu0 %v1480
        %v2204 = vpop.f32.mrf.mxu0
        %v2205 = vadd.f32 %v1876, %v2204
        %v2206 = vpop.f32.mrf.mxu0
        %v2207 = vadd.f32 %v1878, %v2206
        %2208 = vmatmul.bf16.gmra.mxu0 %v1482
        %v2209 = vpop.f32.mrf.mxu0
        %v2210 = vadd.f32 %v1881, %v2209
        %v2211 = vpop.f32.mrf.mxu0
        %v2212 = vadd.f32 %v1883, %v2211
        %2213 = vmatmul.bf16.gmra.mxu0 %v1484
        %v2214 = vpop.f32.mrf.mxu0
        %v2215 = vadd.f32 %v1886, %v2214
        %v2216 = vpop.f32.mrf.mxu0
        %v2217 = vadd.f32 %v1888, %v2216
        %2218 = vmatmul.bf16.gmra.mxu0 %v1486
        %v2219 = vpop.f32.mrf.mxu0
        %v2220 = vadd.f32 %v1891, %v2219
        %v2221 = vpop.f32.mrf.mxu0
        %v2222 = vadd.f32 %v1893, %v2221
        %2223 = vmatmul.bf16.gmra.mxu0 %v1488
        %v2224 = vpop.f32.mrf.mxu0
        %v2225 = vadd.f32 %v1896, %v2224
        %v2226 = vpop.f32.mrf.mxu0
        %v2227 = vadd.f32 %v1898, %v2226
        %2228 = vmatmul.bf16.gmra.mxu0 %v1490
        %v2229 = vpop.f32.mrf.mxu0
        %v2230 = vadd.f32 %v1901, %v2229
        %v2231 = vpop.f32.mrf.mxu0
        %v2232 = vadd.f32 %v1903, %v2231
        %2233 = vmatmul.bf16.gmra.mxu0 %v1492
        %v2234 = vpop.f32.mrf.mxu0
        %v2235 = vadd.f32 %v1906, %v2234
        %v2236 = vpop.f32.mrf.mxu0
        %v2237 = vadd.f32 %v1908, %v2236
        %2238 = vmatmul.bf16.gmra.mxu0 %v1494
        %v2239 = vpop.f32.mrf.mxu0
        %v2240 = vadd.f32 %v1911, %v2239
        %v2241 = vpop.f32.mrf.mxu0
        %v2242 = vadd.f32 %v1913, %v2241
        %2243 = vmatmul.bf16.gmra.mxu0 %v1496
        %v2244 = vpop.f32.mrf.mxu0
        %v2245 = vadd.f32 %v1916, %v2244
        %v2246 = vpop.f32.mrf.mxu0
        %v2247 = vadd.f32 %v1918, %v2246
        %2248 = vmatmul.bf16.gmra.mxu0 %v1498
        %v2249 = vpop.f32.mrf.mxu0
        %v2250 = vadd.f32 %v1921, %v2249
        %v2251 = vpop.f32.mrf.mxu0
        %v2252 = vadd.f32 %v1923, %v2251
        %2253 = vmatmul.bf16.gmra.mxu0 %v1500
        %v2254 = vpop.f32.mrf.mxu0
        %v2255 = vadd.f32 %v1926, %v2254
        %v2256 = vpop.f32.mrf.mxu0
        %v2257 = vadd.f32 %v1928, %v2256
        %2258 = vmatmul.bf16.gmra.mxu0 %v1502
        %v2259 = vpop.f32.mrf.mxu0
        %v2260 = vadd.f32 %v1931, %v2259
        %v2261 = vpop.f32.mrf.mxu0
        %v2262 = vadd.f32 %v1933, %v2261
        %2263 = vmatmul.bf16.gmra.mxu0 %v1504
        %v2264 = vpop.f32.mrf.mxu0
        %v2265 = vadd.f32 %v1936, %v2264
        %v2266 = vpop.f32.mrf.mxu0
        %v2267 = vadd.f32 %v1938, %v2266
        %2268 = vmatmul.bf16.gmra.mxu0 %v1506
        %v2269 = vpop.f32.mrf.mxu0
        %v2270 = vadd.f32 %v1941, %v2269
        %v2271 = vpop.f32.mrf.mxu0
        %v2272 = vadd.f32 %v1943, %v2271
        %2273 = vmatmul.bf16.gmra.mxu0 %v1508
        %v2274 = vpop.f32.mrf.mxu0
        %v2275 = vadd.f32 %v1946, %v2274
        %v2276 = vpop.f32.mrf.mxu0
        %v2277 = vadd.f32 %v1948, %v2276
        %2278 = vmatmul.bf16.gmra.mxu0 %v1510
        %v2279 = vpop.f32.mrf.mxu0
        %v2280 = vadd.f32 %v1951, %v2279
        %v2281 = vpop.f32.mrf.mxu0
        %v2282 = vadd.f32 %v1953, %v2281
        %2283 = vmatmul.bf16.gmra.mxu0 %v1512
        %v2284 = vpop.f32.mrf.mxu0
        %v2285 = vadd.f32 %v1956, %v2284
        %v2286 = vpop.f32.mrf.mxu0
        %v2287 = vadd.f32 %v1958, %v2286
        %2288 = vmatmul.bf16.gmra.mxu0 %v1514
        %v2289 = vpop.f32.mrf.mxu0
        %v2290 = vadd.f32 %v1961, %v2289
        %v2291 = vpop.f32.mrf.mxu0
        %v2292 = vadd.f32 %v1963, %v2291
        %2293 = vmatmul.bf16.gmra.mxu0 %v1516
        %v2294 = vpop.f32.mrf.mxu0
        %v2295 = vadd.f32 %v1966, %v2294
        %v2296 = vpop.f32.mrf.mxu0
        %v2297 = vadd.f32 %v1968, %v2296
        %2298 = vmatmul.bf16.gmra.mxu0 %v1518
        %v2299 = vpop.f32.mrf.mxu0
        %v2300 = vadd.f32 %v1971, %v2299
        %v2301 = vpop.f32.mrf.mxu0
        %v2302 = vadd.f32 %v1973, %v2301
        %2303 = vmatmul.bf16.gmra.mxu0 %v1520
        %v2304 = vpop.f32.mrf.mxu0
        %v2305 = vadd.f32 %v1976, %v2304
        %v2306 = vpop.f32.mrf.mxu0
        %v2307 = vadd.f32 %v1978, %v2306
        %2308 = vmatmul.bf16.gmra.mxu0 %v1522
        %v2309 = vpop.f32.mrf.mxu0
        %v2310 = vadd.f32 %v1981, %v2309
        %v2311 = vpop.f32.mrf.mxu0
        %v2312 = vadd.f32 %v1983, %v2311
        %2313 = vmatmul.bf16.gmra.mxu0 %v1524
        %v2314 = vpop.f32.mrf.mxu0
        %v2315 = vadd.f32 %v1986, %v2314
        %v2316 = vpop.f32.mrf.mxu0
        %v2317 = vadd.f32 %v1988, %v2316
        %2318 = vmatmul.bf16.gmra.mxu0 %v1526
        %v2319 = vpop.f32.mrf.mxu0
        %v2320 = vadd.f32 %v1991, %v2319
        %v2321 = vpop.f32.mrf.mxu0
        %v2322 = vadd.f32 %v1993, %v2321
        %2323 = vmatmul.bf16.gmra.mxu0 %v1528
        %v2324 = vpop.f32.mrf.mxu0
        %v2325 = vadd.f32 %v1996, %v2324
        %v2326 = vpop.f32.mrf.mxu0
        %v2327 = vadd.f32 %v1998, %v2326
        %2328 = vmatmul.bf16.gmra.mxu0 %v1530
        %v2329 = vpop.f32.mrf.mxu0
        %v2330 = vadd.f32 %v2001, %v2329
        %v2331 = vpop.f32.mrf.mxu0
        %v2332 = vadd.f32 %v2003, %v2331
        %2333 = vmatmul.bf16.gmra.mxu0 %v1532
        %v2334 = vpop.f32.mrf.mxu0
        %v2335 = vadd.f32 %v2006, %v2334
        %v2336 = vpop.f32.mrf.mxu0
        %v2337 = vadd.f32 %v2008, %v2336
        %2338 = vmatmul.bf16.gmra.mxu0 %v1534
        %v2339 = vpop.f32.mrf.mxu0
        %v2340 = vadd.f32 %v2011, %v2339
        %v2341 = vpop.f32.mrf.mxu0
        %v2342 = vadd.f32 %v2013, %v2341
        %2343 = vmatmul.bf16.gmra.mxu0 %v1536
        %v2344 = vpop.f32.mrf.mxu0
        %v2345 = vadd.f32 %v2016, %v2344
        %v2346 = vpop.f32.mrf.mxu0
        %v2347 = vadd.f32 %v2018, %v2346
        %2348 = vmatmul.bf16.gmra.mxu0 %v1538
        %v2349 = vpop.f32.mrf.mxu0
        %v2350 = vadd.f32 %v2021, %v2349
        %v2351 = vpop.f32.mrf.mxu0
        %v2352 = vadd.f32 %v2023, %v2351
        %2353 = vmatmul.bf16.gmra.mxu0 %v1540
        %v2354 = vpop.f32.mrf.mxu0
        %v2355 = vadd.f32 %v2026, %v2354
        %v2356 = vpop.f32.mrf.mxu0
        %v2357 = vadd.f32 %v2028, %v2356
        %2358 = vmatmul.bf16.gmra.mxu0 %v1542
        %v2359 = vpop.f32.mrf.mxu0
        %v2360 = vadd.f32 %v2031, %v2359
        %v2361 = vpop.f32.mrf.mxu0
        %v2362 = vadd.f32 %v2033, %v2361
        %2363 = vmatmul.bf16.gmra.mxu0 %v1544
        %v2364 = vpop.f32.mrf.mxu0
        %v2365 = vadd.f32 %v2036, %v2364
        %v2366 = vpop.f32.mrf.mxu0
        %v2367 = vadd.f32 %v2038, %v2366
        %2368 = vmatmul.bf16.gmra.mxu0 %v1546
        %v2369 = vpop.f32.mrf.mxu0
        %v2370 = vadd.f32 %v2041, %v2369
        %v2371 = vpop.f32.mrf.mxu0
        %v2372 = vadd.f32 %v2043, %v2371
        %2373 = vmatmul.bf16.gmra.mxu0 %v1548
        %v2374 = vpop.f32.mrf.mxu0
        %v2375 = vadd.f32 %v2046, %v2374
        %v2376 = vpop.f32.mrf.mxu0
        %v2377 = vadd.f32 %v2048, %v2376
        %2378 = vmatmul.bf16.gmra.mxu0 %v1550
        %v2379 = vpop.f32.mrf.mxu0
        %v2380 = vadd.f32 %v2051, %v2379
        %v2381 = vpop.f32.mrf.mxu0
        %v2382 = vadd.f32 %v2053, %v2381
        %2383 = vmatmul.bf16.gmra.mxu0 %v1552
        %v2384 = vpop.f32.mrf.mxu0
        %v2385 = vadd.f32 %v2056, %v2384
        %v2386 = vpop.f32.mrf.mxu0
        %v2387 = vadd.f32 %v2058, %v2386
        %2388 = vmatmul.bf16.gmra.mxu0 %v1554
        %v2389 = vpop.f32.mrf.mxu0
        %v2390 = vadd.f32 %v2061, %v2389
        %v2391 = vpop.f32.mrf.mxu0
        %v2392 = vadd.f32 %v2063, %v2391
        %2393 = vmatmul.bf16.gmra.mxu0 %v1556
        %v2394 = vpop.f32.mrf.mxu0
        %v2395 = vadd.f32 %v2066, %v2394
        %v2396 = vpop.f32.mrf.mxu0
        %v2397 = vadd.f32 %v2068, %v2396
        %2398 = vmatmul.bf16.gmra.mxu0 %v1558
        %v2399 = vpop.f32.mrf.mxu0
        %v2400 = vadd.f32 %v2071, %v2399
        %v2401 = vpop.f32.mrf.mxu0
        %v2402 = vadd.f32 %v2073, %v2401
        %2403 = vmatmul.bf16.gmra.mxu0 %v1560
        %v2404 = vpop.f32.mrf.mxu0
        %v2405 = vadd.f32 %v2076, %v2404
        %v2406 = vpop.f32.mrf.mxu0
        %v2407 = vadd.f32 %v2078, %v2406
        %2408 = vmatmul.bf16.gmra.mxu0 %v1562
        %v2409 = vpop.f32.mrf.mxu0
        %v2410 = vadd.f32 %v2081, %v2409
        %v2411 = vpop.f32.mrf.mxu0
        %v2412 = vadd.f32 %v2083, %v2411
        %2413 = vmatmul.bf16.gmra.mxu0 %v1564
        %v2414 = vpop.f32.mrf.mxu0
        %v2415 = vadd.f32 %v2086, %v2414
        %v2416 = vpop.f32.mrf.mxu0
        %v2417 = vadd.f32 %v2088, %v2416
        %2418 = vmatmul.bf16.gmra.mxu0 %v1566
        %v2419 = vpop.f32.mrf.mxu0
        %v2420 = vadd.f32 %v2091, %v2419
        %v2421 = vpop.f32.mrf.mxu0
        %v2422 = vadd.f32 %v2093, %v2421
        %2423 = vmatmul.bf16.gmra.mxu0 %v1568
        %v2424 = vpop.f32.mrf.mxu0
        %v2425 = vadd.f32 %v2096, %v2424
        %v2426 = vpop.f32.mrf.mxu0
        %v2427 = vadd.f32 %v2098, %v2426
        %2428 = vmatmul.bf16.gmra.mxu0 %v1570
        %v2429 = vpop.f32.mrf.mxu0
        %v2430 = vadd.f32 %v2101, %v2429
        %v2431 = vpop.f32.mrf.mxu0
        %v2432 = vadd.f32 %v2103, %v2431
        %2433 = vmatmul.bf16.gmra.mxu0 %v1572
        %v2434 = vpop.f32.mrf.mxu0
        %v2435 = vadd.f32 %v2106, %v2434
        %v2436 = vpop.f32.mrf.mxu0
        %v2437 = vadd.f32 %v2108, %v2436
        %2438 = vmatmul.bf16.gmra.mxu0 %v1574
        %v2439 = vpop.f32.mrf.mxu0
        %v2440 = vadd.f32 %v2111, %v2439
        %v2441 = vpop.f32.mrf.mxu0
        %v2442 = vadd.f32 %v2113, %v2441
        %2443 = vmatmul.bf16.gmra.mxu0 %v1576
        %v2444 = vpop.f32.mrf.mxu0
        %v2445 = vadd.f32 %v2116, %v2444
        %v2446 = vpop.f32.mrf.mxu0
        %v2447 = vadd.f32 %v2118, %v2446
        %2448 = vmatmul.bf16.gmra.mxu0 %v1578
        %v2449 = vpop.f32.mrf.mxu0
        %v2450 = vadd.f32 %v2121, %v2449
        %v2451 = vpop.f32.mrf.mxu0
        %v2452 = vadd.f32 %v2123, %v2451
        %2453 = vmatmul.bf16.gmra.mxu0 %v1580
        %v2454 = vpop.f32.mrf.mxu0
        %v2455 = vadd.f32 %v2126, %v2454
        %v2456 = vpop.f32.mrf.mxu0
        %v2457 = vadd.f32 %v2128, %v2456
        %2458 = vmatmul.bf16.gmra.mxu0 %v1582
        %v2459 = vpop.f32.mrf.mxu0
        %v2460 = vadd.f32 %v2131, %v2459
        %v2461 = vpop.f32.mrf.mxu0
        %v2462 = vadd.f32 %v2133, %v2461
        %2463 = vmatmul.bf16.gmra.mxu0 %v1584
        %v2464 = vpop.f32.mrf.mxu0
        %v2465 = vadd.f32 %v2136, %v2464
        %v2466 = vpop.f32.mrf.mxu0
        %v2467 = vadd.f32 %v2138, %v2466
        %2468 = vmatmul.bf16.gmra.mxu0 %v1586
        %v2469 = vpop.f32.mrf.mxu0
        %v2470 = vadd.f32 %v2141, %v2469
        %v2471 = vpop.f32.mrf.mxu0
        %v2472 = vadd.f32 %v2143, %v2471
        %2473 = vmatmul.bf16.gmra.mxu0 %v1588
        %v2474 = vpop.f32.mrf.mxu0
        %v2475 = vadd.f32 %v2146, %v2474
        %v2476 = vpop.f32.mrf.mxu0
        %v2477 = vadd.f32 %v2148, %v2476
        %2478 = vmatmul.bf16.gmra.mxu0 %v1590
        %v2479 = vpop.f32.mrf.mxu0
        %v2480 = vadd.f32 %v2151, %v2479
        %v2481 = vpop.f32.mrf.mxu0
        %v2482 = vadd.f32 %v2153, %v2481
        %2483 = vmatmul.bf16.gmra.mxu0 %v1592
        %v2484 = vpop.f32.mrf.mxu0
        %v2485 = vadd.f32 %v2156, %v2484
        %v2486 = vpop.f32.mrf.mxu0
        %v2487 = vadd.f32 %v2158, %v2486
        %2488 = vmatmul.bf16.gmra.mxu0 %v1594
        %v2489 = vpop.f32.mrf.mxu0
        %v2490 = vadd.f32 %v2161, %v2489
        %v2491 = vpop.f32.mrf.mxu0
        %v2492 = vadd.f32 %v2163, %v2491
        %2493 = vmatmul.bf16.gmra.mxu0 %v1596
        %v2494 = vpop.f32.mrf.mxu0
        %v2495 = vadd.f32 %v2166, %v2494
        %v2496 = vpop.f32.mrf.mxu0
        %v2497 = vadd.f32 %v2168, %v2496
        %2498 = vmatmul.bf16.gmra.mxu0 %v1598
        %v2499 = vpop.f32.mrf.mxu0
        %v2500 = vadd.f32 %v2171, %v2499
        %v2501 = vpop.f32.mrf.mxu0
        %v2502 = vadd.f32 %v2173, %v2501
        %2503 = vmatmul.bf16.gmra.mxu0 %v1600
        %v2504 = vpop.f32.mrf.mxu0
        %v2505 = vadd.f32 %v2176, %v2504
        %v2506 = vpop.f32.mrf.mxu0
        %v2507 = vadd.f32 %v2178, %v2506
        %2508 = vmatmul.bf16.gmra.mxu0 %v1602
        %v2509 = vpop.f32.mrf.mxu0
        %v2510 = vadd.f32 %v2181, %v2509
        %v2511 = vpop.f32.mrf.mxu0
        %v2512 = vadd.f32 %v2183, %v2511
        %2513 = vmatmul.bf16.gmra.mxu0 %v1604
        %v2514 = vpop.f32.mrf.mxu0
        %v2515 = vadd.f32 %v2186, %v2514
        %v2516 = vpop.f32.mrf.mxu0
        %v2517 = vadd.f32 %v2188, %v2516
        %2518 = vdwg.mxu0
        %2520 = vset.pattern.permute.xlu0 0
        %2521 = vperm.xlu0 %2520, %v1605
        %v2522 = vpop.permute.xlu0 %2521
        %2525 = vset.pattern.permute.xlu0 0
        %2526 = vperm.xlu0 %2525, %v1606
        %v2527 = vpop.permute.xlu0 %2526
        %2530 = vset.pattern.permute.xlu0 0
        %2531 = vperm.xlu0 %2530, %v1607
        %v2532 = vpop.permute.xlu0 %2531
        %2535 = vset.pattern.permute.xlu0 0
        %2536 = vperm.xlu0 %2535, %v1608
        %v2537 = vpop.permute.xlu0 %2536
        %2540 = vset.pattern.permute.xlu0 0
        %2541 = vperm.xlu0 %2540, %v1609
        %v2542 = vpop.permute.xlu0 %2541
        %2545 = vset.pattern.permute.xlu0 0
        %2546 = vperm.xlu0 %2545, %v1610
        %v2547 = vpop.permute.xlu0 %2546
        %2550 = vset.pattern.permute.xlu0 0
        %2551 = vperm.xlu0 %2550, %v1611
        %v2552 = vpop.permute.xlu0 %2551
        %2555 = vset.pattern.permute.xlu0 0
        %2556 = vperm.xlu0 %2555, %v1612
        %v2557 = vpop.permute.xlu0 %2556
        %2560 = vset.pattern.permute.xlu0 0
        %2561 = vperm.xlu0 %2560, %v1613
        %v2562 = vpop.permute.xlu0 %2561
        %2565 = vset.pattern.permute.xlu0 0
        %2566 = vperm.xlu0 %2565, %v1614
        %v2567 = vpop.permute.xlu0 %2566
        %2570 = vset.pattern.permute.xlu0 0
        %2571 = vperm.xlu0 %2570, %v1615
        %v2572 = vpop.permute.xlu0 %2571
        %2575 = vset.pattern.permute.xlu0 0
        %2576 = vperm.xlu0 %2575, %v1616
        %v2577 = vpop.permute.xlu0 %2576
        %2580 = vset.pattern.permute.xlu0 0
        %2581 = vperm.xlu0 %2580, %v1617
        %v2582 = vpop.permute.xlu0 %2581
        %2585 = vset.pattern.permute.xlu0 0
        %2586 = vperm.xlu0 %2585, %v1618
        %v2587 = vpop.permute.xlu0 %2586
        %2590 = vset.pattern.permute.xlu0 0
        %2591 = vperm.xlu0 %2590, %v1619
        %v2592 = vpop.permute.xlu0 %2591
        %2595 = vset.pattern.permute.xlu0 0
        %2596 = vperm.xlu0 %2595, %v1620
        %v2597 = vpop.permute.xlu0 %2596
        %2600 = vset.pattern.permute.xlu0 0
        %2601 = vperm.xlu0 %2600, %v1621
        %v2602 = vpop.permute.xlu0 %2601
        %2605 = vset.pattern.permute.xlu0 0
        %2606 = vperm.xlu0 %2605, %v1622
        %v2607 = vpop.permute.xlu0 %2606
        %2610 = vset.pattern.permute.xlu0 0
        %2611 = vperm.xlu0 %2610, %v1623
        %v2612 = vpop.permute.xlu0 %2611
        %2615 = vset.pattern.permute.xlu0 0
        %2616 = vperm.xlu0 %2615, %v1624
        %v2617 = vpop.permute.xlu0 %2616
        %2620 = vset.pattern.permute.xlu0 0
        %2621 = vperm.xlu0 %2620, %v1625
        %v2622 = vpop.permute.xlu0 %2621
        %2625 = vset.pattern.permute.xlu0 0
        %2626 = vperm.xlu0 %2625, %v1626
        %v2627 = vpop.permute.xlu0 %2626
        %2630 = vset.pattern.permute.xlu0 0
        %2631 = vperm.xlu0 %2630, %v1627
        %v2632 = vpop.permute.xlu0 %2631
        %2635 = vset.pattern.permute.xlu0 0
        %2636 = vperm.xlu0 %2635, %v1628
        %v2637 = vpop.permute.xlu0 %2636
        %2640 = vset.pattern.permute.xlu0 0
        %2641 = vperm.xlu0 %2640, %v1629
        %v2642 = vpop.permute.xlu0 %2641
        %2645 = vset.pattern.permute.xlu0 0
        %2646 = vperm.xlu0 %2645, %v1630
        %v2647 = vpop.permute.xlu0 %2646
        %2650 = vset.pattern.permute.xlu0 0
        %2651 = vperm.xlu0 %2650, %v1631
        %v2652 = vpop.permute.xlu0 %2651
        %2655 = vset.pattern.permute.xlu0 0
        %2656 = vperm.xlu0 %2655, %v1632
        %v2657 = vpop.permute.xlu0 %2656
        %2660 = vset.pattern.permute.xlu0 0
        %2661 = vperm.xlu0 %2660, %v1633
        %v2662 = vpop.permute.xlu0 %2661
        %2665 = vset.pattern.permute.xlu0 0
        %2666 = vperm.xlu0 %2665, %v1634
        %v2667 = vpop.permute.xlu0 %2666
        %2670 = vset.pattern.permute.xlu0 0
        %2671 = vperm.xlu0 %2670, %v1635
        %v2672 = vpop.permute.xlu0 %2671
        %2675 = vset.pattern.permute.xlu0 0
        %2676 = vperm.xlu0 %2675, %v1636
        %v2677 = vpop.permute.xlu0 %2676
        %2680 = vset.pattern.permute.xlu0 0
        %2681 = vperm.xlu0 %2680, %v1637
        %v2682 = vpop.permute.xlu0 %2681
        %2685 = vset.pattern.permute.xlu0 0
        %2686 = vperm.xlu0 %2685, %v1638
        %v2687 = vpop.permute.xlu0 %2686
        %2690 = vset.pattern.permute.xlu0 0
        %2691 = vperm.xlu0 %2690, %v1639
        %v2692 = vpop.permute.xlu0 %2691
        %2695 = vset.pattern.permute.xlu0 0
        %2696 = vperm.xlu0 %2695, %v1640
        %v2697 = vpop.permute.xlu0 %2696
        %2700 = vset.pattern.permute.xlu0 0
        %2701 = vperm.xlu0 %2700, %v1641
        %v2702 = vpop.permute.xlu0 %2701
        %2705 = vset.pattern.permute.xlu0 0
        %2706 = vperm.xlu0 %2705, %v1642
        %v2707 = vpop.permute.xlu0 %2706
        %2710 = vset.pattern.permute.xlu0 0
        %2711 = vperm.xlu0 %2710, %v1643
        %v2712 = vpop.permute.xlu0 %2711
        %2715 = vset.pattern.permute.xlu0 0
        %2716 = vperm.xlu0 %2715, %v1644
        %v2717 = vpop.permute.xlu0 %2716
        %2720 = vset.pattern.permute.xlu0 0
        %2721 = vperm.xlu0 %2720, %v1645
        %v2722 = vpop.permute.xlu0 %2721
        %2725 = vset.pattern.permute.xlu0 0
        %2726 = vperm.xlu0 %2725, %v1646
        %v2727 = vpop.permute.xlu0 %2726
        %2730 = vset.pattern.permute.xlu0 0
        %2731 = vperm.xlu0 %2730, %v1647
        %v2732 = vpop.permute.xlu0 %2731
        %2735 = vset.pattern.permute.xlu0 0
        %2736 = vperm.xlu0 %2735, %v1648
        %v2737 = vpop.permute.xlu0 %2736
        %2740 = vset.pattern.permute.xlu0 0
        %2741 = vperm.xlu0 %2740, %v1649
        %v2742 = vpop.permute.xlu0 %2741
        %2745 = vset.pattern.permute.xlu0 0
        %2746 = vperm.xlu0 %2745, %v1650
        %v2747 = vpop.permute.xlu0 %2746
        %2750 = vset.pattern.permute.xlu0 0
        %2751 = vperm.xlu0 %2750, %v1651
        %v2752 = vpop.permute.xlu0 %2751
        %2755 = vset.pattern.permute.xlu0 0
        %2756 = vperm.xlu0 %2755, %v1652
        %v2757 = vpop.permute.xlu0 %2756
        %2760 = vset.pattern.permute.xlu0 0
        %2761 = vperm.xlu0 %2760, %v1653
        %v2762 = vpop.permute.xlu0 %2761
        %2765 = vset.pattern.permute.xlu0 0
        %2766 = vperm.xlu0 %2765, %v1654
        %v2767 = vpop.permute.xlu0 %2766
        %2770 = vset.pattern.permute.xlu0 0
        %2771 = vperm.xlu0 %2770, %v1655
        %v2772 = vpop.permute.xlu0 %2771
        %2775 = vset.pattern.permute.xlu0 0
        %2776 = vperm.xlu0 %2775, %v1656
        %v2777 = vpop.permute.xlu0 %2776
        %2780 = vset.pattern.permute.xlu0 0
        %2781 = vperm.xlu0 %2780, %v1657
        %v2782 = vpop.permute.xlu0 %2781
        %2785 = vset.pattern.permute.xlu0 0
        %2786 = vperm.xlu0 %2785, %v1658
        %v2787 = vpop.permute.xlu0 %2786
        %2790 = vset.pattern.permute.xlu0 0
        %2791 = vperm.xlu0 %2790, %v1659
        %v2792 = vpop.permute.xlu0 %2791
        %2795 = vset.pattern.permute.xlu0 0
        %2796 = vperm.xlu0 %2795, %v1660
        %v2797 = vpop.permute.xlu0 %2796
        %2800 = vset.pattern.permute.xlu0 0
        %2801 = vperm.xlu0 %2800, %v1661
        %v2802 = vpop.permute.xlu0 %2801
        %2805 = vset.pattern.permute.xlu0 0
        %2806 = vperm.xlu0 %2805, %v1662
        %v2807 = vpop.permute.xlu0 %2806
        %2810 = vset.pattern.permute.xlu0 0
        %2811 = vperm.xlu0 %2810, %v1663
        %v2812 = vpop.permute.xlu0 %2811
        %2815 = vset.pattern.permute.xlu0 0
        %2816 = vperm.xlu0 %2815, %v1664
        %v2817 = vpop.permute.xlu0 %2816
        %2820 = vset.pattern.permute.xlu0 0
        %2821 = vperm.xlu0 %2820, %v1665
        %v2822 = vpop.permute.xlu0 %2821
        %2825 = vset.pattern.permute.xlu0 0
        %2826 = vperm.xlu0 %2825, %v1666
        %v2827 = vpop.permute.xlu0 %2826
        %2830 = vset.pattern.permute.xlu0 0
        %2831 = vperm.xlu0 %2830, %v1667
        %v2832 = vpop.permute.xlu0 %2831
        %2835 = vset.pattern.permute.xlu0 0
        %2836 = vperm.xlu0 %2835, %v1668
        %v2837 = vpop.permute.xlu0 %2836
        %2840 = vset.pattern.permute.xlu0 0
        %2841 = vperm.xlu0 %2840, %v1669
        %v2842 = vpop.permute.xlu0 %2841
        %2845 = vset.pattern.permute.xlu0 0
        %2846 = vperm.xlu0 %2845, %v1670
        %v2847 = vpop.permute.xlu0 %2846
        %2850 = vset.pattern.permute.xlu0 0
        %2851 = vperm.xlu0 %2850, %v1671
        %v2852 = vpop.permute.xlu0 %2851
        %2855 = vset.pattern.permute.xlu0 0
        %2856 = vperm.xlu0 %2855, %v1672
        %v2857 = vpop.permute.xlu0 %2856
        %2860 = vset.pattern.permute.xlu0 0
        %2861 = vperm.xlu0 %2860, %v1673
        %v2862 = vpop.permute.xlu0 %2861
        %2865 = vset.pattern.permute.xlu0 0
        %2866 = vperm.xlu0 %2865, %v1674
        %v2867 = vpop.permute.xlu0 %2866
        %2870 = vset.pattern.permute.xlu0 0
        %2871 = vperm.xlu0 %2870, %v1675
        %v2872 = vpop.permute.xlu0 %2871
        %2875 = vset.pattern.permute.xlu0 0
        %2876 = vperm.xlu0 %2875, %v1676
        %v2877 = vpop.permute.xlu0 %2876
        %2880 = vset.pattern.permute.xlu0 0
        %2881 = vperm.xlu0 %2880, %v1677
        %v2882 = vpop.permute.xlu0 %2881
        %2885 = vset.pattern.permute.xlu0 0
        %2886 = vperm.xlu0 %2885, %v1678
        %v2887 = vpop.permute.xlu0 %2886
        %2890 = vset.pattern.permute.xlu0 0
        %2891 = vperm.xlu0 %2890, %v1679
        %v2892 = vpop.permute.xlu0 %2891
        %2895 = vset.pattern.permute.xlu0 0
        %2896 = vperm.xlu0 %2895, %v1680
        %v2897 = vpop.permute.xlu0 %2896
        %2900 = vset.pattern.permute.xlu0 0
        %2901 = vperm.xlu0 %2900, %v1681
        %v2902 = vpop.permute.xlu0 %2901
        %2905 = vset.pattern.permute.xlu0 0
        %2906 = vperm.xlu0 %2905, %v1682
        %v2907 = vpop.permute.xlu0 %2906
        %2910 = vset.pattern.permute.xlu0 0
        %2911 = vperm.xlu0 %2910, %v1683
        %v2912 = vpop.permute.xlu0 %2911
        %2915 = vset.pattern.permute.xlu0 0
        %2916 = vperm.xlu0 %2915, %v1684
        %v2917 = vpop.permute.xlu0 %2916
        %2920 = vset.pattern.permute.xlu0 0
        %2921 = vperm.xlu0 %2920, %v1685
        %v2922 = vpop.permute.xlu0 %2921
        %2925 = vset.pattern.permute.xlu0 0
        %2926 = vperm.xlu0 %2925, %v1686
        %v2927 = vpop.permute.xlu0 %2926
        %2930 = vset.pattern.permute.xlu0 0
        %2931 = vperm.xlu0 %2930, %v1687
        %v2932 = vpop.permute.xlu0 %2931
        %2935 = vset.pattern.permute.xlu0 0
        %2936 = vperm.xlu0 %2935, %v1688
        %v2937 = vpop.permute.xlu0 %2936
        %2940 = vset.pattern.permute.xlu0 0
        %2941 = vperm.xlu0 %2940, %v1689
        %v2942 = vpop.permute.xlu0 %2941
        %2945 = vset.pattern.permute.xlu0 0
        %2946 = vperm.xlu0 %2945, %v1690
        %v2947 = vpop.permute.xlu0 %2946
        %2950 = vset.pattern.permute.xlu0 0
        %2951 = vperm.xlu0 %2950, %v1691
        %v2952 = vpop.permute.xlu0 %2951
        %2955 = vset.pattern.permute.xlu0 0
        %2956 = vperm.xlu0 %2955, %v1692
        %v2957 = vpop.permute.xlu0 %2956
        %2960 = vset.pattern.permute.xlu0 0
        %2961 = vperm.xlu0 %2960, %v1693
        %v2962 = vpop.permute.xlu0 %2961
        %2965 = vset.pattern.permute.xlu0 0
        %2966 = vperm.xlu0 %2965, %v1694
        %v2967 = vpop.permute.xlu0 %2966
        %2970 = vset.pattern.permute.xlu0 0
        %2971 = vperm.xlu0 %2970, %v1695
        %v2972 = vpop.permute.xlu0 %2971
        %2975 = vset.pattern.permute.xlu0 0
        %2976 = vperm.xlu0 %2975, %v1696
        %v2977 = vpop.permute.xlu0 %2976
        %2980 = vset.pattern.permute.xlu0 0
        %2981 = vperm.xlu0 %2980, %v1697
        %v2982 = vpop.permute.xlu0 %2981
        %2985 = vset.pattern.permute.xlu0 0
        %2986 = vperm.xlu0 %2985, %v1698
        %v2987 = vpop.permute.xlu0 %2986
        %2990 = vset.pattern.permute.xlu0 0
        %2991 = vperm.xlu0 %2990, %v1699
        %v2992 = vpop.permute.xlu0 %2991
        %2995 = vset.pattern.permute.xlu0 0
        %2996 = vperm.xlu0 %2995, %v1700
        %v2997 = vpop.permute.xlu0 %2996
        %3000 = vset.pattern.permute.xlu0 0
        %3001 = vperm.xlu0 %3000, %v1701
        %v3002 = vpop.permute.xlu0 %3001
        %3005 = vset.pattern.permute.xlu0 0
        %3006 = vperm.xlu0 %3005, %v1702
        %v3007 = vpop.permute.xlu0 %3006
        %3010 = vset.pattern.permute.xlu0 0
        %3011 = vperm.xlu0 %3010, %v1703
        %v3012 = vpop.permute.xlu0 %3011
        %3015 = vset.pattern.permute.xlu0 0
        %3016 = vperm.xlu0 %3015, %v1704
        %v3017 = vpop.permute.xlu0 %3016
        %3020 = vset.pattern.permute.xlu0 0
        %3021 = vperm.xlu0 %3020, %v1705
        %v3022 = vpop.permute.xlu0 %3021
        %3025 = vset.pattern.permute.xlu0 0
        %3026 = vperm.xlu0 %3025, %v1706
        %v3027 = vpop.permute.xlu0 %3026
        %3030 = vset.pattern.permute.xlu0 0
        %3031 = vperm.xlu0 %3030, %v1707
        %v3032 = vpop.permute.xlu0 %3031
        %3035 = vset.pattern.permute.xlu0 0
        %3036 = vperm.xlu0 %3035, %v1708
        %v3037 = vpop.permute.xlu0 %3036
        %3040 = vset.pattern.permute.xlu0 0
        %3041 = vperm.xlu0 %3040, %v1709
        %v3042 = vpop.permute.xlu0 %3041
        %3045 = vset.pattern.permute.xlu0 0
        %3046 = vperm.xlu0 %3045, %v1710
        %v3047 = vpop.permute.xlu0 %3046
        %3050 = vset.pattern.permute.xlu0 0
        %3051 = vperm.xlu0 %3050, %v1711
        %v3052 = vpop.permute.xlu0 %3051
        %3055 = vset.pattern.permute.xlu0 0
        %3056 = vperm.xlu0 %3055, %v1712
        %v3057 = vpop.permute.xlu0 %3056
        %3060 = vset.pattern.permute.xlu0 0
        %3061 = vperm.xlu0 %3060, %v1713
        %v3062 = vpop.permute.xlu0 %3061
        %3065 = vset.pattern.permute.xlu0 0
        %3066 = vperm.xlu0 %3065, %v1714
        %v3067 = vpop.permute.xlu0 %3066
        %3070 = vset.pattern.permute.xlu0 0
        %3071 = vperm.xlu0 %3070, %v1715
        %v3072 = vpop.permute.xlu0 %3071
        %3075 = vset.pattern.permute.xlu0 0
        %3076 = vperm.xlu0 %3075, %v1716
        %v3077 = vpop.permute.xlu0 %3076
        %3080 = vset.pattern.permute.xlu0 0
        %3081 = vperm.xlu0 %3080, %v1717
        %v3082 = vpop.permute.xlu0 %3081
        %3085 = vset.pattern.permute.xlu0 0
        %3086 = vperm.xlu0 %3085, %v1718
        %v3087 = vpop.permute.xlu0 %3086
        %3090 = vset.pattern.permute.xlu0 0
        %3091 = vperm.xlu0 %3090, %v1719
        %v3092 = vpop.permute.xlu0 %3091
        %3095 = vset.pattern.permute.xlu0 0
        %3096 = vperm.xlu0 %3095, %v1720
        %v3097 = vpop.permute.xlu0 %3096
        %3100 = vset.pattern.permute.xlu0 0
        %3101 = vperm.xlu0 %3100, %v1721
        %v3102 = vpop.permute.xlu0 %3101
        %3105 = vset.pattern.permute.xlu0 0
        %3106 = vperm.xlu0 %3105, %v1722
        %v3107 = vpop.permute.xlu0 %3106
        %3110 = vset.pattern.permute.xlu0 0
        %3111 = vperm.xlu0 %3110, %v1723
        %v3112 = vpop.permute.xlu0 %3111
        %3115 = vset.pattern.permute.xlu0 0
        %3116 = vperm.xlu0 %3115, %v1724
        %v3117 = vpop.permute.xlu0 %3116
        %3120 = vset.pattern.permute.xlu0 0
        %3121 = vperm.xlu0 %3120, %v1725
        %v3122 = vpop.permute.xlu0 %3121
        %3125 = vset.pattern.permute.xlu0 0
        %3126 = vperm.xlu0 %3125, %v1726
        %v3127 = vpop.permute.xlu0 %3126
        %3130 = vset.pattern.permute.xlu0 0
        %3131 = vperm.xlu0 %3130, %v1727
        %v3132 = vpop.permute.xlu0 %3131
        %3135 = vset.pattern.permute.xlu0 0
        %3136 = vperm.xlu0 %3135, %v1728
        %v3137 = vpop.permute.xlu0 %3136
        %3140 = vset.pattern.permute.xlu0 0
        %3141 = vperm.xlu0 %3140, %v1729
        %v3142 = vpop.permute.xlu0 %3141
        %3145 = vset.pattern.permute.xlu0 0
        %3146 = vperm.xlu0 %3145, %v1730
        %v3147 = vpop.permute.xlu0 %3146
        %3150 = vset.pattern.permute.xlu0 0
        %3151 = vperm.xlu0 %3150, %v1731
        %v3152 = vpop.permute.xlu0 %3151
        %3155 = vset.pattern.permute.xlu0 0
        %3156 = vperm.xlu0 %3155, %v1732
        %v3157 = vpop.permute.xlu0 %3156
        %v3159 = vmul.f32 %v2522, %v2200
        %v3160 = vmul.f32 %v2527, %v2202
        %v3161 = vmul.f32 %v2532, %v2205
        %v3162 = vmul.f32 %v2537, %v2207
        %v3163 = vmul.f32 %v2542, %v2210
        %v3164 = vmul.f32 %v2547, %v2212
        %v3165 = vmul.f32 %v2552, %v2215
        %v3166 = vmul.f32 %v2557, %v2217
        %v3167 = vmul.f32 %v2562, %v2220
        %v3168 = vmul.f32 %v2567, %v2222
        %v3169 = vmul.f32 %v2572, %v2225
        %v3170 = vmul.f32 %v2577, %v2227
        %v3171 = vmul.f32 %v2582, %v2230
        %v3172 = vmul.f32 %v2587, %v2232
        %v3173 = vmul.f32 %v2592, %v2235
        %v3174 = vmul.f32 %v2597, %v2237
        %v3175 = vmul.f32 %v2602, %v2240
        %v3176 = vmul.f32 %v2607, %v2242
        %v3177 = vmul.f32 %v2612, %v2245
        %v3178 = vmul.f32 %v2617, %v2247
        %v3179 = vmul.f32 %v2622, %v2250
        %v3180 = vmul.f32 %v2627, %v2252
        %v3181 = vmul.f32 %v2632, %v2255
        %v3182 = vmul.f32 %v2637, %v2257
        %v3183 = vmul.f32 %v2642, %v2260
        %v3184 = vmul.f32 %v2647, %v2262
        %v3185 = vmul.f32 %v2652, %v2265
        %v3186 = vmul.f32 %v2657, %v2267
        %v3187 = vmul.f32 %v2662, %v2270
        %v3188 = vmul.f32 %v2667, %v2272
        %v3189 = vmul.f32 %v2672, %v2275
        %v3190 = vmul.f32 %v2677, %v2277
        %v3191 = vmul.f32 %v2682, %v2280
        %v3192 = vmul.f32 %v2687, %v2282
        %v3193 = vmul.f32 %v2692, %v2285
        %v3194 = vmul.f32 %v2697, %v2287
        %v3195 = vmul.f32 %v2702, %v2290
        %v3196 = vmul.f32 %v2707, %v2292
        %v3197 = vmul.f32 %v2712, %v2295
        %v3198 = vmul.f32 %v2717, %v2297
        %v3199 = vmul.f32 %v2722, %v2300
        %v3200 = vmul.f32 %v2727, %v2302
        %v3201 = vmul.f32 %v2732, %v2305
        %v3202 = vmul.f32 %v2737, %v2307
        %v3203 = vmul.f32 %v2742, %v2310
        %v3204 = vmul.f32 %v2747, %v2312
        %v3205 = vmul.f32 %v2752, %v2315
        %v3206 = vmul.f32 %v2757, %v2317
        %v3207 = vmul.f32 %v2762, %v2320
        %v3208 = vmul.f32 %v2767, %v2322
        %v3209 = vmul.f32 %v2772, %v2325
        %v3210 = vmul.f32 %v2777, %v2327
        %v3211 = vmul.f32 %v2782, %v2330
        %v3212 = vmul.f32 %v2787, %v2332
        %v3213 = vmul.f32 %v2792, %v2335
        %v3214 = vmul.f32 %v2797, %v2337
        %v3215 = vmul.f32 %v2802, %v2340
        %v3216 = vmul.f32 %v2807, %v2342
        %v3217 = vmul.f32 %v2812, %v2345
        %v3218 = vmul.f32 %v2817, %v2347
        %v3219 = vmul.f32 %v2822, %v2350
        %v3220 = vmul.f32 %v2827, %v2352
        %v3221 = vmul.f32 %v2832, %v2355
        %v3222 = vmul.f32 %v2837, %v2357
        %v3223 = vmul.f32 %v2842, %v2360
        %v3224 = vmul.f32 %v2847, %v2362
        %v3225 = vmul.f32 %v2852, %v2365
        %v3226 = vmul.f32 %v2857, %v2367
        %v3227 = vmul.f32 %v2862, %v2370
        %v3228 = vmul.f32 %v2867, %v2372
        %v3229 = vmul.f32 %v2872, %v2375
        %v3230 = vmul.f32 %v2877, %v2377
        %v3231 = vmul.f32 %v2882, %v2380
        %v3232 = vmul.f32 %v2887, %v2382
        %v3233 = vmul.f32 %v2892, %v2385
        %v3234 = vmul.f32 %v2897, %v2387
        %v3235 = vmul.f32 %v2902, %v2390
        %v3236 = vmul.f32 %v2907, %v2392
        %v3237 = vmul.f32 %v2912, %v2395
        %v3238 = vmul.f32 %v2917, %v2397
        %v3239 = vmul.f32 %v2922, %v2400
        %v3240 = vmul.f32 %v2927, %v2402
        %v3241 = vmul.f32 %v2932, %v2405
        %v3242 = vmul.f32 %v2937, %v2407
        %v3243 = vmul.f32 %v2942, %v2410
        %v3244 = vmul.f32 %v2947, %v2412
        %v3245 = vmul.f32 %v2952, %v2415
        %v3246 = vmul.f32 %v2957, %v2417
        %v3247 = vmul.f32 %v2962, %v2420
        %v3248 = vmul.f32 %v2967, %v2422
        %v3249 = vmul.f32 %v2972, %v2425
        %v3250 = vmul.f32 %v2977, %v2427
        %v3251 = vmul.f32 %v2982, %v2430
        %v3252 = vmul.f32 %v2987, %v2432
        %v3253 = vmul.f32 %v2992, %v2435
        %v3254 = vmul.f32 %v2997, %v2437
        %v3255 = vmul.f32 %v3002, %v2440
        %v3256 = vmul.f32 %v3007, %v2442
        %v3257 = vmul.f32 %v3012, %v2445
        %v3258 = vmul.f32 %v3017, %v2447
        %v3259 = vmul.f32 %v3022, %v2450
        %v3260 = vmul.f32 %v3027, %v2452
        %v3261 = vmul.f32 %v3032, %v2455
        %v3262 = vmul.f32 %v3037, %v2457
        %v3263 = vmul.f32 %v3042, %v2460
        %v3264 = vmul.f32 %v3047, %v2462
        %v3265 = vmul.f32 %v3052, %v2465
        %v3266 = vmul.f32 %v3057, %v2467
        %v3267 = vmul.f32 %v3062, %v2470
        %v3268 = vmul.f32 %v3067, %v2472
        %v3269 = vmul.f32 %v3072, %v2475
        %v3270 = vmul.f32 %v3077, %v2477
        %v3271 = vmul.f32 %v3082, %v2480
        %v3272 = vmul.f32 %v3087, %v2482
        %v3273 = vmul.f32 %v3092, %v2485
        %v3274 = vmul.f32 %v3097, %v2487
        %v3275 = vmul.f32 %v3102, %v2490
        %v3276 = vmul.f32 %v3107, %v2492
        %v3277 = vmul.f32 %v3112, %v2495
        %v3278 = vmul.f32 %v3117, %v2497
        %v3279 = vmul.f32 %v3122, %v2500
        %v3280 = vmul.f32 %v3127, %v2502
        %v3281 = vmul.f32 %v3132, %v2505
        %v3282 = vmul.f32 %v3137, %v2507
        %v3283 = vmul.f32 %v3142, %v2510
        %v3284 = vmul.f32 %v3147, %v2512
        %v3285 = vmul.f32 %v3152, %v2515
        %v3286 = vmul.f32 %v3157, %v2517
        %v3287 = vld [vmem:[%s2 + $0x80] sm:$0xf]
        %v3288 = vld [vmem:[%s2 + $0x84] sm:$0xf]
        %v3289 = vld [vmem:[%s2 + $0x88] sm:$0xf]
        %v3290 = vld [vmem:[%s2 + $0x8c] sm:$0xf]
        %v3291 = vld [vmem:[%s2 + $0x90] sm:$0xf]
        %v3292 = vld [vmem:[%s2 + $0x94] sm:$0xf]
        %v3293 = vld [vmem:[%s2 + $0x98] sm:$0xf]
        %v3294 = vld [vmem:[%s2 + $0x9c] sm:$0xf]
        %v3295 = vld [vmem:[%s2 + $0xa0] sm:$0xf]
        %v3296 = vld [vmem:[%s2 + $0xa4] sm:$0xf]
        %v3297 = vld [vmem:[%s2 + $0xa8] sm:$0xf]
        %v3298 = vld [vmem:[%s2 + $0xac] sm:$0xf]
        %v3299 = vld [vmem:[%s2 + $0xb0] sm:$0xf]
        %v3300 = vld [vmem:[%s2 + $0xb4] sm:$0xf]
        %v3301 = vld [vmem:[%s2 + $0xb8] sm:$0xf]
        %v3302 = vld [vmem:[%s2 + $0xbc] sm:$0xf]
        %v3303 = vld [vmem:[%s2 + $0xc0] sm:$0xf]
        %v3304 = vld [vmem:[%s2 + $0xc4] sm:$0xf]
        %v3305 = vld [vmem:[%s2 + $0xc8] sm:$0xf]
        %v3306 = vld [vmem:[%s2 + $0xcc] sm:$0xf]
        %v3307 = vld [vmem:[%s2 + $0xd0] sm:$0xf]
        %v3308 = vld [vmem:[%s2 + $0xd4] sm:$0xf]
        %v3309 = vld [vmem:[%s2 + $0xd8] sm:$0xf]
        %v3310 = vld [vmem:[%s2 + $0xdc] sm:$0xf]
        %v3311 = vld [vmem:[%s2 + $0xe0] sm:$0xf]
        %v3312 = vld [vmem:[%s2 + $0xe4] sm:$0xf]
        %v3313 = vld [vmem:[%s2 + $0xe8] sm:$0xf]
        %v3314 = vld [vmem:[%s2 + $0xec] sm:$0xf]
        %v3315 = vld [vmem:[%s2 + $0xf0] sm:$0xf]
        %v3316 = vld [vmem:[%s2 + $0xf4] sm:$0xf]
        %v3317 = vld [vmem:[%s2 + $0xf8] sm:$0xf]
        %v3318 = vld [vmem:[%s2 + $0xfc] sm:$0xf]
        %v3351 = vunpack.c.l.b16 %v3287
        %v3352 = vunpack.c.l.b16 %v3288
        %v3353 = vunpack.c.l.b16 %v3289
        %v3354 = vunpack.c.l.b16 %v3290
        %v3355 = vunpack.c.l.b16 %v3291
        %v3356 = vunpack.c.l.b16 %v3292
        %v3357 = vunpack.c.l.b16 %v3293
        %v3358 = vunpack.c.l.b16 %v3294
        %v3359 = vunpack.c.l.b16 %v3295
        %v3360 = vunpack.c.l.b16 %v3296
        %v3361 = vunpack.c.l.b16 %v3297
        %v3362 = vunpack.c.l.b16 %v3298
        %v3363 = vunpack.c.l.b16 %v3299
        %v3364 = vunpack.c.l.b16 %v3300
        %v3365 = vunpack.c.l.b16 %v3301
        %v3366 = vunpack.c.l.b16 %v3302
        %v3367 = vunpack.c.l.b16 %v3303
        %v3368 = vunpack.c.l.b16 %v3304
        %v3369 = vunpack.c.l.b16 %v3305
        %v3370 = vunpack.c.l.b16 %v3306
        %v3371 = vunpack.c.l.b16 %v3307
        %v3372 = vunpack.c.l.b16 %v3308
        %v3373 = vunpack.c.l.b16 %v3309
        %v3374 = vunpack.c.l.b16 %v3310
        %v3375 = vunpack.c.l.b16 %v3311
        %v3376 = vunpack.c.l.b16 %v3312
        %v3377 = vunpack.c.l.b16 %v3313
        %v3378 = vunpack.c.l.b16 %v3314
        %v3379 = vunpack.c.l.b16 %v3315
        %v3380 = vunpack.c.l.b16 %v3316
        %v3381 = vunpack.c.l.b16 %v3317
        %v3382 = vunpack.c.l.b16 %v3318
        %v3383 = vpack.c.b16 %v3352, %v3351
        %v3384 = vpack.c.b16 %v3354, %v3353
        %v3385 = vpack.c.b16 %v3356, %v3355
        %v3386 = vpack.c.b16 %v3358, %v3357
        %v3387 = vpack.c.b16 %v3360, %v3359
        %v3388 = vpack.c.b16 %v3362, %v3361
        %v3389 = vpack.c.b16 %v3364, %v3363
        %v3390 = vpack.c.b16 %v3366, %v3365
        %v3391 = vpack.c.b16 %v3368, %v3367
        %v3392 = vpack.c.b16 %v3370, %v3369
        %v3393 = vpack.c.b16 %v3372, %v3371
        %v3394 = vpack.c.b16 %v3374, %v3373
        %v3395 = vpack.c.b16 %v3376, %v3375
        %v3396 = vpack.c.b16 %v3378, %v3377
        %v3397 = vpack.c.b16 %v3380, %v3379
        %v3398 = vpack.c.b16 %v3382, %v3381
        %3415 = vmatpush.bf16.msra.mxu0 %v3390
        %3416 = vmatpush.bf16.msra.mxu0 %v3389
        %3417 = vmatpush.bf16.msra.mxu0 %v3388
        %3418 = vmatpush.bf16.msra.mxu0 %v3387
        %3419 = vmatpush.bf16.msra.mxu0 %v3386
        %3420 = vmatpush.bf16.msra.mxu0 %v3385
        %3421 = vmatpush.bf16.msra.mxu0 %v3384
        %3422 = vmatpush.bf16.msra.mxu0 %v3383
        %3423 = vmatmul.bf16.gmra.mxu0 %v1477
        %v3424 = vpop.f32.mrf.mxu0
        %v3425 = vadd.f32 0.0, %v3424
        %v3426 = vpop.f32.mrf.mxu0
        %v3427 = vadd.f32 0.0, %v3426
        %3428 = vmatmul.bf16.gmra.mxu0 %v1479
        %v3429 = vpop.f32.mrf.mxu0
        %v3430 = vadd.f32 0.0, %v3429
        %v3431 = vpop.f32.mrf.mxu0
        %v3432 = vadd.f32 0.0, %v3431
        %3433 = vmatmul.bf16.gmra.mxu0 %v1481
        %v3434 = vpop.f32.mrf.mxu0
        %v3435 = vadd.f32 0.0, %v3434
        %v3436 = vpop.f32.mrf.mxu0
        %v3437 = vadd.f32 0.0, %v3436
        %3438 = vmatmul.bf16.gmra.mxu0 %v1483
        %v3439 = vpop.f32.mrf.mxu0
        %v3440 = vadd.f32 0.0, %v3439
        %v3441 = vpop.f32.mrf.mxu0
        %v3442 = vadd.f32 0.0, %v3441
        %3443 = vmatmul.bf16.gmra.mxu0 %v1485
        %v3444 = vpop.f32.mrf.mxu0
        %v3445 = vadd.f32 0.0, %v3444
        %v3446 = vpop.f32.mrf.mxu0
        %v3447 = vadd.f32 0.0, %v3446
        %3448 = vmatmul.bf16.gmra.mxu0 %v1487
        %v3449 = vpop.f32.mrf.mxu0
        %v3450 = vadd.f32 0.0, %v3449
        %v3451 = vpop.f32.mrf.mxu0
        %v3452 = vadd.f32 0.0, %v3451
        %3453 = vmatmul.bf16.gmra.mxu0 %v1489
        %v3454 = vpop.f32.mrf.mxu0
        %v3455 = vadd.f32 0.0, %v3454
        %v3456 = vpop.f32.mrf.mxu0
        %v3457 = vadd.f32 0.0, %v3456
        %3458 = vmatmul.bf16.gmra.mxu0 %v1491
        %v3459 = vpop.f32.mrf.mxu0
        %v3460 = vadd.f32 0.0, %v3459
        %v3461 = vpop.f32.mrf.mxu0
        %v3462 = vadd.f32 0.0, %v3461
        %3463 = vmatmul.bf16.gmra.mxu0 %v1493
        %v3464 = vpop.f32.mrf.mxu0
        %v3465 = vadd.f32 0.0, %v3464
        %v3466 = vpop.f32.mrf.mxu0
        %v3467 = vadd.f32 0.0, %v3466
        %3468 = vmatmul.bf16.gmra.mxu0 %v1495
        %v3469 = vpop.f32.mrf.mxu0
        %v3470 = vadd.f32 0.0, %v3469
        %v3471 = vpop.f32.mrf.mxu0
        %v3472 = vadd.f32 0.0, %v3471
        %3473 = vmatmul.bf16.gmra.mxu0 %v1497
        %v3474 = vpop.f32.mrf.mxu0
        %v3475 = vadd.f32 0.0, %v3474
        %v3476 = vpop.f32.mrf.mxu0
        %v3477 = vadd.f32 0.0, %v3476
        %3478 = vmatmul.bf16.gmra.mxu0 %v1499
        %v3479 = vpop.f32.mrf.mxu0
        %v3480 = vadd.f32 0.0, %v3479
        %v3481 = vpop.f32.mrf.mxu0
        %v3482 = vadd.f32 0.0, %v3481
        %3483 = vmatmul.bf16.gmra.mxu0 %v1501
        %v3484 = vpop.f32.mrf.mxu0
        %v3485 = vadd.f32 0.0, %v3484
        %v3486 = vpop.f32.mrf.mxu0
        %v3487 = vadd.f32 0.0, %v3486
        %3488 = vmatmul.bf16.gmra.mxu0 %v1503
        %v3489 = vpop.f32.mrf.mxu0
        %v3490 = vadd.f32 0.0, %v3489
        %v3491 = vpop.f32.mrf.mxu0
        %v3492 = vadd.f32 0.0, %v3491
        %3493 = vmatmul.bf16.gmra.mxu0 %v1505
        %v3494 = vpop.f32.mrf.mxu0
        %v3495 = vadd.f32 0.0, %v3494
        %v3496 = vpop.f32.mrf.mxu0
        %v3497 = vadd.f32 0.0, %v3496
        %3498 = vmatmul.bf16.gmra.mxu0 %v1507
        %v3499 = vpop.f32.mrf.mxu0
        %v3500 = vadd.f32 0.0, %v3499
        %v3501 = vpop.f32.mrf.mxu0
        %v3502 = vadd.f32 0.0, %v3501
        %3503 = vmatmul.bf16.gmra.mxu0 %v1509
        %v3504 = vpop.f32.mrf.mxu0
        %v3505 = vadd.f32 0.0, %v3504
        %v3506 = vpop.f32.mrf.mxu0
        %v3507 = vadd.f32 0.0, %v3506
        %3508 = vmatmul.bf16.gmra.mxu0 %v1511
        %v3509 = vpop.f32.mrf.mxu0
        %v3510 = vadd.f32 0.0, %v3509
        %v3511 = vpop.f32.mrf.mxu0
        %v3512 = vadd.f32 0.0, %v3511
        %3513 = vmatmul.bf16.gmra.mxu0 %v1513
        %v3514 = vpop.f32.mrf.mxu0
        %v3515 = vadd.f32 0.0, %v3514
        %v3516 = vpop.f32.mrf.mxu0
        %v3517 = vadd.f32 0.0, %v3516
        %3518 = vmatmul.bf16.gmra.mxu0 %v1515
        %v3519 = vpop.f32.mrf.mxu0
        %v3520 = vadd.f32 0.0, %v3519
        %v3521 = vpop.f32.mrf.mxu0
        %v3522 = vadd.f32 0.0, %v3521
        %3523 = vmatmul.bf16.gmra.mxu0 %v1517
        %v3524 = vpop.f32.mrf.mxu0
        %v3525 = vadd.f32 0.0, %v3524
        %v3526 = vpop.f32.mrf.mxu0
        %v3527 = vadd.f32 0.0, %v3526
        %3528 = vmatmul.bf16.gmra.mxu0 %v1519
        %v3529 = vpop.f32.mrf.mxu0
        %v3530 = vadd.f32 0.0, %v3529
        %v3531 = vpop.f32.mrf.mxu0
        %v3532 = vadd.f32 0.0, %v3531
        %3533 = vmatmul.bf16.gmra.mxu0 %v1521
        %v3534 = vpop.f32.mrf.mxu0
        %v3535 = vadd.f32 0.0, %v3534
        %v3536 = vpop.f32.mrf.mxu0
        %v3537 = vadd.f32 0.0, %v3536
        %3538 = vmatmul.bf16.gmra.mxu0 %v1523
        %v3539 = vpop.f32.mrf.mxu0
        %v3540 = vadd.f32 0.0, %v3539
        %v3541 = vpop.f32.mrf.mxu0
        %v3542 = vadd.f32 0.0, %v3541
        %3543 = vmatmul.bf16.gmra.mxu0 %v1525
        %v3544 = vpop.f32.mrf.mxu0
        %v3545 = vadd.f32 0.0, %v3544
        %v3546 = vpop.f32.mrf.mxu0
        %v3547 = vadd.f32 0.0, %v3546
        %3548 = vmatmul.bf16.gmra.mxu0 %v1527
        %v3549 = vpop.f32.mrf.mxu0
        %v3550 = vadd.f32 0.0, %v3549
        %v3551 = vpop.f32.mrf.mxu0
        %v3552 = vadd.f32 0.0, %v3551
        %3553 = vmatmul.bf16.gmra.mxu0 %v1529
        %v3554 = vpop.f32.mrf.mxu0
        %v3555 = vadd.f32 0.0, %v3554
        %v3556 = vpop.f32.mrf.mxu0
        %v3557 = vadd.f32 0.0, %v3556
        %3558 = vmatmul.bf16.gmra.mxu0 %v1531
        %v3559 = vpop.f32.mrf.mxu0
        %v3560 = vadd.f32 0.0, %v3559
        %v3561 = vpop.f32.mrf.mxu0
        %v3562 = vadd.f32 0.0, %v3561
        %3563 = vmatmul.bf16.gmra.mxu0 %v1533
        %v3564 = vpop.f32.mrf.mxu0
        %v3565 = vadd.f32 0.0, %v3564
        %v3566 = vpop.f32.mrf.mxu0
        %v3567 = vadd.f32 0.0, %v3566
        %3568 = vmatmul.bf16.gmra.mxu0 %v1535
        %v3569 = vpop.f32.mrf.mxu0
        %v3570 = vadd.f32 0.0, %v3569
        %v3571 = vpop.f32.mrf.mxu0
        %v3572 = vadd.f32 0.0, %v3571
        %3573 = vmatmul.bf16.gmra.mxu0 %v1537
        %v3574 = vpop.f32.mrf.mxu0
        %v3575 = vadd.f32 0.0, %v3574
        %v3576 = vpop.f32.mrf.mxu0
        %v3577 = vadd.f32 0.0, %v3576
        %3578 = vmatmul.bf16.gmra.mxu0 %v1539
        %v3579 = vpop.f32.mrf.mxu0
        %v3580 = vadd.f32 0.0, %v3579
        %v3581 = vpop.f32.mrf.mxu0
        %v3582 = vadd.f32 0.0, %v3581
        %3583 = vmatmul.bf16.gmra.mxu0 %v1541
        %v3584 = vpop.f32.mrf.mxu0
        %v3585 = vadd.f32 0.0, %v3584
        %v3586 = vpop.f32.mrf.mxu0
        %v3587 = vadd.f32 0.0, %v3586
        %3588 = vmatmul.bf16.gmra.mxu0 %v1543
        %v3589 = vpop.f32.mrf.mxu0
        %v3590 = vadd.f32 0.0, %v3589
        %v3591 = vpop.f32.mrf.mxu0
        %v3592 = vadd.f32 0.0, %v3591
        %3593 = vmatmul.bf16.gmra.mxu0 %v1545
        %v3594 = vpop.f32.mrf.mxu0
        %v3595 = vadd.f32 0.0, %v3594
        %v3596 = vpop.f32.mrf.mxu0
        %v3597 = vadd.f32 0.0, %v3596
        %3598 = vmatmul.bf16.gmra.mxu0 %v1547
        %v3599 = vpop.f32.mrf.mxu0
        %v3600 = vadd.f32 0.0, %v3599
        %v3601 = vpop.f32.mrf.mxu0
        %v3602 = vadd.f32 0.0, %v3601
        %3603 = vmatmul.bf16.gmra.mxu0 %v1549
        %v3604 = vpop.f32.mrf.mxu0
        %v3605 = vadd.f32 0.0, %v3604
        %v3606 = vpop.f32.mrf.mxu0
        %v3607 = vadd.f32 0.0, %v3606
        %3608 = vmatmul.bf16.gmra.mxu0 %v1551
        %v3609 = vpop.f32.mrf.mxu0
        %v3610 = vadd.f32 0.0, %v3609
        %v3611 = vpop.f32.mrf.mxu0
        %v3612 = vadd.f32 0.0, %v3611
        %3613 = vmatmul.bf16.gmra.mxu0 %v1553
        %v3614 = vpop.f32.mrf.mxu0
        %v3615 = vadd.f32 0.0, %v3614
        %v3616 = vpop.f32.mrf.mxu0
        %v3617 = vadd.f32 0.0, %v3616
        %3618 = vmatmul.bf16.gmra.mxu0 %v1555
        %v3619 = vpop.f32.mrf.mxu0
        %v3620 = vadd.f32 0.0, %v3619
        %v3621 = vpop.f32.mrf.mxu0
        %v3622 = vadd.f32 0.0, %v3621
        %3623 = vmatmul.bf16.gmra.mxu0 %v1557
        %v3624 = vpop.f32.mrf.mxu0
        %v3625 = vadd.f32 0.0, %v3624
        %v3626 = vpop.f32.mrf.mxu0
        %v3627 = vadd.f32 0.0, %v3626
        %3628 = vmatmul.bf16.gmra.mxu0 %v1559
        %v3629 = vpop.f32.mrf.mxu0
        %v3630 = vadd.f32 0.0, %v3629
        %v3631 = vpop.f32.mrf.mxu0
        %v3632 = vadd.f32 0.0, %v3631
        %3633 = vmatmul.bf16.gmra.mxu0 %v1561
        %v3634 = vpop.f32.mrf.mxu0
        %v3635 = vadd.f32 0.0, %v3634
        %v3636 = vpop.f32.mrf.mxu0
        %v3637 = vadd.f32 0.0, %v3636
        %3638 = vmatmul.bf16.gmra.mxu0 %v1563
        %v3639 = vpop.f32.mrf.mxu0
        %v3640 = vadd.f32 0.0, %v3639
        %v3641 = vpop.f32.mrf.mxu0
        %v3642 = vadd.f32 0.0, %v3641
        %3643 = vmatmul.bf16.gmra.mxu0 %v1565
        %v3644 = vpop.f32.mrf.mxu0
        %v3645 = vadd.f32 0.0, %v3644
        %v3646 = vpop.f32.mrf.mxu0
        %v3647 = vadd.f32 0.0, %v3646
        %3648 = vmatmul.bf16.gmra.mxu0 %v1567
        %v3649 = vpop.f32.mrf.mxu0
        %v3650 = vadd.f32 0.0, %v3649
        %v3651 = vpop.f32.mrf.mxu0
        %v3652 = vadd.f32 0.0, %v3651
        %3653 = vmatmul.bf16.gmra.mxu0 %v1569
        %v3654 = vpop.f32.mrf.mxu0
        %v3655 = vadd.f32 0.0, %v3654
        %v3656 = vpop.f32.mrf.mxu0
        %v3657 = vadd.f32 0.0, %v3656
        %3658 = vmatmul.bf16.gmra.mxu0 %v1571
        %v3659 = vpop.f32.mrf.mxu0
        %v3660 = vadd.f32 0.0, %v3659
        %v3661 = vpop.f32.mrf.mxu0
        %v3662 = vadd.f32 0.0, %v3661
        %3663 = vmatmul.bf16.gmra.mxu0 %v1573
        %v3664 = vpop.f32.mrf.mxu0
        %v3665 = vadd.f32 0.0, %v3664
        %v3666 = vpop.f32.mrf.mxu0
        %v3667 = vadd.f32 0.0, %v3666
        %3668 = vmatmul.bf16.gmra.mxu0 %v1575
        %v3669 = vpop.f32.mrf.mxu0
        %v3670 = vadd.f32 0.0, %v3669
        %v3671 = vpop.f32.mrf.mxu0
        %v3672 = vadd.f32 0.0, %v3671
        %3673 = vmatmul.bf16.gmra.mxu0 %v1577
        %v3674 = vpop.f32.mrf.mxu0
        %v3675 = vadd.f32 0.0, %v3674
        %v3676 = vpop.f32.mrf.mxu0
        %v3677 = vadd.f32 0.0, %v3676
        %3678 = vmatmul.bf16.gmra.mxu0 %v1579
        %v3679 = vpop.f32.mrf.mxu0
        %v3680 = vadd.f32 0.0, %v3679
        %v3681 = vpop.f32.mrf.mxu0
        %v3682 = vadd.f32 0.0, %v3681
        %3683 = vmatmul.bf16.gmra.mxu0 %v1581
        %v3684 = vpop.f32.mrf.mxu0
        %v3685 = vadd.f32 0.0, %v3684
        %v3686 = vpop.f32.mrf.mxu0
        %v3687 = vadd.f32 0.0, %v3686
        %3688 = vmatmul.bf16.gmra.mxu0 %v1583
        %v3689 = vpop.f32.mrf.mxu0
        %v3690 = vadd.f32 0.0, %v3689
        %v3691 = vpop.f32.mrf.mxu0
        %v3692 = vadd.f32 0.0, %v3691
        %3693 = vmatmul.bf16.gmra.mxu0 %v1585
        %v3694 = vpop.f32.mrf.mxu0
        %v3695 = vadd.f32 0.0, %v3694
        %v3696 = vpop.f32.mrf.mxu0
        %v3697 = vadd.f32 0.0, %v3696
        %3698 = vmatmul.bf16.gmra.mxu0 %v1587
        %v3699 = vpop.f32.mrf.mxu0
        %v3700 = vadd.f32 0.0, %v3699
        %v3701 = vpop.f32.mrf.mxu0
        %v3702 = vadd.f32 0.0, %v3701
        %3703 = vmatmul.bf16.gmra.mxu0 %v1589
        %v3704 = vpop.f32.mrf.mxu0
        %v3705 = vadd.f32 0.0, %v3704
        %v3706 = vpop.f32.mrf.mxu0
        %v3707 = vadd.f32 0.0, %v3706
        %3708 = vmatmul.bf16.gmra.mxu0 %v1591
        %v3709 = vpop.f32.mrf.mxu0
        %v3710 = vadd.f32 0.0, %v3709
        %v3711 = vpop.f32.mrf.mxu0
        %v3712 = vadd.f32 0.0, %v3711
        %3713 = vmatmul.bf16.gmra.mxu0 %v1593
        %v3714 = vpop.f32.mrf.mxu0
        %v3715 = vadd.f32 0.0, %v3714
        %v3716 = vpop.f32.mrf.mxu0
        %v3717 = vadd.f32 0.0, %v3716
        %3718 = vmatmul.bf16.gmra.mxu0 %v1595
        %v3719 = vpop.f32.mrf.mxu0
        %v3720 = vadd.f32 0.0, %v3719
        %v3721 = vpop.f32.mrf.mxu0
        %v3722 = vadd.f32 0.0, %v3721
        %3723 = vmatmul.bf16.gmra.mxu0 %v1597
        %v3724 = vpop.f32.mrf.mxu0
        %v3725 = vadd.f32 0.0, %v3724
        %v3726 = vpop.f32.mrf.mxu0
        %v3727 = vadd.f32 0.0, %v3726
        %3728 = vmatmul.bf16.gmra.mxu0 %v1599
        %v3729 = vpop.f32.mrf.mxu0
        %v3730 = vadd.f32 0.0, %v3729
        %v3731 = vpop.f32.mrf.mxu0
        %v3732 = vadd.f32 0.0, %v3731
        %3733 = vmatmul.bf16.gmra.mxu0 %v1601
        %v3734 = vpop.f32.mrf.mxu0
        %v3735 = vadd.f32 0.0, %v3734
        %v3736 = vpop.f32.mrf.mxu0
        %v3737 = vadd.f32 0.0, %v3736
        %3738 = vmatmul.bf16.gmra.mxu0 %v1603
        %v3739 = vpop.f32.mrf.mxu0
        %v3740 = vadd.f32 0.0, %v3739
        %v3741 = vpop.f32.mrf.mxu0
        %v3742 = vadd.f32 0.0, %v3741
        %3743 = vdwg.mxu0
        %3744 = vmatpush.bf16.msra.mxu0 %v3398
        %3745 = vmatpush.bf16.msra.mxu0 %v3397
        %3746 = vmatpush.bf16.msra.mxu0 %v3396
        %3747 = vmatpush.bf16.msra.mxu0 %v3395
        %3748 = vmatpush.bf16.msra.mxu0 %v3394
        %3749 = vmatpush.bf16.msra.mxu0 %v3393
        %3750 = vmatpush.bf16.msra.mxu0 %v3392
        %3751 = vmatpush.bf16.msra.mxu0 %v3391
        %3752 = vmatmul.bf16.gmra.mxu0 %v1478
        %v3753 = vpop.f32.mrf.mxu0
        %v3754 = vadd.f32 %v3425, %v3753
        %v3755 = vpop.f32.mrf.mxu0
        %v3756 = vadd.f32 %v3427, %v3755
        %3757 = vmatmul.bf16.gmra.mxu0 %v1480
        %v3758 = vpop.f32.mrf.mxu0
        %v3759 = vadd.f32 %v3430, %v3758
        %v3760 = vpop.f32.mrf.mxu0
        %v3761 = vadd.f32 %v3432, %v3760
        %3762 = vmatmul.bf16.gmra.mxu0 %v1482
        %v3763 = vpop.f32.mrf.mxu0
        %v3764 = vadd.f32 %v3435, %v3763
        %v3765 = vpop.f32.mrf.mxu0
        %v3766 = vadd.f32 %v3437, %v3765
        %3767 = vmatmul.bf16.gmra.mxu0 %v1484
        %v3768 = vpop.f32.mrf.mxu0
        %v3769 = vadd.f32 %v3440, %v3768
        %v3770 = vpop.f32.mrf.mxu0
        %v3771 = vadd.f32 %v3442, %v3770
        %3772 = vmatmul.bf16.gmra.mxu0 %v1486
        %v3773 = vpop.f32.mrf.mxu0
        %v3774 = vadd.f32 %v3445, %v3773
        %v3775 = vpop.f32.mrf.mxu0
        %v3776 = vadd.f32 %v3447, %v3775
        %3777 = vmatmul.bf16.gmra.mxu0 %v1488
        %v3778 = vpop.f32.mrf.mxu0
        %v3779 = vadd.f32 %v3450, %v3778
        %v3780 = vpop.f32.mrf.mxu0
        %v3781 = vadd.f32 %v3452, %v3780
        %3782 = vmatmul.bf16.gmra.mxu0 %v1490
        %v3783 = vpop.f32.mrf.mxu0
        %v3784 = vadd.f32 %v3455, %v3783
        %v3785 = vpop.f32.mrf.mxu0
        %v3786 = vadd.f32 %v3457, %v3785
        %3787 = vmatmul.bf16.gmra.mxu0 %v1492
        %v3788 = vpop.f32.mrf.mxu0
        %v3789 = vadd.f32 %v3460, %v3788
        %v3790 = vpop.f32.mrf.mxu0
        %v3791 = vadd.f32 %v3462, %v3790
        %3792 = vmatmul.bf16.gmra.mxu0 %v1494
        %v3793 = vpop.f32.mrf.mxu0
        %v3794 = vadd.f32 %v3465, %v3793
        %v3795 = vpop.f32.mrf.mxu0
        %v3796 = vadd.f32 %v3467, %v3795
        %3797 = vmatmul.bf16.gmra.mxu0 %v1496
        %v3798 = vpop.f32.mrf.mxu0
        %v3799 = vadd.f32 %v3470, %v3798
        %v3800 = vpop.f32.mrf.mxu0
        %v3801 = vadd.f32 %v3472, %v3800
        %3802 = vmatmul.bf16.gmra.mxu0 %v1498
        %v3803 = vpop.f32.mrf.mxu0
        %v3804 = vadd.f32 %v3475, %v3803
        %v3805 = vpop.f32.mrf.mxu0
        %v3806 = vadd.f32 %v3477, %v3805
        %3807 = vmatmul.bf16.gmra.mxu0 %v1500
        %v3808 = vpop.f32.mrf.mxu0
        %v3809 = vadd.f32 %v3480, %v3808
        %v3810 = vpop.f32.mrf.mxu0
        %v3811 = vadd.f32 %v3482, %v3810
        %3812 = vmatmul.bf16.gmra.mxu0 %v1502
        %v3813 = vpop.f32.mrf.mxu0
        %v3814 = vadd.f32 %v3485, %v3813
        %v3815 = vpop.f32.mrf.mxu0
        %v3816 = vadd.f32 %v3487, %v3815
        %3817 = vmatmul.bf16.gmra.mxu0 %v1504
        %v3818 = vpop.f32.mrf.mxu0
        %v3819 = vadd.f32 %v3490, %v3818
        %v3820 = vpop.f32.mrf.mxu0
        %v3821 = vadd.f32 %v3492, %v3820
        %3822 = vmatmul.bf16.gmra.mxu0 %v1506
        %v3823 = vpop.f32.mrf.mxu0
        %v3824 = vadd.f32 %v3495, %v3823
        %v3825 = vpop.f32.mrf.mxu0
        %v3826 = vadd.f32 %v3497, %v3825
        %3827 = vmatmul.bf16.gmra.mxu0 %v1508
        %v3828 = vpop.f32.mrf.mxu0
        %v3829 = vadd.f32 %v3500, %v3828
        %v3830 = vpop.f32.mrf.mxu0
        %v3831 = vadd.f32 %v3502, %v3830
        %3832 = vmatmul.bf16.gmra.mxu0 %v1510
        %v3833 = vpop.f32.mrf.mxu0
        %v3834 = vadd.f32 %v3505, %v3833
        %v3835 = vpop.f32.mrf.mxu0
        %v3836 = vadd.f32 %v3507, %v3835
        %3837 = vmatmul.bf16.gmra.mxu0 %v1512
        %v3838 = vpop.f32.mrf.mxu0
        %v3839 = vadd.f32 %v3510, %v3838
        %v3840 = vpop.f32.mrf.mxu0
        %v3841 = vadd.f32 %v3512, %v3840
        %3842 = vmatmul.bf16.gmra.mxu0 %v1514
        %v3843 = vpop.f32.mrf.mxu0
        %v3844 = vadd.f32 %v3515, %v3843
        %v3845 = vpop.f32.mrf.mxu0
        %v3846 = vadd.f32 %v3517, %v3845
        %3847 = vmatmul.bf16.gmra.mxu0 %v1516
        %v3848 = vpop.f32.mrf.mxu0
        %v3849 = vadd.f32 %v3520, %v3848
        %v3850 = vpop.f32.mrf.mxu0
        %v3851 = vadd.f32 %v3522, %v3850
        %3852 = vmatmul.bf16.gmra.mxu0 %v1518
        %v3853 = vpop.f32.mrf.mxu0
        %v3854 = vadd.f32 %v3525, %v3853
        %v3855 = vpop.f32.mrf.mxu0
        %v3856 = vadd.f32 %v3527, %v3855
        %3857 = vmatmul.bf16.gmra.mxu0 %v1520
        %v3858 = vpop.f32.mrf.mxu0
        %v3859 = vadd.f32 %v3530, %v3858
        %v3860 = vpop.f32.mrf.mxu0
        %v3861 = vadd.f32 %v3532, %v3860
        %3862 = vmatmul.bf16.gmra.mxu0 %v1522
        %v3863 = vpop.f32.mrf.mxu0
        %v3864 = vadd.f32 %v3535, %v3863
        %v3865 = vpop.f32.mrf.mxu0
        %v3866 = vadd.f32 %v3537, %v3865
        %3867 = vmatmul.bf16.gmra.mxu0 %v1524
        %v3868 = vpop.f32.mrf.mxu0
        %v3869 = vadd.f32 %v3540, %v3868
        %v3870 = vpop.f32.mrf.mxu0
        %v3871 = vadd.f32 %v3542, %v3870
        %3872 = vmatmul.bf16.gmra.mxu0 %v1526
        %v3873 = vpop.f32.mrf.mxu0
        %v3874 = vadd.f32 %v3545, %v3873
        %v3875 = vpop.f32.mrf.mxu0
        %v3876 = vadd.f32 %v3547, %v3875
        %3877 = vmatmul.bf16.gmra.mxu0 %v1528
        %v3878 = vpop.f32.mrf.mxu0
        %v3879 = vadd.f32 %v3550, %v3878
        %v3880 = vpop.f32.mrf.mxu0
        %v3881 = vadd.f32 %v3552, %v3880
        %3882 = vmatmul.bf16.gmra.mxu0 %v1530
        %v3883 = vpop.f32.mrf.mxu0
        %v3884 = vadd.f32 %v3555, %v3883
        %v3885 = vpop.f32.mrf.mxu0
        %v3886 = vadd.f32 %v3557, %v3885
        %3887 = vmatmul.bf16.gmra.mxu0 %v1532
        %v3888 = vpop.f32.mrf.mxu0
        %v3889 = vadd.f32 %v3560, %v3888
        %v3890 = vpop.f32.mrf.mxu0
        %v3891 = vadd.f32 %v3562, %v3890
        %3892 = vmatmul.bf16.gmra.mxu0 %v1534
        %v3893 = vpop.f32.mrf.mxu0
        %v3894 = vadd.f32 %v3565, %v3893
        %v3895 = vpop.f32.mrf.mxu0
        %v3896 = vadd.f32 %v3567, %v3895
        %3897 = vmatmul.bf16.gmra.mxu0 %v1536
        %v3898 = vpop.f32.mrf.mxu0
        %v3899 = vadd.f32 %v3570, %v3898
        %v3900 = vpop.f32.mrf.mxu0
        %v3901 = vadd.f32 %v3572, %v3900
        %3902 = vmatmul.bf16.gmra.mxu0 %v1538
        %v3903 = vpop.f32.mrf.mxu0
        %v3904 = vadd.f32 %v3575, %v3903
        %v3905 = vpop.f32.mrf.mxu0
        %v3906 = vadd.f32 %v3577, %v3905
        %3907 = vmatmul.bf16.gmra.mxu0 %v1540
        %v3908 = vpop.f32.mrf.mxu0
        %v3909 = vadd.f32 %v3580, %v3908
        %v3910 = vpop.f32.mrf.mxu0
        %v3911 = vadd.f32 %v3582, %v3910
        %3912 = vmatmul.bf16.gmra.mxu0 %v1542
        %v3913 = vpop.f32.mrf.mxu0
        %v3914 = vadd.f32 %v3585, %v3913
        %v3915 = vpop.f32.mrf.mxu0
        %v3916 = vadd.f32 %v3587, %v3915
        %3917 = vmatmul.bf16.gmra.mxu0 %v1544
        %v3918 = vpop.f32.mrf.mxu0
        %v3919 = vadd.f32 %v3590, %v3918
        %v3920 = vpop.f32.mrf.mxu0
        %v3921 = vadd.f32 %v3592, %v3920
        %3922 = vmatmul.bf16.gmra.mxu0 %v1546
        %v3923 = vpop.f32.mrf.mxu0
        %v3924 = vadd.f32 %v3595, %v3923
        %v3925 = vpop.f32.mrf.mxu0
        %v3926 = vadd.f32 %v3597, %v3925
        %3927 = vmatmul.bf16.gmra.mxu0 %v1548
        %v3928 = vpop.f32.mrf.mxu0
        %v3929 = vadd.f32 %v3600, %v3928
        %v3930 = vpop.f32.mrf.mxu0
        %v3931 = vadd.f32 %v3602, %v3930
        %3932 = vmatmul.bf16.gmra.mxu0 %v1550
        %v3933 = vpop.f32.mrf.mxu0
        %v3934 = vadd.f32 %v3605, %v3933
        %v3935 = vpop.f32.mrf.mxu0
        %v3936 = vadd.f32 %v3607, %v3935
        %3937 = vmatmul.bf16.gmra.mxu0 %v1552
        %v3938 = vpop.f32.mrf.mxu0
        %v3939 = vadd.f32 %v3610, %v3938
        %v3940 = vpop.f32.mrf.mxu0
        %v3941 = vadd.f32 %v3612, %v3940
        %3942 = vmatmul.bf16.gmra.mxu0 %v1554
        %v3943 = vpop.f32.mrf.mxu0
        %v3944 = vadd.f32 %v3615, %v3943
        %v3945 = vpop.f32.mrf.mxu0
        %v3946 = vadd.f32 %v3617, %v3945
        %3947 = vmatmul.bf16.gmra.mxu0 %v1556
        %v3948 = vpop.f32.mrf.mxu0
        %v3949 = vadd.f32 %v3620, %v3948
        %v3950 = vpop.f32.mrf.mxu0
        %v3951 = vadd.f32 %v3622, %v3950
        %3952 = vmatmul.bf16.gmra.mxu0 %v1558
        %v3953 = vpop.f32.mrf.mxu0
        %v3954 = vadd.f32 %v3625, %v3953
        %v3955 = vpop.f32.mrf.mxu0
        %v3956 = vadd.f32 %v3627, %v3955
        %3957 = vmatmul.bf16.gmra.mxu0 %v1560
        %v3958 = vpop.f32.mrf.mxu0
        %v3959 = vadd.f32 %v3630, %v3958
        %v3960 = vpop.f32.mrf.mxu0
        %v3961 = vadd.f32 %v3632, %v3960
        %3962 = vmatmul.bf16.gmra.mxu0 %v1562
        %v3963 = vpop.f32.mrf.mxu0
        %v3964 = vadd.f32 %v3635, %v3963
        %v3965 = vpop.f32.mrf.mxu0
        %v3966 = vadd.f32 %v3637, %v3965
        %3967 = vmatmul.bf16.gmra.mxu0 %v1564
        %v3968 = vpop.f32.mrf.mxu0
        %v3969 = vadd.f32 %v3640, %v3968
        %v3970 = vpop.f32.mrf.mxu0
        %v3971 = vadd.f32 %v3642, %v3970
        %3972 = vmatmul.bf16.gmra.mxu0 %v1566
        %v3973 = vpop.f32.mrf.mxu0
        %v3974 = vadd.f32 %v3645, %v3973
        %v3975 = vpop.f32.mrf.mxu0
        %v3976 = vadd.f32 %v3647, %v3975
        %3977 = vmatmul.bf16.gmra.mxu0 %v1568
        %v3978 = vpop.f32.mrf.mxu0
        %v3979 = vadd.f32 %v3650, %v3978
        %v3980 = vpop.f32.mrf.mxu0
        %v3981 = vadd.f32 %v3652, %v3980
        %3982 = vmatmul.bf16.gmra.mxu0 %v1570
        %v3983 = vpop.f32.mrf.mxu0
        %v3984 = vadd.f32 %v3655, %v3983
        %v3985 = vpop.f32.mrf.mxu0
        %v3986 = vadd.f32 %v3657, %v3985
        %3987 = vmatmul.bf16.gmra.mxu0 %v1572
        %v3988 = vpop.f32.mrf.mxu0
        %v3989 = vadd.f32 %v3660, %v3988
        %v3990 = vpop.f32.mrf.mxu0
        %v3991 = vadd.f32 %v3662, %v3990
        %3992 = vmatmul.bf16.gmra.mxu0 %v1574
        %v3993 = vpop.f32.mrf.mxu0
        %v3994 = vadd.f32 %v3665, %v3993
        %v3995 = vpop.f32.mrf.mxu0
        %v3996 = vadd.f32 %v3667, %v3995
        %3997 = vmatmul.bf16.gmra.mxu0 %v1576
        %v3998 = vpop.f32.mrf.mxu0
        %v3999 = vadd.f32 %v3670, %v3998
        %v4000 = vpop.f32.mrf.mxu0
        %v4001 = vadd.f32 %v3672, %v4000
        %4002 = vmatmul.bf16.gmra.mxu0 %v1578
        %v4003 = vpop.f32.mrf.mxu0
        %v4004 = vadd.f32 %v3675, %v4003
        %v4005 = vpop.f32.mrf.mxu0
        %v4006 = vadd.f32 %v3677, %v4005
        %4007 = vmatmul.bf16.gmra.mxu0 %v1580
        %v4008 = vpop.f32.mrf.mxu0
        %v4009 = vadd.f32 %v3680, %v4008
        %v4010 = vpop.f32.mrf.mxu0
        %v4011 = vadd.f32 %v3682, %v4010
        %4012 = vmatmul.bf16.gmra.mxu0 %v1582
        %v4013 = vpop.f32.mrf.mxu0
        %v4014 = vadd.f32 %v3685, %v4013
        %v4015 = vpop.f32.mrf.mxu0
        %v4016 = vadd.f32 %v3687, %v4015
        %4017 = vmatmul.bf16.gmra.mxu0 %v1584
        %v4018 = vpop.f32.mrf.mxu0
        %v4019 = vadd.f32 %v3690, %v4018
        %v4020 = vpop.f32.mrf.mxu0
        %v4021 = vadd.f32 %v3692, %v4020
        %4022 = vmatmul.bf16.gmra.mxu0 %v1586
        %v4023 = vpop.f32.mrf.mxu0
        %v4024 = vadd.f32 %v3695, %v4023
        %v4025 = vpop.f32.mrf.mxu0
        %v4026 = vadd.f32 %v3697, %v4025
        %4027 = vmatmul.bf16.gmra.mxu0 %v1588
        %v4028 = vpop.f32.mrf.mxu0
        %v4029 = vadd.f32 %v3700, %v4028
        %v4030 = vpop.f32.mrf.mxu0
        %v4031 = vadd.f32 %v3702, %v4030
        %4032 = vmatmul.bf16.gmra.mxu0 %v1590
        %v4033 = vpop.f32.mrf.mxu0
        %v4034 = vadd.f32 %v3705, %v4033
        %v4035 = vpop.f32.mrf.mxu0
        %v4036 = vadd.f32 %v3707, %v4035
        %4037 = vmatmul.bf16.gmra.mxu0 %v1592
        %v4038 = vpop.f32.mrf.mxu0
        %v4039 = vadd.f32 %v3710, %v4038
        %v4040 = vpop.f32.mrf.mxu0
        %v4041 = vadd.f32 %v3712, %v4040
        %4042 = vmatmul.bf16.gmra.mxu0 %v1594
        %v4043 = vpop.f32.mrf.mxu0
        %v4044 = vadd.f32 %v3715, %v4043
        %v4045 = vpop.f32.mrf.mxu0
        %v4046 = vadd.f32 %v3717, %v4045
        %4047 = vmatmul.bf16.gmra.mxu0 %v1596
        %v4048 = vpop.f32.mrf.mxu0
        %v4049 = vadd.f32 %v3720, %v4048
        %v4050 = vpop.f32.mrf.mxu0
        %v4051 = vadd.f32 %v3722, %v4050
        %4052 = vmatmul.bf16.gmra.mxu0 %v1598
        %v4053 = vpop.f32.mrf.mxu0
        %v4054 = vadd.f32 %v3725, %v4053
        %v4055 = vpop.f32.mrf.mxu0
        %v4056 = vadd.f32 %v3727, %v4055
        %4057 = vmatmul.bf16.gmra.mxu0 %v1600
        %v4058 = vpop.f32.mrf.mxu0
        %v4059 = vadd.f32 %v3730, %v4058
        %v4060 = vpop.f32.mrf.mxu0
        %v4061 = vadd.f32 %v3732, %v4060
        %4062 = vmatmul.bf16.gmra.mxu0 %v1602
        %v4063 = vpop.f32.mrf.mxu0
        %v4064 = vadd.f32 %v3735, %v4063
        %v4065 = vpop.f32.mrf.mxu0
        %v4066 = vadd.f32 %v3737, %v4065
        %4067 = vmatmul.bf16.gmra.mxu0 %v1604
        %v4068 = vpop.f32.mrf.mxu0
        %v4069 = vadd.f32 %v3740, %v4068
        %v4070 = vpop.f32.mrf.mxu0
        %v4071 = vadd.f32 %v3742, %v4070
        %4072 = vdwg.mxu0
        %4073 = vset.pattern.permute.xlu0 1
        %4074 = vperm.xlu0 %4073, %v1605
        %v4075 = vpop.permute.xlu0 %4074
        %4077 = vset.pattern.permute.xlu0 1
        %4078 = vperm.xlu0 %4077, %v1606
        %v4079 = vpop.permute.xlu0 %4078
        %4081 = vset.pattern.permute.xlu0 1
        %4082 = vperm.xlu0 %4081, %v1607
        %v4083 = vpop.permute.xlu0 %4082
        %4085 = vset.pattern.permute.xlu0 1
        %4086 = vperm.xlu0 %4085, %v1608
        %v4087 = vpop.permute.xlu0 %4086
        %4089 = vset.pattern.permute.xlu0 1
        %4090 = vperm.xlu0 %4089, %v1609
        %v4091 = vpop.permute.xlu0 %4090
        %4093 = vset.pattern.permute.xlu0 1
        %4094 = vperm.xlu0 %4093, %v1610
        %v4095 = vpop.permute.xlu0 %4094
        %4097 = vset.pattern.permute.xlu0 1
        %4098 = vperm.xlu0 %4097, %v1611
        %v4099 = vpop.permute.xlu0 %4098
        %4101 = vset.pattern.permute.xlu0 1
        %4102 = vperm.xlu0 %4101, %v1612
        %v4103 = vpop.permute.xlu0 %4102
        %4105 = vset.pattern.permute.xlu0 1
        %4106 = vperm.xlu0 %4105, %v1613
        %v4107 = vpop.permute.xlu0 %4106
        %4109 = vset.pattern.permute.xlu0 1
        %4110 = vperm.xlu0 %4109, %v1614
        %v4111 = vpop.permute.xlu0 %4110
        %4113 = vset.pattern.permute.xlu0 1
        %4114 = vperm.xlu0 %4113, %v1615
        %v4115 = vpop.permute.xlu0 %4114
        %4117 = vset.pattern.permute.xlu0 1
        %4118 = vperm.xlu0 %4117, %v1616
        %v4119 = vpop.permute.xlu0 %4118
        %4121 = vset.pattern.permute.xlu0 1
        %4122 = vperm.xlu0 %4121, %v1617
        %v4123 = vpop.permute.xlu0 %4122
        %4125 = vset.pattern.permute.xlu0 1
        %4126 = vperm.xlu0 %4125, %v1618
        %v4127 = vpop.permute.xlu0 %4126
        %4129 = vset.pattern.permute.xlu0 1
        %4130 = vperm.xlu0 %4129, %v1619
        %v4131 = vpop.permute.xlu0 %4130
        %4133 = vset.pattern.permute.xlu0 1
        %4134 = vperm.xlu0 %4133, %v1620
        %v4135 = vpop.permute.xlu0 %4134
        %4137 = vset.pattern.permute.xlu0 1
        %4138 = vperm.xlu0 %4137, %v1621
        %v4139 = vpop.permute.xlu0 %4138
        %4141 = vset.pattern.permute.xlu0 1
        %4142 = vperm.xlu0 %4141, %v1622
        %v4143 = vpop.permute.xlu0 %4142
        %4145 = vset.pattern.permute.xlu0 1
        %4146 = vperm.xlu0 %4145, %v1623
        %v4147 = vpop.permute.xlu0 %4146
        %4149 = vset.pattern.permute.xlu0 1
        %4150 = vperm.xlu0 %4149, %v1624
        %v4151 = vpop.permute.xlu0 %4150
        %4153 = vset.pattern.permute.xlu0 1
        %4154 = vperm.xlu0 %4153, %v1625
        %v4155 = vpop.permute.xlu0 %4154
        %4157 = vset.pattern.permute.xlu0 1
        %4158 = vperm.xlu0 %4157, %v1626
        %v4159 = vpop.permute.xlu0 %4158
        %4161 = vset.pattern.permute.xlu0 1
        %4162 = vperm.xlu0 %4161, %v1627
        %v4163 = vpop.permute.xlu0 %4162
        %4165 = vset.pattern.permute.xlu0 1
        %4166 = vperm.xlu0 %4165, %v1628
        %v4167 = vpop.permute.xlu0 %4166
        %4169 = vset.pattern.permute.xlu0 1
        %4170 = vperm.xlu0 %4169, %v1629
        %v4171 = vpop.permute.xlu0 %4170
        %4173 = vset.pattern.permute.xlu0 1
        %4174 = vperm.xlu0 %4173, %v1630
        %v4175 = vpop.permute.xlu0 %4174
        %4177 = vset.pattern.permute.xlu0 1
        %4178 = vperm.xlu0 %4177, %v1631
        %v4179 = vpop.permute.xlu0 %4178
        %4181 = vset.pattern.permute.xlu0 1
        %4182 = vperm.xlu0 %4181, %v1632
        %v4183 = vpop.permute.xlu0 %4182
        %4185 = vset.pattern.permute.xlu0 1
        %4186 = vperm.xlu0 %4185, %v1633
        %v4187 = vpop.permute.xlu0 %4186
        %4189 = vset.pattern.permute.xlu0 1
        %4190 = vperm.xlu0 %4189, %v1634
        %v4191 = vpop.permute.xlu0 %4190
        %4193 = vset.pattern.permute.xlu0 1
        %4194 = vperm.xlu0 %4193, %v1635
        %v4195 = vpop.permute.xlu0 %4194
        %4197 = vset.pattern.permute.xlu0 1
        %4198 = vperm.xlu0 %4197, %v1636
        %v4199 = vpop.permute.xlu0 %4198
        %4201 = vset.pattern.permute.xlu0 1
        %4202 = vperm.xlu0 %4201, %v1637
        %v4203 = vpop.permute.xlu0 %4202
        %4205 = vset.pattern.permute.xlu0 1
        %4206 = vperm.xlu0 %4205, %v1638
        %v4207 = vpop.permute.xlu0 %4206
        %4209 = vset.pattern.permute.xlu0 1
        %4210 = vperm.xlu0 %4209, %v1639
        %v4211 = vpop.permute.xlu0 %4210
        %4213 = vset.pattern.permute.xlu0 1
        %4214 = vperm.xlu0 %4213, %v1640
        %v4215 = vpop.permute.xlu0 %4214
        %4217 = vset.pattern.permute.xlu0 1
        %4218 = vperm.xlu0 %4217, %v1641
        %v4219 = vpop.permute.xlu0 %4218
        %4221 = vset.pattern.permute.xlu0 1
        %4222 = vperm.xlu0 %4221, %v1642
        %v4223 = vpop.permute.xlu0 %4222
        %4225 = vset.pattern.permute.xlu0 1
        %4226 = vperm.xlu0 %4225, %v1643
        %v4227 = vpop.permute.xlu0 %4226
        %4229 = vset.pattern.permute.xlu0 1
        %4230 = vperm.xlu0 %4229, %v1644
        %v4231 = vpop.permute.xlu0 %4230
        %4233 = vset.pattern.permute.xlu0 1
        %4234 = vperm.xlu0 %4233, %v1645
        %v4235 = vpop.permute.xlu0 %4234
        %4237 = vset.pattern.permute.xlu0 1
        %4238 = vperm.xlu0 %4237, %v1646
        %v4239 = vpop.permute.xlu0 %4238
        %4241 = vset.pattern.permute.xlu0 1
        %4242 = vperm.xlu0 %4241, %v1647
        %v4243 = vpop.permute.xlu0 %4242
        %4245 = vset.pattern.permute.xlu0 1
        %4246 = vperm.xlu0 %4245, %v1648
        %v4247 = vpop.permute.xlu0 %4246
        %4249 = vset.pattern.permute.xlu0 1
        %4250 = vperm.xlu0 %4249, %v1649
        %v4251 = vpop.permute.xlu0 %4250
        %4253 = vset.pattern.permute.xlu0 1
        %4254 = vperm.xlu0 %4253, %v1650
        %v4255 = vpop.permute.xlu0 %4254
        %4257 = vset.pattern.permute.xlu0 1
        %4258 = vperm.xlu0 %4257, %v1651
        %v4259 = vpop.permute.xlu0 %4258
        %4261 = vset.pattern.permute.xlu0 1
        %4262 = vperm.xlu0 %4261, %v1652
        %v4263 = vpop.permute.xlu0 %4262
        %4265 = vset.pattern.permute.xlu0 1
        %4266 = vperm.xlu0 %4265, %v1653
        %v4267 = vpop.permute.xlu0 %4266
        %4269 = vset.pattern.permute.xlu0 1
        %4270 = vperm.xlu0 %4269, %v1654
        %v4271 = vpop.permute.xlu0 %4270
        %4273 = vset.pattern.permute.xlu0 1
        %4274 = vperm.xlu0 %4273, %v1655
        %v4275 = vpop.permute.xlu0 %4274
        %4277 = vset.pattern.permute.xlu0 1
        %4278 = vperm.xlu0 %4277, %v1656
        %v4279 = vpop.permute.xlu0 %4278
        %4281 = vset.pattern.permute.xlu0 1
        %4282 = vperm.xlu0 %4281, %v1657
        %v4283 = vpop.permute.xlu0 %4282
        %4285 = vset.pattern.permute.xlu0 1
        %4286 = vperm.xlu0 %4285, %v1658
        %v4287 = vpop.permute.xlu0 %4286
        %4289 = vset.pattern.permute.xlu0 1
        %4290 = vperm.xlu0 %4289, %v1659
        %v4291 = vpop.permute.xlu0 %4290
        %4293 = vset.pattern.permute.xlu0 1
        %4294 = vperm.xlu0 %4293, %v1660
        %v4295 = vpop.permute.xlu0 %4294
        %4297 = vset.pattern.permute.xlu0 1
        %4298 = vperm.xlu0 %4297, %v1661
        %v4299 = vpop.permute.xlu0 %4298
        %4301 = vset.pattern.permute.xlu0 1
        %4302 = vperm.xlu0 %4301, %v1662
        %v4303 = vpop.permute.xlu0 %4302
        %4305 = vset.pattern.permute.xlu0 1
        %4306 = vperm.xlu0 %4305, %v1663
        %v4307 = vpop.permute.xlu0 %4306
        %4309 = vset.pattern.permute.xlu0 1
        %4310 = vperm.xlu0 %4309, %v1664
        %v4311 = vpop.permute.xlu0 %4310
        %4313 = vset.pattern.permute.xlu0 1
        %4314 = vperm.xlu0 %4313, %v1665
        %v4315 = vpop.permute.xlu0 %4314
        %4317 = vset.pattern.permute.xlu0 1
        %4318 = vperm.xlu0 %4317, %v1666
        %v4319 = vpop.permute.xlu0 %4318
        %4321 = vset.pattern.permute.xlu0 1
        %4322 = vperm.xlu0 %4321, %v1667
        %v4323 = vpop.permute.xlu0 %4322
        %4325 = vset.pattern.permute.xlu0 1
        %4326 = vperm.xlu0 %4325, %v1668
        %v4327 = vpop.permute.xlu0 %4326
        %4329 = vset.pattern.permute.xlu0 1
        %4330 = vperm.xlu0 %4329, %v1669
        %v4331 = vpop.permute.xlu0 %4330
        %4333 = vset.pattern.permute.xlu0 1
        %4334 = vperm.xlu0 %4333, %v1670
        %v4335 = vpop.permute.xlu0 %4334
        %4337 = vset.pattern.permute.xlu0 1
        %4338 = vperm.xlu0 %4337, %v1671
        %v4339 = vpop.permute.xlu0 %4338
        %4341 = vset.pattern.permute.xlu0 1
        %4342 = vperm.xlu0 %4341, %v1672
        %v4343 = vpop.permute.xlu0 %4342
        %4345 = vset.pattern.permute.xlu0 1
        %4346 = vperm.xlu0 %4345, %v1673
        %v4347 = vpop.permute.xlu0 %4346
        %4349 = vset.pattern.permute.xlu0 1
        %4350 = vperm.xlu0 %4349, %v1674
        %v4351 = vpop.permute.xlu0 %4350
        %4353 = vset.pattern.permute.xlu0 1
        %4354 = vperm.xlu0 %4353, %v1675
        %v4355 = vpop.permute.xlu0 %4354
        %4357 = vset.pattern.permute.xlu0 1
        %4358 = vperm.xlu0 %4357, %v1676
        %v4359 = vpop.permute.xlu0 %4358
        %4361 = vset.pattern.permute.xlu0 1
        %4362 = vperm.xlu0 %4361, %v1677
        %v4363 = vpop.permute.xlu0 %4362
        %4365 = vset.pattern.permute.xlu0 1
        %4366 = vperm.xlu0 %4365, %v1678
        %v4367 = vpop.permute.xlu0 %4366
        %4369 = vset.pattern.permute.xlu0 1
        %4370 = vperm.xlu0 %4369, %v1679
        %v4371 = vpop.permute.xlu0 %4370
        %4373 = vset.pattern.permute.xlu0 1
        %4374 = vperm.xlu0 %4373, %v1680
        %v4375 = vpop.permute.xlu0 %4374
        %4377 = vset.pattern.permute.xlu0 1
        %4378 = vperm.xlu0 %4377, %v1681
        %v4379 = vpop.permute.xlu0 %4378
        %4381 = vset.pattern.permute.xlu0 1
        %4382 = vperm.xlu0 %4381, %v1682
        %v4383 = vpop.permute.xlu0 %4382
        %4385 = vset.pattern.permute.xlu0 1
        %4386 = vperm.xlu0 %4385, %v1683
        %v4387 = vpop.permute.xlu0 %4386
        %4389 = vset.pattern.permute.xlu0 1
        %4390 = vperm.xlu0 %4389, %v1684
        %v4391 = vpop.permute.xlu0 %4390
        %4393 = vset.pattern.permute.xlu0 1
        %4394 = vperm.xlu0 %4393, %v1685
        %v4395 = vpop.permute.xlu0 %4394
        %4397 = vset.pattern.permute.xlu0 1
        %4398 = vperm.xlu0 %4397, %v1686
        %v4399 = vpop.permute.xlu0 %4398
        %4401 = vset.pattern.permute.xlu0 1
        %4402 = vperm.xlu0 %4401, %v1687
        %v4403 = vpop.permute.xlu0 %4402
        %4405 = vset.pattern.permute.xlu0 1
        %4406 = vperm.xlu0 %4405, %v1688
        %v4407 = vpop.permute.xlu0 %4406
        %4409 = vset.pattern.permute.xlu0 1
        %4410 = vperm.xlu0 %4409, %v1689
        %v4411 = vpop.permute.xlu0 %4410
        %4413 = vset.pattern.permute.xlu0 1
        %4414 = vperm.xlu0 %4413, %v1690
        %v4415 = vpop.permute.xlu0 %4414
        %4417 = vset.pattern.permute.xlu0 1
        %4418 = vperm.xlu0 %4417, %v1691
        %v4419 = vpop.permute.xlu0 %4418
        %4421 = vset.pattern.permute.xlu0 1
        %4422 = vperm.xlu0 %4421, %v1692
        %v4423 = vpop.permute.xlu0 %4422
        %4425 = vset.pattern.permute.xlu0 1
        %4426 = vperm.xlu0 %4425, %v1693
        %v4427 = vpop.permute.xlu0 %4426
        %4429 = vset.pattern.permute.xlu0 1
        %4430 = vperm.xlu0 %4429, %v1694
        %v4431 = vpop.permute.xlu0 %4430
        %4433 = vset.pattern.permute.xlu0 1
        %4434 = vperm.xlu0 %4433, %v1695
        %v4435 = vpop.permute.xlu0 %4434
        %4437 = vset.pattern.permute.xlu0 1
        %4438 = vperm.xlu0 %4437, %v1696
        %v4439 = vpop.permute.xlu0 %4438
        %4441 = vset.pattern.permute.xlu0 1
        %4442 = vperm.xlu0 %4441, %v1697
        %v4443 = vpop.permute.xlu0 %4442
        %4445 = vset.pattern.permute.xlu0 1
        %4446 = vperm.xlu0 %4445, %v1698
        %v4447 = vpop.permute.xlu0 %4446
        %4449 = vset.pattern.permute.xlu0 1
        %4450 = vperm.xlu0 %4449, %v1699
        %v4451 = vpop.permute.xlu0 %4450
        %4453 = vset.pattern.permute.xlu0 1
        %4454 = vperm.xlu0 %4453, %v1700
        %v4455 = vpop.permute.xlu0 %4454
        %4457 = vset.pattern.permute.xlu0 1
        %4458 = vperm.xlu0 %4457, %v1701
        %v4459 = vpop.permute.xlu0 %4458
        %4461 = vset.pattern.permute.xlu0 1
        %4462 = vperm.xlu0 %4461, %v1702
        %v4463 = vpop.permute.xlu0 %4462
        %4465 = vset.pattern.permute.xlu0 1
        %4466 = vperm.xlu0 %4465, %v1703
        %v4467 = vpop.permute.xlu0 %4466
        %4469 = vset.pattern.permute.xlu0 1
        %4470 = vperm.xlu0 %4469, %v1704
        %v4471 = vpop.permute.xlu0 %4470
        %4473 = vset.pattern.permute.xlu0 1
        %4474 = vperm.xlu0 %4473, %v1705
        %v4475 = vpop.permute.xlu0 %4474
        %4477 = vset.pattern.permute.xlu0 1
        %4478 = vperm.xlu0 %4477, %v1706
        %v4479 = vpop.permute.xlu0 %4478
        %4481 = vset.pattern.permute.xlu0 1
        %4482 = vperm.xlu0 %4481, %v1707
        %v4483 = vpop.permute.xlu0 %4482
        %4485 = vset.pattern.permute.xlu0 1
        %4486 = vperm.xlu0 %4485, %v1708
        %v4487 = vpop.permute.xlu0 %4486
        %4489 = vset.pattern.permute.xlu0 1
        %4490 = vperm.xlu0 %4489, %v1709
        %v4491 = vpop.permute.xlu0 %4490
        %4493 = vset.pattern.permute.xlu0 1
        %4494 = vperm.xlu0 %4493, %v1710
        %v4495 = vpop.permute.xlu0 %4494
        %4497 = vset.pattern.permute.xlu0 1
        %4498 = vperm.xlu0 %4497, %v1711
        %v4499 = vpop.permute.xlu0 %4498
        %4501 = vset.pattern.permute.xlu0 1
        %4502 = vperm.xlu0 %4501, %v1712
        %v4503 = vpop.permute.xlu0 %4502
        %4505 = vset.pattern.permute.xlu0 1
        %4506 = vperm.xlu0 %4505, %v1713
        %v4507 = vpop.permute.xlu0 %4506
        %4509 = vset.pattern.permute.xlu0 1
        %4510 = vperm.xlu0 %4509, %v1714
        %v4511 = vpop.permute.xlu0 %4510
        %4513 = vset.pattern.permute.xlu0 1
        %4514 = vperm.xlu0 %4513, %v1715
        %v4515 = vpop.permute.xlu0 %4514
        %4517 = vset.pattern.permute.xlu0 1
        %4518 = vperm.xlu0 %4517, %v1716
        %v4519 = vpop.permute.xlu0 %4518
        %4521 = vset.pattern.permute.xlu0 1
        %4522 = vperm.xlu0 %4521, %v1717
        %v4523 = vpop.permute.xlu0 %4522
        %4525 = vset.pattern.permute.xlu0 1
        %4526 = vperm.xlu0 %4525, %v1718
        %v4527 = vpop.permute.xlu0 %4526
        %4529 = vset.pattern.permute.xlu0 1
        %4530 = vperm.xlu0 %4529, %v1719
        %v4531 = vpop.permute.xlu0 %4530
        %4533 = vset.pattern.permute.xlu0 1
        %4534 = vperm.xlu0 %4533, %v1720
        %v4535 = vpop.permute.xlu0 %4534
        %4537 = vset.pattern.permute.xlu0 1
        %4538 = vperm.xlu0 %4537, %v1721
        %v4539 = vpop.permute.xlu0 %4538
        %4541 = vset.pattern.permute.xlu0 1
        %4542 = vperm.xlu0 %4541, %v1722
        %v4543 = vpop.permute.xlu0 %4542
        %4545 = vset.pattern.permute.xlu0 1
        %4546 = vperm.xlu0 %4545, %v1723
        %v4547 = vpop.permute.xlu0 %4546
        %4549 = vset.pattern.permute.xlu0 1
        %4550 = vperm.xlu0 %4549, %v1724
        %v4551 = vpop.permute.xlu0 %4550
        %4553 = vset.pattern.permute.xlu0 1
        %4554 = vperm.xlu0 %4553, %v1725
        %v4555 = vpop.permute.xlu0 %4554
        %4557 = vset.pattern.permute.xlu0 1
        %4558 = vperm.xlu0 %4557, %v1726
        %v4559 = vpop.permute.xlu0 %4558
        %4561 = vset.pattern.permute.xlu0 1
        %4562 = vperm.xlu0 %4561, %v1727
        %v4563 = vpop.permute.xlu0 %4562
        %4565 = vset.pattern.permute.xlu0 1
        %4566 = vperm.xlu0 %4565, %v1728
        %v4567 = vpop.permute.xlu0 %4566
        %4569 = vset.pattern.permute.xlu0 1
        %4570 = vperm.xlu0 %4569, %v1729
        %v4571 = vpop.permute.xlu0 %4570
        %4573 = vset.pattern.permute.xlu0 1
        %4574 = vperm.xlu0 %4573, %v1730
        %v4575 = vpop.permute.xlu0 %4574
        %4577 = vset.pattern.permute.xlu0 1
        %4578 = vperm.xlu0 %4577, %v1731
        %v4579 = vpop.permute.xlu0 %4578
        %4581 = vset.pattern.permute.xlu0 1
        %4582 = vperm.xlu0 %4581, %v1732
        %v4583 = vpop.permute.xlu0 %4582
        %v4585 = vmul.f32 %v4075, %v3754
        %v4586 = vmul.f32 %v4079, %v3756
        %v4587 = vmul.f32 %v4083, %v3759
        %v4588 = vmul.f32 %v4087, %v3761
        %v4589 = vmul.f32 %v4091, %v3764
        %v4590 = vmul.f32 %v4095, %v3766
        %v4591 = vmul.f32 %v4099, %v3769
        %v4592 = vmul.f32 %v4103, %v3771
        %v4593 = vmul.f32 %v4107, %v3774
        %v4594 = vmul.f32 %v4111, %v3776
        %v4595 = vmul.f32 %v4115, %v3779
        %v4596 = vmul.f32 %v4119, %v3781
        %v4597 = vmul.f32 %v4123, %v3784
        %v4598 = vmul.f32 %v4127, %v3786
        %v4599 = vmul.f32 %v4131, %v3789
        %v4600 = vmul.f32 %v4135, %v3791
        %v4601 = vmul.f32 %v4139, %v3794
        %v4602 = vmul.f32 %v4143, %v3796
        %v4603 = vmul.f32 %v4147, %v3799
        %v4604 = vmul.f32 %v4151, %v3801
        %v4605 = vmul.f32 %v4155, %v3804
        %v4606 = vmul.f32 %v4159, %v3806
        %v4607 = vmul.f32 %v4163, %v3809
        %v4608 = vmul.f32 %v4167, %v3811
        %v4609 = vmul.f32 %v4171, %v3814
        %v4610 = vmul.f32 %v4175, %v3816
        %v4611 = vmul.f32 %v4179, %v3819
        %v4612 = vmul.f32 %v4183, %v3821
        %v4613 = vmul.f32 %v4187, %v3824
        %v4614 = vmul.f32 %v4191, %v3826
        %v4615 = vmul.f32 %v4195, %v3829
        %v4616 = vmul.f32 %v4199, %v3831
        %v4617 = vmul.f32 %v4203, %v3834
        %v4618 = vmul.f32 %v4207, %v3836
        %v4619 = vmul.f32 %v4211, %v3839
        %v4620 = vmul.f32 %v4215, %v3841
        %v4621 = vmul.f32 %v4219, %v3844
        %v4622 = vmul.f32 %v4223, %v3846
        %v4623 = vmul.f32 %v4227, %v3849
        %v4624 = vmul.f32 %v4231, %v3851
        %v4625 = vmul.f32 %v4235, %v3854
        %v4626 = vmul.f32 %v4239, %v3856
        %v4627 = vmul.f32 %v4243, %v3859
        %v4628 = vmul.f32 %v4247, %v3861
        %v4629 = vmul.f32 %v4251, %v3864
        %v4630 = vmul.f32 %v4255, %v3866
        %v4631 = vmul.f32 %v4259, %v3869
        %v4632 = vmul.f32 %v4263, %v3871
        %v4633 = vmul.f32 %v4267, %v3874
        %v4634 = vmul.f32 %v4271, %v3876
        %v4635 = vmul.f32 %v4275, %v3879
        %v4636 = vmul.f32 %v4279, %v3881
        %v4637 = vmul.f32 %v4283, %v3884
        %v4638 = vmul.f32 %v4287, %v3886
        %v4639 = vmul.f32 %v4291, %v3889
        %v4640 = vmul.f32 %v4295, %v3891
        %v4641 = vmul.f32 %v4299, %v3894
        %v4642 = vmul.f32 %v4303, %v3896
        %v4643 = vmul.f32 %v4307, %v3899
        %v4644 = vmul.f32 %v4311, %v3901
        %v4645 = vmul.f32 %v4315, %v3904
        %v4646 = vmul.f32 %v4319, %v3906
        %v4647 = vmul.f32 %v4323, %v3909
        %v4648 = vmul.f32 %v4327, %v3911
        %v4649 = vmul.f32 %v4331, %v3914
        %v4650 = vmul.f32 %v4335, %v3916
        %v4651 = vmul.f32 %v4339, %v3919
        %v4652 = vmul.f32 %v4343, %v3921
        %v4653 = vmul.f32 %v4347, %v3924
        %v4654 = vmul.f32 %v4351, %v3926
        %v4655 = vmul.f32 %v4355, %v3929
        %v4656 = vmul.f32 %v4359, %v3931
        %v4657 = vmul.f32 %v4363, %v3934
        %v4658 = vmul.f32 %v4367, %v3936
        %v4659 = vmul.f32 %v4371, %v3939
        %v4660 = vmul.f32 %v4375, %v3941
        %v4661 = vmul.f32 %v4379, %v3944
        %v4662 = vmul.f32 %v4383, %v3946
        %v4663 = vmul.f32 %v4387, %v3949
        %v4664 = vmul.f32 %v4391, %v3951
        %v4665 = vmul.f32 %v4395, %v3954
        %v4666 = vmul.f32 %v4399, %v3956
        %v4667 = vmul.f32 %v4403, %v3959
        %v4668 = vmul.f32 %v4407, %v3961
        %v4669 = vmul.f32 %v4411, %v3964
        %v4670 = vmul.f32 %v4415, %v3966
        %v4671 = vmul.f32 %v4419, %v3969
        %v4672 = vmul.f32 %v4423, %v3971
        %v4673 = vmul.f32 %v4427, %v3974
        %v4674 = vmul.f32 %v4431, %v3976
        %v4675 = vmul.f32 %v4435, %v3979
        %v4676 = vmul.f32 %v4439, %v3981
        %v4677 = vmul.f32 %v4443, %v3984
        %v4678 = vmul.f32 %v4447, %v3986
        %v4679 = vmul.f32 %v4451, %v3989
        %v4680 = vmul.f32 %v4455, %v3991
        %v4681 = vmul.f32 %v4459, %v3994
        %v4682 = vmul.f32 %v4463, %v3996
        %v4683 = vmul.f32 %v4467, %v3999
        %v4684 = vmul.f32 %v4471, %v4001
        %v4685 = vmul.f32 %v4475, %v4004
        %v4686 = vmul.f32 %v4479, %v4006
        %v4687 = vmul.f32 %v4483, %v4009
        %v4688 = vmul.f32 %v4487, %v4011
        %v4689 = vmul.f32 %v4491, %v4014
        %v4690 = vmul.f32 %v4495, %v4016
        %v4691 = vmul.f32 %v4499, %v4019
        %v4692 = vmul.f32 %v4503, %v4021
        %v4693 = vmul.f32 %v4507, %v4024
        %v4694 = vmul.f32 %v4511, %v4026
        %v4695 = vmul.f32 %v4515, %v4029
        %v4696 = vmul.f32 %v4519, %v4031
        %v4697 = vmul.f32 %v4523, %v4034
        %v4698 = vmul.f32 %v4527, %v4036
        %v4699 = vmul.f32 %v4531, %v4039
        %v4700 = vmul.f32 %v4535, %v4041
        %v4701 = vmul.f32 %v4539, %v4044
        %v4702 = vmul.f32 %v4543, %v4046
        %v4703 = vmul.f32 %v4547, %v4049
        %v4704 = vmul.f32 %v4551, %v4051
        %v4705 = vmul.f32 %v4555, %v4054
        %v4706 = vmul.f32 %v4559, %v4056
        %v4707 = vmul.f32 %v4563, %v4059
        %v4708 = vmul.f32 %v4567, %v4061
        %v4709 = vmul.f32 %v4571, %v4064
        %v4710 = vmul.f32 %v4575, %v4066
        %v4711 = vmul.f32 %v4579, %v4069
        %v4712 = vmul.f32 %v4583, %v4071
        %v4713 = vadd.f32 %v3159, %v4585
        %v4714 = vadd.f32 %v3160, %v4586
        %v4715 = vadd.f32 %v3161, %v4587
        %v4716 = vadd.f32 %v3162, %v4588
        %v4717 = vadd.f32 %v3163, %v4589
        %v4718 = vadd.f32 %v3164, %v4590
        %v4719 = vadd.f32 %v3165, %v4591
        %v4720 = vadd.f32 %v3166, %v4592
        %v4721 = vadd.f32 %v3167, %v4593
        %v4722 = vadd.f32 %v3168, %v4594
        %v4723 = vadd.f32 %v3169, %v4595
        %v4724 = vadd.f32 %v3170, %v4596
        %v4725 = vadd.f32 %v3171, %v4597
        %v4726 = vadd.f32 %v3172, %v4598
        %v4727 = vadd.f32 %v3173, %v4599
        %v4728 = vadd.f32 %v3174, %v4600
        %v4729 = vadd.f32 %v3175, %v4601
        %v4730 = vadd.f32 %v3176, %v4602
        %v4731 = vadd.f32 %v3177, %v4603
        %v4732 = vadd.f32 %v3178, %v4604
        %v4733 = vadd.f32 %v3179, %v4605
        %v4734 = vadd.f32 %v3180, %v4606
        %v4735 = vadd.f32 %v3181, %v4607
        %v4736 = vadd.f32 %v3182, %v4608
        %v4737 = vadd.f32 %v3183, %v4609
        %v4738 = vadd.f32 %v3184, %v4610
        %v4739 = vadd.f32 %v3185, %v4611
        %v4740 = vadd.f32 %v3186, %v4612
        %v4741 = vadd.f32 %v3187, %v4613
        %v4742 = vadd.f32 %v3188, %v4614
        %v4743 = vadd.f32 %v3189, %v4615
        %v4744 = vadd.f32 %v3190, %v4616
        %v4745 = vadd.f32 %v3191, %v4617
        %v4746 = vadd.f32 %v3192, %v4618
        %v4747 = vadd.f32 %v3193, %v4619
        %v4748 = vadd.f32 %v3194, %v4620
        %v4749 = vadd.f32 %v3195, %v4621
        %v4750 = vadd.f32 %v3196, %v4622
        %v4751 = vadd.f32 %v3197, %v4623
        %v4752 = vadd.f32 %v3198, %v4624
        %v4753 = vadd.f32 %v3199, %v4625
        %v4754 = vadd.f32 %v3200, %v4626
        %v4755 = vadd.f32 %v3201, %v4627
        %v4756 = vadd.f32 %v3202, %v4628
        %v4757 = vadd.f32 %v3203, %v4629
        %v4758 = vadd.f32 %v3204, %v4630
        %v4759 = vadd.f32 %v3205, %v4631
        %v4760 = vadd.f32 %v3206, %v4632
        %v4761 = vadd.f32 %v3207, %v4633
        %v4762 = vadd.f32 %v3208, %v4634
        %v4763 = vadd.f32 %v3209, %v4635
        %v4764 = vadd.f32 %v3210, %v4636
        %v4765 = vadd.f32 %v3211, %v4637
        %v4766 = vadd.f32 %v3212, %v4638
        %v4767 = vadd.f32 %v3213, %v4639
        %v4768 = vadd.f32 %v3214, %v4640
        %v4769 = vadd.f32 %v3215, %v4641
        %v4770 = vadd.f32 %v3216, %v4642
        %v4771 = vadd.f32 %v3217, %v4643
        %v4772 = vadd.f32 %v3218, %v4644
        %v4773 = vadd.f32 %v3219, %v4645
        %v4774 = vadd.f32 %v3220, %v4646
        %v4775 = vadd.f32 %v3221, %v4647
        %v4776 = vadd.f32 %v3222, %v4648
        %v4777 = vadd.f32 %v3223, %v4649
        %v4778 = vadd.f32 %v3224, %v4650
        %v4779 = vadd.f32 %v3225, %v4651
        %v4780 = vadd.f32 %v3226, %v4652
        %v4781 = vadd.f32 %v3227, %v4653
        %v4782 = vadd.f32 %v3228, %v4654
        %v4783 = vadd.f32 %v3229, %v4655
        %v4784 = vadd.f32 %v3230, %v4656
        %v4785 = vadd.f32 %v3231, %v4657
        %v4786 = vadd.f32 %v3232, %v4658
        %v4787 = vadd.f32 %v3233, %v4659
        %v4788 = vadd.f32 %v3234, %v4660
        %v4789 = vadd.f32 %v3235, %v4661
        %v4790 = vadd.f32 %v3236, %v4662
        %v4791 = vadd.f32 %v3237, %v4663
        %v4792 = vadd.f32 %v3238, %v4664
        %v4793 = vadd.f32 %v3239, %v4665
        %v4794 = vadd.f32 %v3240, %v4666
        %v4795 = vadd.f32 %v3241, %v4667
        %v4796 = vadd.f32 %v3242, %v4668
        %v4797 = vadd.f32 %v3243, %v4669
        %v4798 = vadd.f32 %v3244, %v4670
        %v4799 = vadd.f32 %v3245, %v4671
        %v4800 = vadd.f32 %v3246, %v4672
        %v4801 = vadd.f32 %v3247, %v4673
        %v4802 = vadd.f32 %v3248, %v4674
        %v4803 = vadd.f32 %v3249, %v4675
        %v4804 = vadd.f32 %v3250, %v4676
        %v4805 = vadd.f32 %v3251, %v4677
        %v4806 = vadd.f32 %v3252, %v4678
        %v4807 = vadd.f32 %v3253, %v4679
        %v4808 = vadd.f32 %v3254, %v4680
        %v4809 = vadd.f32 %v3255, %v4681
        %v4810 = vadd.f32 %v3256, %v4682
        %v4811 = vadd.f32 %v3257, %v4683
        %v4812 = vadd.f32 %v3258, %v4684
        %v4813 = vadd.f32 %v3259, %v4685
        %v4814 = vadd.f32 %v3260, %v4686
        %v4815 = vadd.f32 %v3261, %v4687
        %v4816 = vadd.f32 %v3262, %v4688
        %v4817 = vadd.f32 %v3263, %v4689
        %v4818 = vadd.f32 %v3264, %v4690
        %v4819 = vadd.f32 %v3265, %v4691
        %v4820 = vadd.f32 %v3266, %v4692
        %v4821 = vadd.f32 %v3267, %v4693
        %v4822 = vadd.f32 %v3268, %v4694
        %v4823 = vadd.f32 %v3269, %v4695
        %v4824 = vadd.f32 %v3270, %v4696
        %v4825 = vadd.f32 %v3271, %v4697
        %v4826 = vadd.f32 %v3272, %v4698
        %v4827 = vadd.f32 %v3273, %v4699
        %v4828 = vadd.f32 %v3274, %v4700
        %v4829 = vadd.f32 %v3275, %v4701
        %v4830 = vadd.f32 %v3276, %v4702
        %v4831 = vadd.f32 %v3277, %v4703
        %v4832 = vadd.f32 %v3278, %v4704
        %v4833 = vadd.f32 %v3279, %v4705
        %v4834 = vadd.f32 %v3280, %v4706
        %v4835 = vadd.f32 %v3281, %v4707
        %v4836 = vadd.f32 %v3282, %v4708
        %v4837 = vadd.f32 %v3283, %v4709
        %v4838 = vadd.f32 %v3284, %v4710
        %v4839 = vadd.f32 %v3285, %v4711
        %v4840 = vadd.f32 %v3286, %v4712
        %v4841 = vld [vmem:[%s2 + $0x100] sm:$0xf]
        %v4842 = vld [vmem:[%s2 + $0x104] sm:$0xf]
        %v4843 = vld [vmem:[%s2 + $0x108] sm:$0xf]
        %v4844 = vld [vmem:[%s2 + $0x10c] sm:$0xf]
        %v4845 = vld [vmem:[%s2 + $0x110] sm:$0xf]
        %v4846 = vld [vmem:[%s2 + $0x114] sm:$0xf]
        %v4847 = vld [vmem:[%s2 + $0x118] sm:$0xf]
        %v4848 = vld [vmem:[%s2 + $0x11c] sm:$0xf]
        %v4849 = vld [vmem:[%s2 + $0x120] sm:$0xf]
        %v4850 = vld [vmem:[%s2 + $0x124] sm:$0xf]
        %v4851 = vld [vmem:[%s2 + $0x128] sm:$0xf]
        %v4852 = vld [vmem:[%s2 + $0x12c] sm:$0xf]
        %v4853 = vld [vmem:[%s2 + $0x130] sm:$0xf]
        %v4854 = vld [vmem:[%s2 + $0x134] sm:$0xf]
        %v4855 = vld [vmem:[%s2 + $0x138] sm:$0xf]
        %v4856 = vld [vmem:[%s2 + $0x13c] sm:$0xf]
        %v4857 = vld [vmem:[%s2 + $0x140] sm:$0xf]
        %v4858 = vld [vmem:[%s2 + $0x144] sm:$0xf]
        %v4859 = vld [vmem:[%s2 + $0x148] sm:$0xf]
        %v4860 = vld [vmem:[%s2 + $0x14c] sm:$0xf]
        %v4861 = vld [vmem:[%s2 + $0x150] sm:$0xf]
        %v4862 = vld [vmem:[%s2 + $0x154] sm:$0xf]
        %v4863 = vld [vmem:[%s2 + $0x158] sm:$0xf]
        %v4864 = vld [vmem:[%s2 + $0x15c] sm:$0xf]
        %v4865 = vld [vmem:[%s2 + $0x160] sm:$0xf]
        %v4866 = vld [vmem:[%s2 + $0x164] sm:$0xf]
        %v4867 = vld [vmem:[%s2 + $0x168] sm:$0xf]
        %v4868 = vld [vmem:[%s2 + $0x16c] sm:$0xf]
        %v4869 = vld [vmem:[%s2 + $0x170] sm:$0xf]
        %v4870 = vld [vmem:[%s2 + $0x174] sm:$0xf]
        %v4871 = vld [vmem:[%s2 + $0x178] sm:$0xf]
        %v4872 = vld [vmem:[%s2 + $0x17c] sm:$0xf]
        %v4905 = vunpack.c.l.b16 %v4841
        %v4906 = vunpack.c.l.b16 %v4842
        %v4907 = vunpack.c.l.b16 %v4843
        %v4908 = vunpack.c.l.b16 %v4844
        %v4909 = vunpack.c.l.b16 %v4845
        %v4910 = vunpack.c.l.b16 %v4846
        %v4911 = vunpack.c.l.b16 %v4847
        %v4912 = vunpack.c.l.b16 %v4848
        %v4913 = vunpack.c.l.b16 %v4849
        %v4914 = vunpack.c.l.b16 %v4850
        %v4915 = vunpack.c.l.b16 %v4851
        %v4916 = vunpack.c.l.b16 %v4852
        %v4917 = vunpack.c.l.b16 %v4853
        %v4918 = vunpack.c.l.b16 %v4854
        %v4919 = vunpack.c.l.b16 %v4855
        %v4920 = vunpack.c.l.b16 %v4856
        %v4921 = vunpack.c.l.b16 %v4857
        %v4922 = vunpack.c.l.b16 %v4858
        %v4923 = vunpack.c.l.b16 %v4859
        %v4924 = vunpack.c.l.b16 %v4860
        %v4925 = vunpack.c.l.b16 %v4861
        %v4926 = vunpack.c.l.b16 %v4862
        %v4927 = vunpack.c.l.b16 %v4863
        %v4928 = vunpack.c.l.b16 %v4864
        %v4929 = vunpack.c.l.b16 %v4865
        %v4930 = vunpack.c.l.b16 %v4866
        %v4931 = vunpack.c.l.b16 %v4867
        %v4932 = vunpack.c.l.b16 %v4868
        %v4933 = vunpack.c.l.b16 %v4869
        %v4934 = vunpack.c.l.b16 %v4870
        %v4935 = vunpack.c.l.b16 %v4871
        %v4936 = vunpack.c.l.b16 %v4872
        %v4937 = vpack.c.b16 %v4906, %v4905
        %v4938 = vpack.c.b16 %v4908, %v4907
        %v4939 = vpack.c.b16 %v4910, %v4909
        %v4940 = vpack.c.b16 %v4912, %v4911
        %v4941 = vpack.c.b16 %v4914, %v4913
        %v4942 = vpack.c.b16 %v4916, %v4915
        %v4943 = vpack.c.b16 %v4918, %v4917
        %v4944 = vpack.c.b16 %v4920, %v4919
        %v4945 = vpack.c.b16 %v4922, %v4921
        %v4946 = vpack.c.b16 %v4924, %v4923
        %v4947 = vpack.c.b16 %v4926, %v4925
        %v4948 = vpack.c.b16 %v4928, %v4927
        %v4949 = vpack.c.b16 %v4930, %v4929
        %v4950 = vpack.c.b16 %v4932, %v4931
        %v4951 = vpack.c.b16 %v4934, %v4933
        %v4952 = vpack.c.b16 %v4936, %v4935
        %4969 = vmatpush.bf16.msra.mxu0 %v4944
        %4970 = vmatpush.bf16.msra.mxu0 %v4943
        %4971 = vmatpush.bf16.msra.mxu0 %v4942
        %4972 = vmatpush.bf16.msra.mxu0 %v4941
        %4973 = vmatpush.bf16.msra.mxu0 %v4940
        %4974 = vmatpush.bf16.msra.mxu0 %v4939
        %4975 = vmatpush.bf16.msra.mxu0 %v4938
        %4976 = vmatpush.bf16.msra.mxu0 %v4937
        %4977 = vmatmul.bf16.gmra.mxu0 %v1477
        %v4978 = vpop.f32.mrf.mxu0
        %v4979 = vadd.f32 0.0, %v4978
        %v4980 = vpop.f32.mrf.mxu0
        %v4981 = vadd.f32 0.0, %v4980
        %4982 = vmatmul.bf16.gmra.mxu0 %v1479
        %v4983 = vpop.f32.mrf.mxu0
        %v4984 = vadd.f32 0.0, %v4983
        %v4985 = vpop.f32.mrf.mxu0
        %v4986 = vadd.f32 0.0, %v4985
        %4987 = vmatmul.bf16.gmra.mxu0 %v1481
        %v4988 = vpop.f32.mrf.mxu0
        %v4989 = vadd.f32 0.0, %v4988
        %v4990 = vpop.f32.mrf.mxu0
        %v4991 = vadd.f32 0.0, %v4990
        %4992 = vmatmul.bf16.gmra.mxu0 %v1483
        %v4993 = vpop.f32.mrf.mxu0
        %v4994 = vadd.f32 0.0, %v4993
        %v4995 = vpop.f32.mrf.mxu0
        %v4996 = vadd.f32 0.0, %v4995
        %4997 = vmatmul.bf16.gmra.mxu0 %v1485
        %v4998 = vpop.f32.mrf.mxu0
        %v4999 = vadd.f32 0.0, %v4998
        %v5000 = vpop.f32.mrf.mxu0
        %v5001 = vadd.f32 0.0, %v5000
        %5002 = vmatmul.bf16.gmra.mxu0 %v1487
        %v5003 = vpop.f32.mrf.mxu0
        %v5004 = vadd.f32 0.0, %v5003
        %v5005 = vpop.f32.mrf.mxu0
        %v5006 = vadd.f32 0.0, %v5005
        %5007 = vmatmul.bf16.gmra.mxu0 %v1489
        %v5008 = vpop.f32.mrf.mxu0
        %v5009 = vadd.f32 0.0, %v5008
        %v5010 = vpop.f32.mrf.mxu0
        %v5011 = vadd.f32 0.0, %v5010
        %5012 = vmatmul.bf16.gmra.mxu0 %v1491
        %v5013 = vpop.f32.mrf.mxu0
        %v5014 = vadd.f32 0.0, %v5013
        %v5015 = vpop.f32.mrf.mxu0
        %v5016 = vadd.f32 0.0, %v5015
        %5017 = vmatmul.bf16.gmra.mxu0 %v1493
        %v5018 = vpop.f32.mrf.mxu0
        %v5019 = vadd.f32 0.0, %v5018
        %v5020 = vpop.f32.mrf.mxu0
        %v5021 = vadd.f32 0.0, %v5020
        %5022 = vmatmul.bf16.gmra.mxu0 %v1495
        %v5023 = vpop.f32.mrf.mxu0
        %v5024 = vadd.f32 0.0, %v5023
        %v5025 = vpop.f32.mrf.mxu0
        %v5026 = vadd.f32 0.0, %v5025
        %5027 = vmatmul.bf16.gmra.mxu0 %v1497
        %v5028 = vpop.f32.mrf.mxu0
        %v5029 = vadd.f32 0.0, %v5028
        %v5030 = vpop.f32.mrf.mxu0
        %v5031 = vadd.f32 0.0, %v5030
        %5032 = vmatmul.bf16.gmra.mxu0 %v1499
        %v5033 = vpop.f32.mrf.mxu0
        %v5034 = vadd.f32 0.0, %v5033
        %v5035 = vpop.f32.mrf.mxu0
        %v5036 = vadd.f32 0.0, %v5035
        %5037 = vmatmul.bf16.gmra.mxu0 %v1501
        %v5038 = vpop.f32.mrf.mxu0
        %v5039 = vadd.f32 0.0, %v5038
        %v5040 = vpop.f32.mrf.mxu0
        %v5041 = vadd.f32 0.0, %v5040
        %5042 = vmatmul.bf16.gmra.mxu0 %v1503
        %v5043 = vpop.f32.mrf.mxu0
        %v5044 = vadd.f32 0.0, %v5043
        %v5045 = vpop.f32.mrf.mxu0
        %v5046 = vadd.f32 0.0, %v5045
        %5047 = vmatmul.bf16.gmra.mxu0 %v1505
        %v5048 = vpop.f32.mrf.mxu0
        %v5049 = vadd.f32 0.0, %v5048
        %v5050 = vpop.f32.mrf.mxu0
        %v5051 = vadd.f32 0.0, %v5050
        %5052 = vmatmul.bf16.gmra.mxu0 %v1507
        %v5053 = vpop.f32.mrf.mxu0
        %v5054 = vadd.f32 0.0, %v5053
        %v5055 = vpop.f32.mrf.mxu0
        %v5056 = vadd.f32 0.0, %v5055
        %5057 = vmatmul.bf16.gmra.mxu0 %v1509
        %v5058 = vpop.f32.mrf.mxu0
        %v5059 = vadd.f32 0.0, %v5058
        %v5060 = vpop.f32.mrf.mxu0
        %v5061 = vadd.f32 0.0, %v5060
        %5062 = vmatmul.bf16.gmra.mxu0 %v1511
        %v5063 = vpop.f32.mrf.mxu0
        %v5064 = vadd.f32 0.0, %v5063
        %v5065 = vpop.f32.mrf.mxu0
        %v5066 = vadd.f32 0.0, %v5065
        %5067 = vmatmul.bf16.gmra.mxu0 %v1513
        %v5068 = vpop.f32.mrf.mxu0
        %v5069 = vadd.f32 0.0, %v5068
        %v5070 = vpop.f32.mrf.mxu0
        %v5071 = vadd.f32 0.0, %v5070
        %5072 = vmatmul.bf16.gmra.mxu0 %v1515
        %v5073 = vpop.f32.mrf.mxu0
        %v5074 = vadd.f32 0.0, %v5073
        %v5075 = vpop.f32.mrf.mxu0
        %v5076 = vadd.f32 0.0, %v5075
        %5077 = vmatmul.bf16.gmra.mxu0 %v1517
        %v5078 = vpop.f32.mrf.mxu0
        %v5079 = vadd.f32 0.0, %v5078
        %v5080 = vpop.f32.mrf.mxu0
        %v5081 = vadd.f32 0.0, %v5080
        %5082 = vmatmul.bf16.gmra.mxu0 %v1519
        %v5083 = vpop.f32.mrf.mxu0
        %v5084 = vadd.f32 0.0, %v5083
        %v5085 = vpop.f32.mrf.mxu0
        %v5086 = vadd.f32 0.0, %v5085
        %5087 = vmatmul.bf16.gmra.mxu0 %v1521
        %v5088 = vpop.f32.mrf.mxu0
        %v5089 = vadd.f32 0.0, %v5088
        %v5090 = vpop.f32.mrf.mxu0
        %v5091 = vadd.f32 0.0, %v5090
        %5092 = vmatmul.bf16.gmra.mxu0 %v1523
        %v5093 = vpop.f32.mrf.mxu0
        %v5094 = vadd.f32 0.0, %v5093
        %v5095 = vpop.f32.mrf.mxu0
        %v5096 = vadd.f32 0.0, %v5095
        %5097 = vmatmul.bf16.gmra.mxu0 %v1525
        %v5098 = vpop.f32.mrf.mxu0
        %v5099 = vadd.f32 0.0, %v5098
        %v5100 = vpop.f32.mrf.mxu0
        %v5101 = vadd.f32 0.0, %v5100
        %5102 = vmatmul.bf16.gmra.mxu0 %v1527
        %v5103 = vpop.f32.mrf.mxu0
        %v5104 = vadd.f32 0.0, %v5103
        %v5105 = vpop.f32.mrf.mxu0
        %v5106 = vadd.f32 0.0, %v5105
        %5107 = vmatmul.bf16.gmra.mxu0 %v1529
        %v5108 = vpop.f32.mrf.mxu0
        %v5109 = vadd.f32 0.0, %v5108
        %v5110 = vpop.f32.mrf.mxu0
        %v5111 = vadd.f32 0.0, %v5110
        %5112 = vmatmul.bf16.gmra.mxu0 %v1531
        %v5113 = vpop.f32.mrf.mxu0
        %v5114 = vadd.f32 0.0, %v5113
        %v5115 = vpop.f32.mrf.mxu0
        %v5116 = vadd.f32 0.0, %v5115
        %5117 = vmatmul.bf16.gmra.mxu0 %v1533
        %v5118 = vpop.f32.mrf.mxu0
        %v5119 = vadd.f32 0.0, %v5118
        %v5120 = vpop.f32.mrf.mxu0
        %v5121 = vadd.f32 0.0, %v5120
        %5122 = vmatmul.bf16.gmra.mxu0 %v1535
        %v5123 = vpop.f32.mrf.mxu0
        %v5124 = vadd.f32 0.0, %v5123
        %v5125 = vpop.f32.mrf.mxu0
        %v5126 = vadd.f32 0.0, %v5125
        %5127 = vmatmul.bf16.gmra.mxu0 %v1537
        %v5128 = vpop.f32.mrf.mxu0
        %v5129 = vadd.f32 0.0, %v5128
        %v5130 = vpop.f32.mrf.mxu0
        %v5131 = vadd.f32 0.0, %v5130
        %5132 = vmatmul.bf16.gmra.mxu0 %v1539
        %v5133 = vpop.f32.mrf.mxu0
        %v5134 = vadd.f32 0.0, %v5133
        %v5135 = vpop.f32.mrf.mxu0
        %v5136 = vadd.f32 0.0, %v5135
        %5137 = vmatmul.bf16.gmra.mxu0 %v1541
        %v5138 = vpop.f32.mrf.mxu0
        %v5139 = vadd.f32 0.0, %v5138
        %v5140 = vpop.f32.mrf.mxu0
        %v5141 = vadd.f32 0.0, %v5140
        %5142 = vmatmul.bf16.gmra.mxu0 %v1543
        %v5143 = vpop.f32.mrf.mxu0
        %v5144 = vadd.f32 0.0, %v5143
        %v5145 = vpop.f32.mrf.mxu0
        %v5146 = vadd.f32 0.0, %v5145
        %5147 = vmatmul.bf16.gmra.mxu0 %v1545
        %v5148 = vpop.f32.mrf.mxu0
        %v5149 = vadd.f32 0.0, %v5148
        %v5150 = vpop.f32.mrf.mxu0
        %v5151 = vadd.f32 0.0, %v5150
        %5152 = vmatmul.bf16.gmra.mxu0 %v1547
        %v5153 = vpop.f32.mrf.mxu0
        %v5154 = vadd.f32 0.0, %v5153
        %v5155 = vpop.f32.mrf.mxu0
        %v5156 = vadd.f32 0.0, %v5155
        %5157 = vmatmul.bf16.gmra.mxu0 %v1549
        %v5158 = vpop.f32.mrf.mxu0
        %v5159 = vadd.f32 0.0, %v5158
        %v5160 = vpop.f32.mrf.mxu0
        %v5161 = vadd.f32 0.0, %v5160
        %5162 = vmatmul.bf16.gmra.mxu0 %v1551
        %v5163 = vpop.f32.mrf.mxu0
        %v5164 = vadd.f32 0.0, %v5163
        %v5165 = vpop.f32.mrf.mxu0
        %v5166 = vadd.f32 0.0, %v5165
        %5167 = vmatmul.bf16.gmra.mxu0 %v1553
        %v5168 = vpop.f32.mrf.mxu0
        %v5169 = vadd.f32 0.0, %v5168
        %v5170 = vpop.f32.mrf.mxu0
        %v5171 = vadd.f32 0.0, %v5170
        %5172 = vmatmul.bf16.gmra.mxu0 %v1555
        %v5173 = vpop.f32.mrf.mxu0
        %v5174 = vadd.f32 0.0, %v5173
        %v5175 = vpop.f32.mrf.mxu0
        %v5176 = vadd.f32 0.0, %v5175
        %5177 = vmatmul.bf16.gmra.mxu0 %v1557
        %v5178 = vpop.f32.mrf.mxu0
        %v5179 = vadd.f32 0.0, %v5178
        %v5180 = vpop.f32.mrf.mxu0
        %v5181 = vadd.f32 0.0, %v5180
        %5182 = vmatmul.bf16.gmra.mxu0 %v1559
        %v5183 = vpop.f32.mrf.mxu0
        %v5184 = vadd.f32 0.0, %v5183
        %v5185 = vpop.f32.mrf.mxu0
        %v5186 = vadd.f32 0.0, %v5185
        %5187 = vmatmul.bf16.gmra.mxu0 %v1561
        %v5188 = vpop.f32.mrf.mxu0
        %v5189 = vadd.f32 0.0, %v5188
        %v5190 = vpop.f32.mrf.mxu0
        %v5191 = vadd.f32 0.0, %v5190
        %5192 = vmatmul.bf16.gmra.mxu0 %v1563
        %v5193 = vpop.f32.mrf.mxu0
        %v5194 = vadd.f32 0.0, %v5193
        %v5195 = vpop.f32.mrf.mxu0
        %v5196 = vadd.f32 0.0, %v5195
        %5197 = vmatmul.bf16.gmra.mxu0 %v1565
        %v5198 = vpop.f32.mrf.mxu0
        %v5199 = vadd.f32 0.0, %v5198
        %v5200 = vpop.f32.mrf.mxu0
        %v5201 = vadd.f32 0.0, %v5200
        %5202 = vmatmul.bf16.gmra.mxu0 %v1567
        %v5203 = vpop.f32.mrf.mxu0
        %v5204 = vadd.f32 0.0, %v5203
        %v5205 = vpop.f32.mrf.mxu0
        %v5206 = vadd.f32 0.0, %v5205
        %5207 = vmatmul.bf16.gmra.mxu0 %v1569
        %v5208 = vpop.f32.mrf.mxu0
        %v5209 = vadd.f32 0.0, %v5208
        %v5210 = vpop.f32.mrf.mxu0
        %v5211 = vadd.f32 0.0, %v5210
        %5212 = vmatmul.bf16.gmra.mxu0 %v1571
        %v5213 = vpop.f32.mrf.mxu0
        %v5214 = vadd.f32 0.0, %v5213
        %v5215 = vpop.f32.mrf.mxu0
        %v5216 = vadd.f32 0.0, %v5215
        %5217 = vmatmul.bf16.gmra.mxu0 %v1573
        %v5218 = vpop.f32.mrf.mxu0
        %v5219 = vadd.f32 0.0, %v5218
        %v5220 = vpop.f32.mrf.mxu0
        %v5221 = vadd.f32 0.0, %v5220
        %5222 = vmatmul.bf16.gmra.mxu0 %v1575
        %v5223 = vpop.f32.mrf.mxu0
        %v5224 = vadd.f32 0.0, %v5223
        %v5225 = vpop.f32.mrf.mxu0
        %v5226 = vadd.f32 0.0, %v5225
        %5227 = vmatmul.bf16.gmra.mxu0 %v1577
        %v5228 = vpop.f32.mrf.mxu0
        %v5229 = vadd.f32 0.0, %v5228
        %v5230 = vpop.f32.mrf.mxu0
        %v5231 = vadd.f32 0.0, %v5230
        %5232 = vmatmul.bf16.gmra.mxu0 %v1579
        %v5233 = vpop.f32.mrf.mxu0
        %v5234 = vadd.f32 0.0, %v5233
        %v5235 = vpop.f32.mrf.mxu0
        %v5236 = vadd.f32 0.0, %v5235
        %5237 = vmatmul.bf16.gmra.mxu0 %v1581
        %v5238 = vpop.f32.mrf.mxu0
        %v5239 = vadd.f32 0.0, %v5238
        %v5240 = vpop.f32.mrf.mxu0
        %v5241 = vadd.f32 0.0, %v5240
        %5242 = vmatmul.bf16.gmra.mxu0 %v1583
        %v5243 = vpop.f32.mrf.mxu0
        %v5244 = vadd.f32 0.0, %v5243
        %v5245 = vpop.f32.mrf.mxu0
        %v5246 = vadd.f32 0.0, %v5245
        %5247 = vmatmul.bf16.gmra.mxu0 %v1585
        %v5248 = vpop.f32.mrf.mxu0
        %v5249 = vadd.f32 0.0, %v5248
        %v5250 = vpop.f32.mrf.mxu0
        %v5251 = vadd.f32 0.0, %v5250
        %5252 = vmatmul.bf16.gmra.mxu0 %v1587
        %v5253 = vpop.f32.mrf.mxu0
        %v5254 = vadd.f32 0.0, %v5253
        %v5255 = vpop.f32.mrf.mxu0
        %v5256 = vadd.f32 0.0, %v5255
        %5257 = vmatmul.bf16.gmra.mxu0 %v1589
        %v5258 = vpop.f32.mrf.mxu0
        %v5259 = vadd.f32 0.0, %v5258
        %v5260 = vpop.f32.mrf.mxu0
        %v5261 = vadd.f32 0.0, %v5260
        %5262 = vmatmul.bf16.gmra.mxu0 %v1591
        %v5263 = vpop.f32.mrf.mxu0
        %v5264 = vadd.f32 0.0, %v5263
        %v5265 = vpop.f32.mrf.mxu0
        %v5266 = vadd.f32 0.0, %v5265
        %5267 = vmatmul.bf16.gmra.mxu0 %v1593
        %v5268 = vpop.f32.mrf.mxu0
        %v5269 = vadd.f32 0.0, %v5268
        %v5270 = vpop.f32.mrf.mxu0
        %v5271 = vadd.f32 0.0, %v5270
        %5272 = vmatmul.bf16.gmra.mxu0 %v1595
        %v5273 = vpop.f32.mrf.mxu0
        %v5274 = vadd.f32 0.0, %v5273
        %v5275 = vpop.f32.mrf.mxu0
        %v5276 = vadd.f32 0.0, %v5275
        %5277 = vmatmul.bf16.gmra.mxu0 %v1597
        %v5278 = vpop.f32.mrf.mxu0
        %v5279 = vadd.f32 0.0, %v5278
        %v5280 = vpop.f32.mrf.mxu0
        %v5281 = vadd.f32 0.0, %v5280
        %5282 = vmatmul.bf16.gmra.mxu0 %v1599
        %v5283 = vpop.f32.mrf.mxu0
        %v5284 = vadd.f32 0.0, %v5283
        %v5285 = vpop.f32.mrf.mxu0
        %v5286 = vadd.f32 0.0, %v5285
        %5287 = vmatmul.bf16.gmra.mxu0 %v1601
        %v5288 = vpop.f32.mrf.mxu0
        %v5289 = vadd.f32 0.0, %v5288
        %v5290 = vpop.f32.mrf.mxu0
        %v5291 = vadd.f32 0.0, %v5290
        %5292 = vmatmul.bf16.gmra.mxu0 %v1603
        %v5293 = vpop.f32.mrf.mxu0
        %v5294 = vadd.f32 0.0, %v5293
        %v5295 = vpop.f32.mrf.mxu0
        %v5296 = vadd.f32 0.0, %v5295
        %5297 = vdwg.mxu0
        %5298 = vmatpush.bf16.msra.mxu0 %v4952
        %5299 = vmatpush.bf16.msra.mxu0 %v4951
        %5300 = vmatpush.bf16.msra.mxu0 %v4950
        %5301 = vmatpush.bf16.msra.mxu0 %v4949
        %5302 = vmatpush.bf16.msra.mxu0 %v4948
        %5303 = vmatpush.bf16.msra.mxu0 %v4947
        %5304 = vmatpush.bf16.msra.mxu0 %v4946
        %5305 = vmatpush.bf16.msra.mxu0 %v4945
        %5306 = vmatmul.bf16.gmra.mxu0 %v1478
        %v5307 = vpop.f32.mrf.mxu0
        %v5308 = vadd.f32 %v4979, %v5307
        %v5309 = vpop.f32.mrf.mxu0
        %v5310 = vadd.f32 %v4981, %v5309
        %5311 = vmatmul.bf16.gmra.mxu0 %v1480
        %v5312 = vpop.f32.mrf.mxu0
        %v5313 = vadd.f32 %v4984, %v5312
        %v5314 = vpop.f32.mrf.mxu0
        %v5315 = vadd.f32 %v4986, %v5314
        %5316 = vmatmul.bf16.gmra.mxu0 %v1482
        %v5317 = vpop.f32.mrf.mxu0
        %v5318 = vadd.f32 %v4989, %v5317
        %v5319 = vpop.f32.mrf.mxu0
        %v5320 = vadd.f32 %v4991, %v5319
        %5321 = vmatmul.bf16.gmra.mxu0 %v1484
        %v5322 = vpop.f32.mrf.mxu0
        %v5323 = vadd.f32 %v4994, %v5322
        %v5324 = vpop.f32.mrf.mxu0
        %v5325 = vadd.f32 %v4996, %v5324
        %5326 = vmatmul.bf16.gmra.mxu0 %v1486
        %v5327 = vpop.f32.mrf.mxu0
        %v5328 = vadd.f32 %v4999, %v5327
        %v5329 = vpop.f32.mrf.mxu0
        %v5330 = vadd.f32 %v5001, %v5329
        %5331 = vmatmul.bf16.gmra.mxu0 %v1488
        %v5332 = vpop.f32.mrf.mxu0
        %v5333 = vadd.f32 %v5004, %v5332
        %v5334 = vpop.f32.mrf.mxu0
        %v5335 = vadd.f32 %v5006, %v5334
        %5336 = vmatmul.bf16.gmra.mxu0 %v1490
        %v5337 = vpop.f32.mrf.mxu0
        %v5338 = vadd.f32 %v5009, %v5337
        %v5339 = vpop.f32.mrf.mxu0
        %v5340 = vadd.f32 %v5011, %v5339
        %5341 = vmatmul.bf16.gmra.mxu0 %v1492
        %v5342 = vpop.f32.mrf.mxu0
        %v5343 = vadd.f32 %v5014, %v5342
        %v5344 = vpop.f32.mrf.mxu0
        %v5345 = vadd.f32 %v5016, %v5344
        %5346 = vmatmul.bf16.gmra.mxu0 %v1494
        %v5347 = vpop.f32.mrf.mxu0
        %v5348 = vadd.f32 %v5019, %v5347
        %v5349 = vpop.f32.mrf.mxu0
        %v5350 = vadd.f32 %v5021, %v5349
        %5351 = vmatmul.bf16.gmra.mxu0 %v1496
        %v5352 = vpop.f32.mrf.mxu0
        %v5353 = vadd.f32 %v5024, %v5352
        %v5354 = vpop.f32.mrf.mxu0
        %v5355 = vadd.f32 %v5026, %v5354
        %5356 = vmatmul.bf16.gmra.mxu0 %v1498
        %v5357 = vpop.f32.mrf.mxu0
        %v5358 = vadd.f32 %v5029, %v5357
        %v5359 = vpop.f32.mrf.mxu0
        %v5360 = vadd.f32 %v5031, %v5359
        %5361 = vmatmul.bf16.gmra.mxu0 %v1500
        %v5362 = vpop.f32.mrf.mxu0
        %v5363 = vadd.f32 %v5034, %v5362
        %v5364 = vpop.f32.mrf.mxu0
        %v5365 = vadd.f32 %v5036, %v5364
        %5366 = vmatmul.bf16.gmra.mxu0 %v1502
        %v5367 = vpop.f32.mrf.mxu0
        %v5368 = vadd.f32 %v5039, %v5367
        %v5369 = vpop.f32.mrf.mxu0
        %v5370 = vadd.f32 %v5041, %v5369
        %5371 = vmatmul.bf16.gmra.mxu0 %v1504
        %v5372 = vpop.f32.mrf.mxu0
        %v5373 = vadd.f32 %v5044, %v5372
        %v5374 = vpop.f32.mrf.mxu0
        %v5375 = vadd.f32 %v5046, %v5374
        %5376 = vmatmul.bf16.gmra.mxu0 %v1506
        %v5377 = vpop.f32.mrf.mxu0
        %v5378 = vadd.f32 %v5049, %v5377
        %v5379 = vpop.f32.mrf.mxu0
        %v5380 = vadd.f32 %v5051, %v5379
        %5381 = vmatmul.bf16.gmra.mxu0 %v1508
        %v5382 = vpop.f32.mrf.mxu0
        %v5383 = vadd.f32 %v5054, %v5382
        %v5384 = vpop.f32.mrf.mxu0
        %v5385 = vadd.f32 %v5056, %v5384
        %5386 = vmatmul.bf16.gmra.mxu0 %v1510
        %v5387 = vpop.f32.mrf.mxu0
        %v5388 = vadd.f32 %v5059, %v5387
        %v5389 = vpop.f32.mrf.mxu0
        %v5390 = vadd.f32 %v5061, %v5389
        %5391 = vmatmul.bf16.gmra.mxu0 %v1512
        %v5392 = vpop.f32.mrf.mxu0
        %v5393 = vadd.f32 %v5064, %v5392
        %v5394 = vpop.f32.mrf.mxu0
        %v5395 = vadd.f32 %v5066, %v5394
        %5396 = vmatmul.bf16.gmra.mxu0 %v1514
        %v5397 = vpop.f32.mrf.mxu0
        %v5398 = vadd.f32 %v5069, %v5397
        %v5399 = vpop.f32.mrf.mxu0
        %v5400 = vadd.f32 %v5071, %v5399
        %5401 = vmatmul.bf16.gmra.mxu0 %v1516
        %v5402 = vpop.f32.mrf.mxu0
        %v5403 = vadd.f32 %v5074, %v5402
        %v5404 = vpop.f32.mrf.mxu0
        %v5405 = vadd.f32 %v5076, %v5404
        %5406 = vmatmul.bf16.gmra.mxu0 %v1518
        %v5407 = vpop.f32.mrf.mxu0
        %v5408 = vadd.f32 %v5079, %v5407
        %v5409 = vpop.f32.mrf.mxu0
        %v5410 = vadd.f32 %v5081, %v5409
        %5411 = vmatmul.bf16.gmra.mxu0 %v1520
        %v5412 = vpop.f32.mrf.mxu0
        %v5413 = vadd.f32 %v5084, %v5412
        %v5414 = vpop.f32.mrf.mxu0
        %v5415 = vadd.f32 %v5086, %v5414
        %5416 = vmatmul.bf16.gmra.mxu0 %v1522
        %v5417 = vpop.f32.mrf.mxu0
        %v5418 = vadd.f32 %v5089, %v5417
        %v5419 = vpop.f32.mrf.mxu0
        %v5420 = vadd.f32 %v5091, %v5419
        %5421 = vmatmul.bf16.gmra.mxu0 %v1524
        %v5422 = vpop.f32.mrf.mxu0
        %v5423 = vadd.f32 %v5094, %v5422
        %v5424 = vpop.f32.mrf.mxu0
        %v5425 = vadd.f32 %v5096, %v5424
        %5426 = vmatmul.bf16.gmra.mxu0 %v1526
        %v5427 = vpop.f32.mrf.mxu0
        %v5428 = vadd.f32 %v5099, %v5427
        %v5429 = vpop.f32.mrf.mxu0
        %v5430 = vadd.f32 %v5101, %v5429
        %5431 = vmatmul.bf16.gmra.mxu0 %v1528
        %v5432 = vpop.f32.mrf.mxu0
        %v5433 = vadd.f32 %v5104, %v5432
        %v5434 = vpop.f32.mrf.mxu0
        %v5435 = vadd.f32 %v5106, %v5434
        %5436 = vmatmul.bf16.gmra.mxu0 %v1530
        %v5437 = vpop.f32.mrf.mxu0
        %v5438 = vadd.f32 %v5109, %v5437
        %v5439 = vpop.f32.mrf.mxu0
        %v5440 = vadd.f32 %v5111, %v5439
        %5441 = vmatmul.bf16.gmra.mxu0 %v1532
        %v5442 = vpop.f32.mrf.mxu0
        %v5443 = vadd.f32 %v5114, %v5442
        %v5444 = vpop.f32.mrf.mxu0
        %v5445 = vadd.f32 %v5116, %v5444
        %5446 = vmatmul.bf16.gmra.mxu0 %v1534
        %v5447 = vpop.f32.mrf.mxu0
        %v5448 = vadd.f32 %v5119, %v5447
        %v5449 = vpop.f32.mrf.mxu0
        %v5450 = vadd.f32 %v5121, %v5449
        %5451 = vmatmul.bf16.gmra.mxu0 %v1536
        %v5452 = vpop.f32.mrf.mxu0
        %v5453 = vadd.f32 %v5124, %v5452
        %v5454 = vpop.f32.mrf.mxu0
        %v5455 = vadd.f32 %v5126, %v5454
        %5456 = vmatmul.bf16.gmra.mxu0 %v1538
        %v5457 = vpop.f32.mrf.mxu0
        %v5458 = vadd.f32 %v5129, %v5457
        %v5459 = vpop.f32.mrf.mxu0
        %v5460 = vadd.f32 %v5131, %v5459
        %5461 = vmatmul.bf16.gmra.mxu0 %v1540
        %v5462 = vpop.f32.mrf.mxu0
        %v5463 = vadd.f32 %v5134, %v5462
        %v5464 = vpop.f32.mrf.mxu0
        %v5465 = vadd.f32 %v5136, %v5464
        %5466 = vmatmul.bf16.gmra.mxu0 %v1542
        %v5467 = vpop.f32.mrf.mxu0
        %v5468 = vadd.f32 %v5139, %v5467
        %v5469 = vpop.f32.mrf.mxu0
        %v5470 = vadd.f32 %v5141, %v5469
        %5471 = vmatmul.bf16.gmra.mxu0 %v1544
        %v5472 = vpop.f32.mrf.mxu0
        %v5473 = vadd.f32 %v5144, %v5472
        %v5474 = vpop.f32.mrf.mxu0
        %v5475 = vadd.f32 %v5146, %v5474
        %5476 = vmatmul.bf16.gmra.mxu0 %v1546
        %v5477 = vpop.f32.mrf.mxu0
        %v5478 = vadd.f32 %v5149, %v5477
        %v5479 = vpop.f32.mrf.mxu0
        %v5480 = vadd.f32 %v5151, %v5479
        %5481 = vmatmul.bf16.gmra.mxu0 %v1548
        %v5482 = vpop.f32.mrf.mxu0
        %v5483 = vadd.f32 %v5154, %v5482
        %v5484 = vpop.f32.mrf.mxu0
        %v5485 = vadd.f32 %v5156, %v5484
        %5486 = vmatmul.bf16.gmra.mxu0 %v1550
        %v5487 = vpop.f32.mrf.mxu0
        %v5488 = vadd.f32 %v5159, %v5487
        %v5489 = vpop.f32.mrf.mxu0
        %v5490 = vadd.f32 %v5161, %v5489
        %5491 = vmatmul.bf16.gmra.mxu0 %v1552
        %v5492 = vpop.f32.mrf.mxu0
        %v5493 = vadd.f32 %v5164, %v5492
        %v5494 = vpop.f32.mrf.mxu0
        %v5495 = vadd.f32 %v5166, %v5494
        %5496 = vmatmul.bf16.gmra.mxu0 %v1554
        %v5497 = vpop.f32.mrf.mxu0
        %v5498 = vadd.f32 %v5169, %v5497
        %v5499 = vpop.f32.mrf.mxu0
        %v5500 = vadd.f32 %v5171, %v5499
        %5501 = vmatmul.bf16.gmra.mxu0 %v1556
        %v5502 = vpop.f32.mrf.mxu0
        %v5503 = vadd.f32 %v5174, %v5502
        %v5504 = vpop.f32.mrf.mxu0
        %v5505 = vadd.f32 %v5176, %v5504
        %5506 = vmatmul.bf16.gmra.mxu0 %v1558
        %v5507 = vpop.f32.mrf.mxu0
        %v5508 = vadd.f32 %v5179, %v5507
        %v5509 = vpop.f32.mrf.mxu0
        %v5510 = vadd.f32 %v5181, %v5509
        %5511 = vmatmul.bf16.gmra.mxu0 %v1560
        %v5512 = vpop.f32.mrf.mxu0
        %v5513 = vadd.f32 %v5184, %v5512
        %v5514 = vpop.f32.mrf.mxu0
        %v5515 = vadd.f32 %v5186, %v5514
        %5516 = vmatmul.bf16.gmra.mxu0 %v1562
        %v5517 = vpop.f32.mrf.mxu0
        %v5518 = vadd.f32 %v5189, %v5517
        %v5519 = vpop.f32.mrf.mxu0
        %v5520 = vadd.f32 %v5191, %v5519
        %5521 = vmatmul.bf16.gmra.mxu0 %v1564
        %v5522 = vpop.f32.mrf.mxu0
        %v5523 = vadd.f32 %v5194, %v5522
        %v5524 = vpop.f32.mrf.mxu0
        %v5525 = vadd.f32 %v5196, %v5524
        %5526 = vmatmul.bf16.gmra.mxu0 %v1566
        %v5527 = vpop.f32.mrf.mxu0
        %v5528 = vadd.f32 %v5199, %v5527
        %v5529 = vpop.f32.mrf.mxu0
        %v5530 = vadd.f32 %v5201, %v5529
        %5531 = vmatmul.bf16.gmra.mxu0 %v1568
        %v5532 = vpop.f32.mrf.mxu0
        %v5533 = vadd.f32 %v5204, %v5532
        %v5534 = vpop.f32.mrf.mxu0
        %v5535 = vadd.f32 %v5206, %v5534
        %5536 = vmatmul.bf16.gmra.mxu0 %v1570
        %v5537 = vpop.f32.mrf.mxu0
        %v5538 = vadd.f32 %v5209, %v5537
        %v5539 = vpop.f32.mrf.mxu0
        %v5540 = vadd.f32 %v5211, %v5539
        %5541 = vmatmul.bf16.gmra.mxu0 %v1572
        %v5542 = vpop.f32.mrf.mxu0
        %v5543 = vadd.f32 %v5214, %v5542
        %v5544 = vpop.f32.mrf.mxu0
        %v5545 = vadd.f32 %v5216, %v5544
        %5546 = vmatmul.bf16.gmra.mxu0 %v1574
        %v5547 = vpop.f32.mrf.mxu0
        %v5548 = vadd.f32 %v5219, %v5547
        %v5549 = vpop.f32.mrf.mxu0
        %v5550 = vadd.f32 %v5221, %v5549
        %5551 = vmatmul.bf16.gmra.mxu0 %v1576
        %v5552 = vpop.f32.mrf.mxu0
        %v5553 = vadd.f32 %v5224, %v5552
        %v5554 = vpop.f32.mrf.mxu0
        %v5555 = vadd.f32 %v5226, %v5554
        %5556 = vmatmul.bf16.gmra.mxu0 %v1578
        %v5557 = vpop.f32.mrf.mxu0
        %v5558 = vadd.f32 %v5229, %v5557
        %v5559 = vpop.f32.mrf.mxu0
        %v5560 = vadd.f32 %v5231, %v5559
        %5561 = vmatmul.bf16.gmra.mxu0 %v1580
        %v5562 = vpop.f32.mrf.mxu0
        %v5563 = vadd.f32 %v5234, %v5562
        %v5564 = vpop.f32.mrf.mxu0
        %v5565 = vadd.f32 %v5236, %v5564
        %5566 = vmatmul.bf16.gmra.mxu0 %v1582
        %v5567 = vpop.f32.mrf.mxu0
        %v5568 = vadd.f32 %v5239, %v5567
        %v5569 = vpop.f32.mrf.mxu0
        %v5570 = vadd.f32 %v5241, %v5569
        %5571 = vmatmul.bf16.gmra.mxu0 %v1584
        %v5572 = vpop.f32.mrf.mxu0
        %v5573 = vadd.f32 %v5244, %v5572
        %v5574 = vpop.f32.mrf.mxu0
        %v5575 = vadd.f32 %v5246, %v5574
        %5576 = vmatmul.bf16.gmra.mxu0 %v1586
        %v5577 = vpop.f32.mrf.mxu0
        %v5578 = vadd.f32 %v5249, %v5577
        %v5579 = vpop.f32.mrf.mxu0
        %v5580 = vadd.f32 %v5251, %v5579
        %5581 = vmatmul.bf16.gmra.mxu0 %v1588
        %v5582 = vpop.f32.mrf.mxu0
        %v5583 = vadd.f32 %v5254, %v5582
        %v5584 = vpop.f32.mrf.mxu0
        %v5585 = vadd.f32 %v5256, %v5584
        %5586 = vmatmul.bf16.gmra.mxu0 %v1590
        %v5587 = vpop.f32.mrf.mxu0
        %v5588 = vadd.f32 %v5259, %v5587
        %v5589 = vpop.f32.mrf.mxu0
        %v5590 = vadd.f32 %v5261, %v5589
        %5591 = vmatmul.bf16.gmra.mxu0 %v1592
        %v5592 = vpop.f32.mrf.mxu0
        %v5593 = vadd.f32 %v5264, %v5592
        %v5594 = vpop.f32.mrf.mxu0
        %v5595 = vadd.f32 %v5266, %v5594
        %5596 = vmatmul.bf16.gmra.mxu0 %v1594
        %v5597 = vpop.f32.mrf.mxu0
        %v5598 = vadd.f32 %v5269, %v5597
        %v5599 = vpop.f32.mrf.mxu0
        %v5600 = vadd.f32 %v5271, %v5599
        %5601 = vmatmul.bf16.gmra.mxu0 %v1596
        %v5602 = vpop.f32.mrf.mxu0
        %v5603 = vadd.f32 %v5274, %v5602
        %v5604 = vpop.f32.mrf.mxu0
        %v5605 = vadd.f32 %v5276, %v5604
        %5606 = vmatmul.bf16.gmra.mxu0 %v1598
        %v5607 = vpop.f32.mrf.mxu0
        %v5608 = vadd.f32 %v5279, %v5607
        %v5609 = vpop.f32.mrf.mxu0
        %v5610 = vadd.f32 %v5281, %v5609
        %5611 = vmatmul.bf16.gmra.mxu0 %v1600
        %v5612 = vpop.f32.mrf.mxu0
        %v5613 = vadd.f32 %v5284, %v5612
        %v5614 = vpop.f32.mrf.mxu0
        %v5615 = vadd.f32 %v5286, %v5614
        %5616 = vmatmul.bf16.gmra.mxu0 %v1602
        %v5617 = vpop.f32.mrf.mxu0
        %v5618 = vadd.f32 %v5289, %v5617
        %v5619 = vpop.f32.mrf.mxu0
        %v5620 = vadd.f32 %v5291, %v5619
        %5621 = vmatmul.bf16.gmra.mxu0 %v1604
        %v5622 = vpop.f32.mrf.mxu0
        %v5623 = vadd.f32 %v5294, %v5622
        %v5624 = vpop.f32.mrf.mxu0
        %v5625 = vadd.f32 %v5296, %v5624
        %5626 = vdwg.mxu0
        %5627 = vset.pattern.permute.xlu0 2
        %5628 = vperm.xlu0 %5627, %v1605
        %v5629 = vpop.permute.xlu0 %5628
        %5631 = vset.pattern.permute.xlu0 2
        %5632 = vperm.xlu0 %5631, %v1606
        %v5633 = vpop.permute.xlu0 %5632
        %5635 = vset.pattern.permute.xlu0 2
        %5636 = vperm.xlu0 %5635, %v1607
        %v5637 = vpop.permute.xlu0 %5636
        %5639 = vset.pattern.permute.xlu0 2
        %5640 = vperm.xlu0 %5639, %v1608
        %v5641 = vpop.permute.xlu0 %5640
        %5643 = vset.pattern.permute.xlu0 2
        %5644 = vperm.xlu0 %5643, %v1609
        %v5645 = vpop.permute.xlu0 %5644
        %5647 = vset.pattern.permute.xlu0 2
        %5648 = vperm.xlu0 %5647, %v1610
        %v5649 = vpop.permute.xlu0 %5648
        %5651 = vset.pattern.permute.xlu0 2
        %5652 = vperm.xlu0 %5651, %v1611
        %v5653 = vpop.permute.xlu0 %5652
        %5655 = vset.pattern.permute.xlu0 2
        %5656 = vperm.xlu0 %5655, %v1612
        %v5657 = vpop.permute.xlu0 %5656
        %5659 = vset.pattern.permute.xlu0 2
        %5660 = vperm.xlu0 %5659, %v1613
        %v5661 = vpop.permute.xlu0 %5660
        %5663 = vset.pattern.permute.xlu0 2
        %5664 = vperm.xlu0 %5663, %v1614
        %v5665 = vpop.permute.xlu0 %5664
        %5667 = vset.pattern.permute.xlu0 2
        %5668 = vperm.xlu0 %5667, %v1615
        %v5669 = vpop.permute.xlu0 %5668
        %5671 = vset.pattern.permute.xlu0 2
        %5672 = vperm.xlu0 %5671, %v1616
        %v5673 = vpop.permute.xlu0 %5672
        %5675 = vset.pattern.permute.xlu0 2
        %5676 = vperm.xlu0 %5675, %v1617
        %v5677 = vpop.permute.xlu0 %5676
        %5679 = vset.pattern.permute.xlu0 2
        %5680 = vperm.xlu0 %5679, %v1618
        %v5681 = vpop.permute.xlu0 %5680
        %5683 = vset.pattern.permute.xlu0 2
        %5684 = vperm.xlu0 %5683, %v1619
        %v5685 = vpop.permute.xlu0 %5684
        %5687 = vset.pattern.permute.xlu0 2
        %5688 = vperm.xlu0 %5687, %v1620
        %v5689 = vpop.permute.xlu0 %5688
        %5691 = vset.pattern.permute.xlu0 2
        %5692 = vperm.xlu0 %5691, %v1621
        %v5693 = vpop.permute.xlu0 %5692
        %5695 = vset.pattern.permute.xlu0 2
        %5696 = vperm.xlu0 %5695, %v1622
        %v5697 = vpop.permute.xlu0 %5696
        %5699 = vset.pattern.permute.xlu0 2
        %5700 = vperm.xlu0 %5699, %v1623
        %v5701 = vpop.permute.xlu0 %5700
        %5703 = vset.pattern.permute.xlu0 2
        %5704 = vperm.xlu0 %5703, %v1624
        %v5705 = vpop.permute.xlu0 %5704
        %5707 = vset.pattern.permute.xlu0 2
        %5708 = vperm.xlu0 %5707, %v1625
        %v5709 = vpop.permute.xlu0 %5708
        %5711 = vset.pattern.permute.xlu0 2
        %5712 = vperm.xlu0 %5711, %v1626
        %v5713 = vpop.permute.xlu0 %5712
        %5715 = vset.pattern.permute.xlu0 2
        %5716 = vperm.xlu0 %5715, %v1627
        %v5717 = vpop.permute.xlu0 %5716
        %5719 = vset.pattern.permute.xlu0 2
        %5720 = vperm.xlu0 %5719, %v1628
        %v5721 = vpop.permute.xlu0 %5720
        %5723 = vset.pattern.permute.xlu0 2
        %5724 = vperm.xlu0 %5723, %v1629
        %v5725 = vpop.permute.xlu0 %5724
        %5727 = vset.pattern.permute.xlu0 2
        %5728 = vperm.xlu0 %5727, %v1630
        %v5729 = vpop.permute.xlu0 %5728
        %5731 = vset.pattern.permute.xlu0 2
        %5732 = vperm.xlu0 %5731, %v1631
        %v5733 = vpop.permute.xlu0 %5732
        %5735 = vset.pattern.permute.xlu0 2
        %5736 = vperm.xlu0 %5735, %v1632
        %v5737 = vpop.permute.xlu0 %5736
        %5739 = vset.pattern.permute.xlu0 2
        %5740 = vperm.xlu0 %5739, %v1633
        %v5741 = vpop.permute.xlu0 %5740
        %5743 = vset.pattern.permute.xlu0 2
        %5744 = vperm.xlu0 %5743, %v1634
        %v5745 = vpop.permute.xlu0 %5744
        %5747 = vset.pattern.permute.xlu0 2
        %5748 = vperm.xlu0 %5747, %v1635
        %v5749 = vpop.permute.xlu0 %5748
        %5751 = vset.pattern.permute.xlu0 2
        %5752 = vperm.xlu0 %5751, %v1636
        %v5753 = vpop.permute.xlu0 %5752
        %5755 = vset.pattern.permute.xlu0 2
        %5756 = vperm.xlu0 %5755, %v1637
        %v5757 = vpop.permute.xlu0 %5756
        %5759 = vset.pattern.permute.xlu0 2
        %5760 = vperm.xlu0 %5759, %v1638
        %v5761 = vpop.permute.xlu0 %5760
        %5763 = vset.pattern.permute.xlu0 2
        %5764 = vperm.xlu0 %5763, %v1639
        %v5765 = vpop.permute.xlu0 %5764
        %5767 = vset.pattern.permute.xlu0 2
        %5768 = vperm.xlu0 %5767, %v1640
        %v5769 = vpop.permute.xlu0 %5768
        %5771 = vset.pattern.permute.xlu0 2
        %5772 = vperm.xlu0 %5771, %v1641
        %v5773 = vpop.permute.xlu0 %5772
        %5775 = vset.pattern.permute.xlu0 2
        %5776 = vperm.xlu0 %5775, %v1642
        %v5777 = vpop.permute.xlu0 %5776
        %5779 = vset.pattern.permute.xlu0 2
        %5780 = vperm.xlu0 %5779, %v1643
        %v5781 = vpop.permute.xlu0 %5780
        %5783 = vset.pattern.permute.xlu0 2
        %5784 = vperm.xlu0 %5783, %v1644
        %v5785 = vpop.permute.xlu0 %5784
        %5787 = vset.pattern.permute.xlu0 2
        %5788 = vperm.xlu0 %5787, %v1645
        %v5789 = vpop.permute.xlu0 %5788
        %5791 = vset.pattern.permute.xlu0 2
        %5792 = vperm.xlu0 %5791, %v1646
        %v5793 = vpop.permute.xlu0 %5792
        %5795 = vset.pattern.permute.xlu0 2
        %5796 = vperm.xlu0 %5795, %v1647
        %v5797 = vpop.permute.xlu0 %5796
        %5799 = vset.pattern.permute.xlu0 2
        %5800 = vperm.xlu0 %5799, %v1648
        %v5801 = vpop.permute.xlu0 %5800
        %5803 = vset.pattern.permute.xlu0 2
        %5804 = vperm.xlu0 %5803, %v1649
        %v5805 = vpop.permute.xlu0 %5804
        %5807 = vset.pattern.permute.xlu0 2
        %5808 = vperm.xlu0 %5807, %v1650
        %v5809 = vpop.permute.xlu0 %5808
        %5811 = vset.pattern.permute.xlu0 2
        %5812 = vperm.xlu0 %5811, %v1651
        %v5813 = vpop.permute.xlu0 %5812
        %5815 = vset.pattern.permute.xlu0 2
        %5816 = vperm.xlu0 %5815, %v1652
        %v5817 = vpop.permute.xlu0 %5816
        %5819 = vset.pattern.permute.xlu0 2
        %5820 = vperm.xlu0 %5819, %v1653
        %v5821 = vpop.permute.xlu0 %5820
        %5823 = vset.pattern.permute.xlu0 2
        %5824 = vperm.xlu0 %5823, %v1654
        %v5825 = vpop.permute.xlu0 %5824
        %5827 = vset.pattern.permute.xlu0 2
        %5828 = vperm.xlu0 %5827, %v1655
        %v5829 = vpop.permute.xlu0 %5828
        %5831 = vset.pattern.permute.xlu0 2
        %5832 = vperm.xlu0 %5831, %v1656
        %v5833 = vpop.permute.xlu0 %5832
        %5835 = vset.pattern.permute.xlu0 2
        %5836 = vperm.xlu0 %5835, %v1657
        %v5837 = vpop.permute.xlu0 %5836
        %5839 = vset.pattern.permute.xlu0 2
        %5840 = vperm.xlu0 %5839, %v1658
        %v5841 = vpop.permute.xlu0 %5840
        %5843 = vset.pattern.permute.xlu0 2
        %5844 = vperm.xlu0 %5843, %v1659
        %v5845 = vpop.permute.xlu0 %5844
        %5847 = vset.pattern.permute.xlu0 2
        %5848 = vperm.xlu0 %5847, %v1660
        %v5849 = vpop.permute.xlu0 %5848
        %5851 = vset.pattern.permute.xlu0 2
        %5852 = vperm.xlu0 %5851, %v1661
        %v5853 = vpop.permute.xlu0 %5852
        %5855 = vset.pattern.permute.xlu0 2
        %5856 = vperm.xlu0 %5855, %v1662
        %v5857 = vpop.permute.xlu0 %5856
        %5859 = vset.pattern.permute.xlu0 2
        %5860 = vperm.xlu0 %5859, %v1663
        %v5861 = vpop.permute.xlu0 %5860
        %5863 = vset.pattern.permute.xlu0 2
        %5864 = vperm.xlu0 %5863, %v1664
        %v5865 = vpop.permute.xlu0 %5864
        %5867 = vset.pattern.permute.xlu0 2
        %5868 = vperm.xlu0 %5867, %v1665
        %v5869 = vpop.permute.xlu0 %5868
        %5871 = vset.pattern.permute.xlu0 2
        %5872 = vperm.xlu0 %5871, %v1666
        %v5873 = vpop.permute.xlu0 %5872
        %5875 = vset.pattern.permute.xlu0 2
        %5876 = vperm.xlu0 %5875, %v1667
        %v5877 = vpop.permute.xlu0 %5876
        %5879 = vset.pattern.permute.xlu0 2
        %5880 = vperm.xlu0 %5879, %v1668
        %v5881 = vpop.permute.xlu0 %5880
        %5883 = vset.pattern.permute.xlu0 2
        %5884 = vperm.xlu0 %5883, %v1669
        %v5885 = vpop.permute.xlu0 %5884
        %5887 = vset.pattern.permute.xlu0 2
        %5888 = vperm.xlu0 %5887, %v1670
        %v5889 = vpop.permute.xlu0 %5888
        %5891 = vset.pattern.permute.xlu0 2
        %5892 = vperm.xlu0 %5891, %v1671
        %v5893 = vpop.permute.xlu0 %5892
        %5895 = vset.pattern.permute.xlu0 2
        %5896 = vperm.xlu0 %5895, %v1672
        %v5897 = vpop.permute.xlu0 %5896
        %5899 = vset.pattern.permute.xlu0 2
        %5900 = vperm.xlu0 %5899, %v1673
        %v5901 = vpop.permute.xlu0 %5900
        %5903 = vset.pattern.permute.xlu0 2
        %5904 = vperm.xlu0 %5903, %v1674
        %v5905 = vpop.permute.xlu0 %5904
        %5907 = vset.pattern.permute.xlu0 2
        %5908 = vperm.xlu0 %5907, %v1675
        %v5909 = vpop.permute.xlu0 %5908
        %5911 = vset.pattern.permute.xlu0 2
        %5912 = vperm.xlu0 %5911, %v1676
        %v5913 = vpop.permute.xlu0 %5912
        %5915 = vset.pattern.permute.xlu0 2
        %5916 = vperm.xlu0 %5915, %v1677
        %v5917 = vpop.permute.xlu0 %5916
        %5919 = vset.pattern.permute.xlu0 2
        %5920 = vperm.xlu0 %5919, %v1678
        %v5921 = vpop.permute.xlu0 %5920
        %5923 = vset.pattern.permute.xlu0 2
        %5924 = vperm.xlu0 %5923, %v1679
        %v5925 = vpop.permute.xlu0 %5924
        %5927 = vset.pattern.permute.xlu0 2
        %5928 = vperm.xlu0 %5927, %v1680
        %v5929 = vpop.permute.xlu0 %5928
        %5931 = vset.pattern.permute.xlu0 2
        %5932 = vperm.xlu0 %5931, %v1681
        %v5933 = vpop.permute.xlu0 %5932
        %5935 = vset.pattern.permute.xlu0 2
        %5936 = vperm.xlu0 %5935, %v1682
        %v5937 = vpop.permute.xlu0 %5936
        %5939 = vset.pattern.permute.xlu0 2
        %5940 = vperm.xlu0 %5939, %v1683
        %v5941 = vpop.permute.xlu0 %5940
        %5943 = vset.pattern.permute.xlu0 2
        %5944 = vperm.xlu0 %5943, %v1684
        %v5945 = vpop.permute.xlu0 %5944
        %5947 = vset.pattern.permute.xlu0 2
        %5948 = vperm.xlu0 %5947, %v1685
        %v5949 = vpop.permute.xlu0 %5948
        %5951 = vset.pattern.permute.xlu0 2
        %5952 = vperm.xlu0 %5951, %v1686
        %v5953 = vpop.permute.xlu0 %5952
        %5955 = vset.pattern.permute.xlu0 2
        %5956 = vperm.xlu0 %5955, %v1687
        %v5957 = vpop.permute.xlu0 %5956
        %5959 = vset.pattern.permute.xlu0 2
        %5960 = vperm.xlu0 %5959, %v1688
        %v5961 = vpop.permute.xlu0 %5960
        %5963 = vset.pattern.permute.xlu0 2
        %5964 = vperm.xlu0 %5963, %v1689
        %v5965 = vpop.permute.xlu0 %5964
        %5967 = vset.pattern.permute.xlu0 2
        %5968 = vperm.xlu0 %5967, %v1690
        %v5969 = vpop.permute.xlu0 %5968
        %5971 = vset.pattern.permute.xlu0 2
        %5972 = vperm.xlu0 %5971, %v1691
        %v5973 = vpop.permute.xlu0 %5972
        %5975 = vset.pattern.permute.xlu0 2
        %5976 = vperm.xlu0 %5975, %v1692
        %v5977 = vpop.permute.xlu0 %5976
        %5979 = vset.pattern.permute.xlu0 2
        %5980 = vperm.xlu0 %5979, %v1693
        %v5981 = vpop.permute.xlu0 %5980
        %5983 = vset.pattern.permute.xlu0 2
        %5984 = vperm.xlu0 %5983, %v1694
        %v5985 = vpop.permute.xlu0 %5984
        %5987 = vset.pattern.permute.xlu0 2
        %5988 = vperm.xlu0 %5987, %v1695
        %v5989 = vpop.permute.xlu0 %5988
        %5991 = vset.pattern.permute.xlu0 2
        %5992 = vperm.xlu0 %5991, %v1696
        %v5993 = vpop.permute.xlu0 %5992
        %5995 = vset.pattern.permute.xlu0 2
        %5996 = vperm.xlu0 %5995, %v1697
        %v5997 = vpop.permute.xlu0 %5996
        %5999 = vset.pattern.permute.xlu0 2
        %6000 = vperm.xlu0 %5999, %v1698
        %v6001 = vpop.permute.xlu0 %6000
        %6003 = vset.pattern.permute.xlu0 2
        %6004 = vperm.xlu0 %6003, %v1699
        %v6005 = vpop.permute.xlu0 %6004
        %6007 = vset.pattern.permute.xlu0 2
        %6008 = vperm.xlu0 %6007, %v1700
        %v6009 = vpop.permute.xlu0 %6008
        %6011 = vset.pattern.permute.xlu0 2
        %6012 = vperm.xlu0 %6011, %v1701
        %v6013 = vpop.permute.xlu0 %6012
        %6015 = vset.pattern.permute.xlu0 2
        %6016 = vperm.xlu0 %6015, %v1702
        %v6017 = vpop.permute.xlu0 %6016
        %6019 = vset.pattern.permute.xlu0 2
        %6020 = vperm.xlu0 %6019, %v1703
        %v6021 = vpop.permute.xlu0 %6020
        %6023 = vset.pattern.permute.xlu0 2
        %6024 = vperm.xlu0 %6023, %v1704
        %v6025 = vpop.permute.xlu0 %6024
        %6027 = vset.pattern.permute.xlu0 2
        %6028 = vperm.xlu0 %6027, %v1705
        %v6029 = vpop.permute.xlu0 %6028
        %6031 = vset.pattern.permute.xlu0 2
        %6032 = vperm.xlu0 %6031, %v1706
        %v6033 = vpop.permute.xlu0 %6032
        %6035 = vset.pattern.permute.xlu0 2
        %6036 = vperm.xlu0 %6035, %v1707
        %v6037 = vpop.permute.xlu0 %6036
        %6039 = vset.pattern.permute.xlu0 2
        %6040 = vperm.xlu0 %6039, %v1708
        %v6041 = vpop.permute.xlu0 %6040
        %6043 = vset.pattern.permute.xlu0 2
        %6044 = vperm.xlu0 %6043, %v1709
        %v6045 = vpop.permute.xlu0 %6044
        %6047 = vset.pattern.permute.xlu0 2
        %6048 = vperm.xlu0 %6047, %v1710
        %v6049 = vpop.permute.xlu0 %6048
        %6051 = vset.pattern.permute.xlu0 2
        %6052 = vperm.xlu0 %6051, %v1711
        %v6053 = vpop.permute.xlu0 %6052
        %6055 = vset.pattern.permute.xlu0 2
        %6056 = vperm.xlu0 %6055, %v1712
        %v6057 = vpop.permute.xlu0 %6056
        %6059 = vset.pattern.permute.xlu0 2
        %6060 = vperm.xlu0 %6059, %v1713
        %v6061 = vpop.permute.xlu0 %6060
        %6063 = vset.pattern.permute.xlu0 2
        %6064 = vperm.xlu0 %6063, %v1714
        %v6065 = vpop.permute.xlu0 %6064
        %6067 = vset.pattern.permute.xlu0 2
        %6068 = vperm.xlu0 %6067, %v1715
        %v6069 = vpop.permute.xlu0 %6068
        %6071 = vset.pattern.permute.xlu0 2
        %6072 = vperm.xlu0 %6071, %v1716
        %v6073 = vpop.permute.xlu0 %6072
        %6075 = vset.pattern.permute.xlu0 2
        %6076 = vperm.xlu0 %6075, %v1717
        %v6077 = vpop.permute.xlu0 %6076
        %6079 = vset.pattern.permute.xlu0 2
        %6080 = vperm.xlu0 %6079, %v1718
        %v6081 = vpop.permute.xlu0 %6080
        %6083 = vset.pattern.permute.xlu0 2
        %6084 = vperm.xlu0 %6083, %v1719
        %v6085 = vpop.permute.xlu0 %6084
        %6087 = vset.pattern.permute.xlu0 2
        %6088 = vperm.xlu0 %6087, %v1720
        %v6089 = vpop.permute.xlu0 %6088
        %6091 = vset.pattern.permute.xlu0 2
        %6092 = vperm.xlu0 %6091, %v1721
        %v6093 = vpop.permute.xlu0 %6092
        %6095 = vset.pattern.permute.xlu0 2
        %6096 = vperm.xlu0 %6095, %v1722
        %v6097 = vpop.permute.xlu0 %6096
        %6099 = vset.pattern.permute.xlu0 2
        %6100 = vperm.xlu0 %6099, %v1723
        %v6101 = vpop.permute.xlu0 %6100
        %6103 = vset.pattern.permute.xlu0 2
        %6104 = vperm.xlu0 %6103, %v1724
        %v6105 = vpop.permute.xlu0 %6104
        %6107 = vset.pattern.permute.xlu0 2
        %6108 = vperm.xlu0 %6107, %v1725
        %v6109 = vpop.permute.xlu0 %6108
        %6111 = vset.pattern.permute.xlu0 2
        %6112 = vperm.xlu0 %6111, %v1726
        %v6113 = vpop.permute.xlu0 %6112
        %6115 = vset.pattern.permute.xlu0 2
        %6116 = vperm.xlu0 %6115, %v1727
        %v6117 = vpop.permute.xlu0 %6116
        %6119 = vset.pattern.permute.xlu0 2
        %6120 = vperm.xlu0 %6119, %v1728
        %v6121 = vpop.permute.xlu0 %6120
        %6123 = vset.pattern.permute.xlu0 2
        %6124 = vperm.xlu0 %6123, %v1729
        %v6125 = vpop.permute.xlu0 %6124
        %6127 = vset.pattern.permute.xlu0 2
        %6128 = vperm.xlu0 %6127, %v1730
        %v6129 = vpop.permute.xlu0 %6128
        %6131 = vset.pattern.permute.xlu0 2
        %6132 = vperm.xlu0 %6131, %v1731
        %v6133 = vpop.permute.xlu0 %6132
        %6135 = vset.pattern.permute.xlu0 2
        %6136 = vperm.xlu0 %6135, %v1732
        %v6137 = vpop.permute.xlu0 %6136
        %v6139 = vmul.f32 %v5629, %v5308
        %v6140 = vmul.f32 %v5633, %v5310
        %v6141 = vmul.f32 %v5637, %v5313
        %v6142 = vmul.f32 %v5641, %v5315
        %v6143 = vmul.f32 %v5645, %v5318
        %v6144 = vmul.f32 %v5649, %v5320
        %v6145 = vmul.f32 %v5653, %v5323
        %v6146 = vmul.f32 %v5657, %v5325
        %v6147 = vmul.f32 %v5661, %v5328
        %v6148 = vmul.f32 %v5665, %v5330
        %v6149 = vmul.f32 %v5669, %v5333
        %v6150 = vmul.f32 %v5673, %v5335
        %v6151 = vmul.f32 %v5677, %v5338
        %v6152 = vmul.f32 %v5681, %v5340
        %v6153 = vmul.f32 %v5685, %v5343
        %v6154 = vmul.f32 %v5689, %v5345
        %v6155 = vmul.f32 %v5693, %v5348
        %v6156 = vmul.f32 %v5697, %v5350
        %v6157 = vmul.f32 %v5701, %v5353
        %v6158 = vmul.f32 %v5705, %v5355
        %v6159 = vmul.f32 %v5709, %v5358
        %v6160 = vmul.f32 %v5713, %v5360
        %v6161 = vmul.f32 %v5717, %v5363
        %v6162 = vmul.f32 %v5721, %v5365
        %v6163 = vmul.f32 %v5725, %v5368
        %v6164 = vmul.f32 %v5729, %v5370
        %v6165 = vmul.f32 %v5733, %v5373
        %v6166 = vmul.f32 %v5737, %v5375
        %v6167 = vmul.f32 %v5741, %v5378
        %v6168 = vmul.f32 %v5745, %v5380
        %v6169 = vmul.f32 %v5749, %v5383
        %v6170 = vmul.f32 %v5753, %v5385
        %v6171 = vmul.f32 %v5757, %v5388
        %v6172 = vmul.f32 %v5761, %v5390
        %v6173 = vmul.f32 %v5765, %v5393
        %v6174 = vmul.f32 %v5769, %v5395
        %v6175 = vmul.f32 %v5773, %v5398
        %v6176 = vmul.f32 %v5777, %v5400
        %v6177 = vmul.f32 %v5781, %v5403
        %v6178 = vmul.f32 %v5785, %v5405
        %v6179 = vmul.f32 %v5789, %v5408
        %v6180 = vmul.f32 %v5793, %v5410
        %v6181 = vmul.f32 %v5797, %v5413
        %v6182 = vmul.f32 %v5801, %v5415
        %v6183 = vmul.f32 %v5805, %v5418
        %v6184 = vmul.f32 %v5809, %v5420
        %v6185 = vmul.f32 %v5813, %v5423
        %v6186 = vmul.f32 %v5817, %v5425
        %v6187 = vmul.f32 %v5821, %v5428
        %v6188 = vmul.f32 %v5825, %v5430
        %v6189 = vmul.f32 %v5829, %v5433
        %v6190 = vmul.f32 %v5833, %v5435
        %v6191 = vmul.f32 %v5837, %v5438
        %v6192 = vmul.f32 %v5841, %v5440
        %v6193 = vmul.f32 %v5845, %v5443
        %v6194 = vmul.f32 %v5849, %v5445
        %v6195 = vmul.f32 %v5853, %v5448
        %v6196 = vmul.f32 %v5857, %v5450
        %v6197 = vmul.f32 %v5861, %v5453
        %v6198 = vmul.f32 %v5865, %v5455
        %v6199 = vmul.f32 %v5869, %v5458
        %v6200 = vmul.f32 %v5873, %v5460
        %v6201 = vmul.f32 %v5877, %v5463
        %v6202 = vmul.f32 %v5881, %v5465
        %v6203 = vmul.f32 %v5885, %v5468
        %v6204 = vmul.f32 %v5889, %v5470
        %v6205 = vmul.f32 %v5893, %v5473
        %v6206 = vmul.f32 %v5897, %v5475
        %v6207 = vmul.f32 %v5901, %v5478
        %v6208 = vmul.f32 %v5905, %v5480
        %v6209 = vmul.f32 %v5909, %v5483
        %v6210 = vmul.f32 %v5913, %v5485
        %v6211 = vmul.f32 %v5917, %v5488
        %v6212 = vmul.f32 %v5921, %v5490
        %v6213 = vmul.f32 %v5925, %v5493
        %v6214 = vmul.f32 %v5929, %v5495
        %v6215 = vmul.f32 %v5933, %v5498
        %v6216 = vmul.f32 %v5937, %v5500
        %v6217 = vmul.f32 %v5941, %v5503
        %v6218 = vmul.f32 %v5945, %v5505
        %v6219 = vmul.f32 %v5949, %v5508
        %v6220 = vmul.f32 %v5953, %v5510
        %v6221 = vmul.f32 %v5957, %v5513
        %v6222 = vmul.f32 %v5961, %v5515
        %v6223 = vmul.f32 %v5965, %v5518
        %v6224 = vmul.f32 %v5969, %v5520
        %v6225 = vmul.f32 %v5973, %v5523
        %v6226 = vmul.f32 %v5977, %v5525
        %v6227 = vmul.f32 %v5981, %v5528
        %v6228 = vmul.f32 %v5985, %v5530
        %v6229 = vmul.f32 %v5989, %v5533
        %v6230 = vmul.f32 %v5993, %v5535
        %v6231 = vmul.f32 %v5997, %v5538
        %v6232 = vmul.f32 %v6001, %v5540
        %v6233 = vmul.f32 %v6005, %v5543
        %v6234 = vmul.f32 %v6009, %v5545
        %v6235 = vmul.f32 %v6013, %v5548
        %v6236 = vmul.f32 %v6017, %v5550
        %v6237 = vmul.f32 %v6021, %v5553
        %v6238 = vmul.f32 %v6025, %v5555
        %v6239 = vmul.f32 %v6029, %v5558
        %v6240 = vmul.f32 %v6033, %v5560
        %v6241 = vmul.f32 %v6037, %v5563
        %v6242 = vmul.f32 %v6041, %v5565
        %v6243 = vmul.f32 %v6045, %v5568
        %v6244 = vmul.f32 %v6049, %v5570
        %v6245 = vmul.f32 %v6053, %v5573
        %v6246 = vmul.f32 %v6057, %v5575
        %v6247 = vmul.f32 %v6061, %v5578
        %v6248 = vmul.f32 %v6065, %v5580
        %v6249 = vmul.f32 %v6069, %v5583
        %v6250 = vmul.f32 %v6073, %v5585
        %v6251 = vmul.f32 %v6077, %v5588
        %v6252 = vmul.f32 %v6081, %v5590
        %v6253 = vmul.f32 %v6085, %v5593
        %v6254 = vmul.f32 %v6089, %v5595
        %v6255 = vmul.f32 %v6093, %v5598
        %v6256 = vmul.f32 %v6097, %v5600
        %v6257 = vmul.f32 %v6101, %v5603
        %v6258 = vmul.f32 %v6105, %v5605
        %v6259 = vmul.f32 %v6109, %v5608
        %v6260 = vmul.f32 %v6113, %v5610
        %v6261 = vmul.f32 %v6117, %v5613
        %v6262 = vmul.f32 %v6121, %v5615
        %v6263 = vmul.f32 %v6125, %v5618
        %v6264 = vmul.f32 %v6129, %v5620
        %v6265 = vmul.f32 %v6133, %v5623
        %v6266 = vmul.f32 %v6137, %v5625
        %v6267 = vadd.f32 %v4713, %v6139
        %v6268 = vadd.f32 %v4714, %v6140
        %v6269 = vadd.f32 %v4715, %v6141
        %v6270 = vadd.f32 %v4716, %v6142
        %v6271 = vadd.f32 %v4717, %v6143
        %v6272 = vadd.f32 %v4718, %v6144
        %v6273 = vadd.f32 %v4719, %v6145
        %v6274 = vadd.f32 %v4720, %v6146
        %v6275 = vadd.f32 %v4721, %v6147
        %v6276 = vadd.f32 %v4722, %v6148
        %v6277 = vadd.f32 %v4723, %v6149
        %v6278 = vadd.f32 %v4724, %v6150
        %v6279 = vadd.f32 %v4725, %v6151
        %v6280 = vadd.f32 %v4726, %v6152
        %v6281 = vadd.f32 %v4727, %v6153
        %v6282 = vadd.f32 %v4728, %v6154
        %v6283 = vadd.f32 %v4729, %v6155
        %v6284 = vadd.f32 %v4730, %v6156
        %v6285 = vadd.f32 %v4731, %v6157
        %v6286 = vadd.f32 %v4732, %v6158
        %v6287 = vadd.f32 %v4733, %v6159
        %v6288 = vadd.f32 %v4734, %v6160
        %v6289 = vadd.f32 %v4735, %v6161
        %v6290 = vadd.f32 %v4736, %v6162
        %v6291 = vadd.f32 %v4737, %v6163
        %v6292 = vadd.f32 %v4738, %v6164
        %v6293 = vadd.f32 %v4739, %v6165
        %v6294 = vadd.f32 %v4740, %v6166
        %v6295 = vadd.f32 %v4741, %v6167
        %v6296 = vadd.f32 %v4742, %v6168
        %v6297 = vadd.f32 %v4743, %v6169
        %v6298 = vadd.f32 %v4744, %v6170
        %v6299 = vadd.f32 %v4745, %v6171
        %v6300 = vadd.f32 %v4746, %v6172
        %v6301 = vadd.f32 %v4747, %v6173
        %v6302 = vadd.f32 %v4748, %v6174
        %v6303 = vadd.f32 %v4749, %v6175
        %v6304 = vadd.f32 %v4750, %v6176
        %v6305 = vadd.f32 %v4751, %v6177
        %v6306 = vadd.f32 %v4752, %v6178
        %v6307 = vadd.f32 %v4753, %v6179
        %v6308 = vadd.f32 %v4754, %v6180
        %v6309 = vadd.f32 %v4755, %v6181
        %v6310 = vadd.f32 %v4756, %v6182
        %v6311 = vadd.f32 %v4757, %v6183
        %v6312 = vadd.f32 %v4758, %v6184
        %v6313 = vadd.f32 %v4759, %v6185
        %v6314 = vadd.f32 %v4760, %v6186
        %v6315 = vadd.f32 %v4761, %v6187
        %v6316 = vadd.f32 %v4762, %v6188
        %v6317 = vadd.f32 %v4763, %v6189
        %v6318 = vadd.f32 %v4764, %v6190
        %v6319 = vadd.f32 %v4765, %v6191
        %v6320 = vadd.f32 %v4766, %v6192
        %v6321 = vadd.f32 %v4767, %v6193
        %v6322 = vadd.f32 %v4768, %v6194
        %v6323 = vadd.f32 %v4769, %v6195
        %v6324 = vadd.f32 %v4770, %v6196
        %v6325 = vadd.f32 %v4771, %v6197
        %v6326 = vadd.f32 %v4772, %v6198
        %v6327 = vadd.f32 %v4773, %v6199
        %v6328 = vadd.f32 %v4774, %v6200
        %v6329 = vadd.f32 %v4775, %v6201
        %v6330 = vadd.f32 %v4776, %v6202
        %v6331 = vadd.f32 %v4777, %v6203
        %v6332 = vadd.f32 %v4778, %v6204
        %v6333 = vadd.f32 %v4779, %v6205
        %v6334 = vadd.f32 %v4780, %v6206
        %v6335 = vadd.f32 %v4781, %v6207
        %v6336 = vadd.f32 %v4782, %v6208
        %v6337 = vadd.f32 %v4783, %v6209
        %v6338 = vadd.f32 %v4784, %v6210
        %v6339 = vadd.f32 %v4785, %v6211
        %v6340 = vadd.f32 %v4786, %v6212
        %v6341 = vadd.f32 %v4787, %v6213
        %v6342 = vadd.f32 %v4788, %v6214
        %v6343 = vadd.f32 %v4789, %v6215
        %v6344 = vadd.f32 %v4790, %v6216
        %v6345 = vadd.f32 %v4791, %v6217
        %v6346 = vadd.f32 %v4792, %v6218
        %v6347 = vadd.f32 %v4793, %v6219
        %v6348 = vadd.f32 %v4794, %v6220
        %v6349 = vadd.f32 %v4795, %v6221
        %v6350 = vadd.f32 %v4796, %v6222
        %v6351 = vadd.f32 %v4797, %v6223
        %v6352 = vadd.f32 %v4798, %v6224
        %v6353 = vadd.f32 %v4799, %v6225
        %v6354 = vadd.f32 %v4800, %v6226
        %v6355 = vadd.f32 %v4801, %v6227
        %v6356 = vadd.f32 %v4802, %v6228
        %v6357 = vadd.f32 %v4803, %v6229
        %v6358 = vadd.f32 %v4804, %v6230
        %v6359 = vadd.f32 %v4805, %v6231
        %v6360 = vadd.f32 %v4806, %v6232
        %v6361 = vadd.f32 %v4807, %v6233
        %v6362 = vadd.f32 %v4808, %v6234
        %v6363 = vadd.f32 %v4809, %v6235
        %v6364 = vadd.f32 %v4810, %v6236
        %v6365 = vadd.f32 %v4811, %v6237
        %v6366 = vadd.f32 %v4812, %v6238
        %v6367 = vadd.f32 %v4813, %v6239
        %v6368 = vadd.f32 %v4814, %v6240
        %v6369 = vadd.f32 %v4815, %v6241
        %v6370 = vadd.f32 %v4816, %v6242
        %v6371 = vadd.f32 %v4817, %v6243
        %v6372 = vadd.f32 %v4818, %v6244
        %v6373 = vadd.f32 %v4819, %v6245
        %v6374 = vadd.f32 %v4820, %v6246
        %v6375 = vadd.f32 %v4821, %v6247
        %v6376 = vadd.f32 %v4822, %v6248
        %v6377 = vadd.f32 %v4823, %v6249
        %v6378 = vadd.f32 %v4824, %v6250
        %v6379 = vadd.f32 %v4825, %v6251
        %v6380 = vadd.f32 %v4826, %v6252
        %v6381 = vadd.f32 %v4827, %v6253
        %v6382 = vadd.f32 %v4828, %v6254
        %v6383 = vadd.f32 %v4829, %v6255
        %v6384 = vadd.f32 %v4830, %v6256
        %v6385 = vadd.f32 %v4831, %v6257
        %v6386 = vadd.f32 %v4832, %v6258
        %v6387 = vadd.f32 %v4833, %v6259
        %v6388 = vadd.f32 %v4834, %v6260
        %v6389 = vadd.f32 %v4835, %v6261
        %v6390 = vadd.f32 %v4836, %v6262
        %v6391 = vadd.f32 %v4837, %v6263
        %v6392 = vadd.f32 %v4838, %v6264
        %v6393 = vadd.f32 %v4839, %v6265
        %v6394 = vadd.f32 %v4840, %v6266
        %6395 = vst [vmem:[%s180] sm:$0xff] %v6267
        %6396 = vst [vmem:[%s180 + $0x8] sm:$0xff] %v6268
        %6397 = vst [vmem:[%s180 + $0x10] sm:$0xff] %v6269
        %6398 = vst [vmem:[%s180 + $0x18] sm:$0xff] %v6270
        %6399 = vst [vmem:[%s180 + $0x20] sm:$0xff] %v6271
        %6400 = vst [vmem:[%s180 + $0x28] sm:$0xff] %v6272
        %6401 = vst [vmem:[%s180 + $0x30] sm:$0xff] %v6273
        %6402 = vst [vmem:[%s180 + $0x38] sm:$0xff] %v6274
        %6403 = vst [vmem:[%s180 + $0x40] sm:$0xff] %v6275
        %6404 = vst [vmem:[%s180 + $0x48] sm:$0xff] %v6276
        %6405 = vst [vmem:[%s180 + $0x50] sm:$0xff] %v6277
        %6406 = vst [vmem:[%s180 + $0x58] sm:$0xff] %v6278
        %6407 = vst [vmem:[%s180 + $0x60] sm:$0xff] %v6279
        %6408 = vst [vmem:[%s180 + $0x68] sm:$0xff] %v6280
        %6409 = vst [vmem:[%s180 + $0x70] sm:$0xff] %v6281
        %6410 = vst [vmem:[%s180 + $0x78] sm:$0xff] %v6282
        %6411 = vst [vmem:[%s180 + $0x80] sm:$0xff] %v6283
        %6412 = vst [vmem:[%s180 + $0x88] sm:$0xff] %v6284
        %6413 = vst [vmem:[%s180 + $0x90] sm:$0xff] %v6285
        %6414 = vst [vmem:[%s180 + $0x98] sm:$0xff] %v6286
        %6415 = vst [vmem:[%s180 + $0xa0] sm:$0xff] %v6287
        %6416 = vst [vmem:[%s180 + $0xa8] sm:$0xff] %v6288
        %6417 = vst [vmem:[%s180 + $0xb0] sm:$0xff] %v6289
        %6418 = vst [vmem:[%s180 + $0xb8] sm:$0xff] %v6290
        %6419 = vst [vmem:[%s180 + $0xc0] sm:$0xff] %v6291
        %6420 = vst [vmem:[%s180 + $0xc8] sm:$0xff] %v6292
        %6421 = vst [vmem:[%s180 + $0xd0] sm:$0xff] %v6293
        %6422 = vst [vmem:[%s180 + $0xd8] sm:$0xff] %v6294
        %6423 = vst [vmem:[%s180 + $0xe0] sm:$0xff] %v6295
        %6424 = vst [vmem:[%s180 + $0xe8] sm:$0xff] %v6296
        %6425 = vst [vmem:[%s180 + $0xf0] sm:$0xff] %v6297
        %6426 = vst [vmem:[%s180 + $0xf8] sm:$0xff] %v6298
        %6427 = vst [vmem:[%s180 + $0x100] sm:$0xff] %v6299
        %6428 = vst [vmem:[%s180 + $0x108] sm:$0xff] %v6300
        %6429 = vst [vmem:[%s180 + $0x110] sm:$0xff] %v6301
        %6430 = vst [vmem:[%s180 + $0x118] sm:$0xff] %v6302
        %6431 = vst [vmem:[%s180 + $0x120] sm:$0xff] %v6303
        %6432 = vst [vmem:[%s180 + $0x128] sm:$0xff] %v6304
        %6433 = vst [vmem:[%s180 + $0x130] sm:$0xff] %v6305
        %6434 = vst [vmem:[%s180 + $0x138] sm:$0xff] %v6306
        %6435 = vst [vmem:[%s180 + $0x140] sm:$0xff] %v6307
        %6436 = vst [vmem:[%s180 + $0x148] sm:$0xff] %v6308
        %6437 = vst [vmem:[%s180 + $0x150] sm:$0xff] %v6309
        %6438 = vst [vmem:[%s180 + $0x158] sm:$0xff] %v6310
        %6439 = vst [vmem:[%s180 + $0x160] sm:$0xff] %v6311
        %6440 = vst [vmem:[%s180 + $0x168] sm:$0xff] %v6312
        %6441 = vst [vmem:[%s180 + $0x170] sm:$0xff] %v6313
        %6442 = vst [vmem:[%s180 + $0x178] sm:$0xff] %v6314
        %6443 = vst [vmem:[%s180 + $0x180] sm:$0xff] %v6315
        %6444 = vst [vmem:[%s180 + $0x188] sm:$0xff] %v6316
        %6445 = vst [vmem:[%s180 + $0x190] sm:$0xff] %v6317
        %6446 = vst [vmem:[%s180 + $0x198] sm:$0xff] %v6318
        %6447 = vst [vmem:[%s180 + $0x1a0] sm:$0xff] %v6319
        %6448 = vst [vmem:[%s180 + $0x1a8] sm:$0xff] %v6320
        %6449 = vst [vmem:[%s180 + $0x1b0] sm:$0xff] %v6321
        %6450 = vst [vmem:[%s180 + $0x1b8] sm:$0xff] %v6322
        %6451 = vst [vmem:[%s180 + $0x1c0] sm:$0xff] %v6323
        %6452 = vst [vmem:[%s180 + $0x1c8] sm:$0xff] %v6324
        %6453 = vst [vmem:[%s180 + $0x1d0] sm:$0xff] %v6325
        %6454 = vst [vmem:[%s180 + $0x1d8] sm:$0xff] %v6326
        %6455 = vst [vmem:[%s180 + $0x1e0] sm:$0xff] %v6327
        %6456 = vst [vmem:[%s180 + $0x1e8] sm:$0xff] %v6328
        %6457 = vst [vmem:[%s180 + $0x1f0] sm:$0xff] %v6329
        %6458 = vst [vmem:[%s180 + $0x1f8] sm:$0xff] %v6330
        %6459 = vst [vmem:[%s180 + $0x200] sm:$0xff] %v6331
        %6460 = vst [vmem:[%s180 + $0x208] sm:$0xff] %v6332
        %6461 = vst [vmem:[%s180 + $0x210] sm:$0xff] %v6333
        %6462 = vst [vmem:[%s180 + $0x218] sm:$0xff] %v6334
        %6463 = vst [vmem:[%s180 + $0x220] sm:$0xff] %v6335
        %6464 = vst [vmem:[%s180 + $0x228] sm:$0xff] %v6336
        %6465 = vst [vmem:[%s180 + $0x230] sm:$0xff] %v6337
        %6466 = vst [vmem:[%s180 + $0x238] sm:$0xff] %v6338
        %6467 = vst [vmem:[%s180 + $0x240] sm:$0xff] %v6339
        %6468 = vst [vmem:[%s180 + $0x248] sm:$0xff] %v6340
        %6469 = vst [vmem:[%s180 + $0x250] sm:$0xff] %v6341
        %6470 = vst [vmem:[%s180 + $0x258] sm:$0xff] %v6342
        %6471 = vst [vmem:[%s180 + $0x260] sm:$0xff] %v6343
        %6472 = vst [vmem:[%s180 + $0x268] sm:$0xff] %v6344
        %6473 = vst [vmem:[%s180 + $0x270] sm:$0xff] %v6345
        %6474 = vst [vmem:[%s180 + $0x278] sm:$0xff] %v6346
        %6475 = vst [vmem:[%s180 + $0x280] sm:$0xff] %v6347
        %6476 = vst [vmem:[%s180 + $0x288] sm:$0xff] %v6348
        %6477 = vst [vmem:[%s180 + $0x290] sm:$0xff] %v6349
        %6478 = vst [vmem:[%s180 + $0x298] sm:$0xff] %v6350
        %6479 = vst [vmem:[%s180 + $0x2a0] sm:$0xff] %v6351
        %6480 = vst [vmem:[%s180 + $0x2a8] sm:$0xff] %v6352
        %6481 = vst [vmem:[%s180 + $0x2b0] sm:$0xff] %v6353
        %6482 = vst [vmem:[%s180 + $0x2b8] sm:$0xff] %v6354
        %6483 = vst [vmem:[%s180 + $0x2c0] sm:$0xff] %v6355
        %6484 = vst [vmem:[%s180 + $0x2c8] sm:$0xff] %v6356
        %6485 = vst [vmem:[%s180 + $0x2d0] sm:$0xff] %v6357
        %6486 = vst [vmem:[%s180 + $0x2d8] sm:$0xff] %v6358
        %6487 = vst [vmem:[%s180 + $0x2e0] sm:$0xff] %v6359
        %6488 = vst [vmem:[%s180 + $0x2e8] sm:$0xff] %v6360
        %6489 = vst [vmem:[%s180 + $0x2f0] sm:$0xff] %v6361
        %6490 = vst [vmem:[%s180 + $0x2f8] sm:$0xff] %v6362
        %6491 = vst [vmem:[%s180 + $0x300] sm:$0xff] %v6363
        %6492 = vst [vmem:[%s180 + $0x308] sm:$0xff] %v6364
        %6493 = vst [vmem:[%s180 + $0x310] sm:$0xff] %v6365
        %6494 = vst [vmem:[%s180 + $0x318] sm:$0xff] %v6366
        %6495 = vst [vmem:[%s180 + $0x320] sm:$0xff] %v6367
        %6496 = vst [vmem:[%s180 + $0x328] sm:$0xff] %v6368
        %6497 = vst [vmem:[%s180 + $0x330] sm:$0xff] %v6369
        %6498 = vst [vmem:[%s180 + $0x338] sm:$0xff] %v6370
        %6499 = vst [vmem:[%s180 + $0x340] sm:$0xff] %v6371
        %6500 = vst [vmem:[%s180 + $0x348] sm:$0xff] %v6372
        %6501 = vst [vmem:[%s180 + $0x350] sm:$0xff] %v6373
        %6502 = vst [vmem:[%s180 + $0x358] sm:$0xff] %v6374
        %6503 = vst [vmem:[%s180 + $0x360] sm:$0xff] %v6375
        %6504 = vst [vmem:[%s180 + $0x368] sm:$0xff] %v6376
        %6505 = vst [vmem:[%s180 + $0x370] sm:$0xff] %v6377
        %6506 = vst [vmem:[%s180 + $0x378] sm:$0xff] %v6378
        %6507 = vst [vmem:[%s180 + $0x380] sm:$0xff] %v6379
        %6508 = vst [vmem:[%s180 + $0x388] sm:$0xff] %v6380
        %6509 = vst [vmem:[%s180 + $0x390] sm:$0xff] %v6381
        %6510 = vst [vmem:[%s180 + $0x398] sm:$0xff] %v6382
        %6511 = vst [vmem:[%s180 + $0x3a0] sm:$0xff] %v6383
        %6512 = vst [vmem:[%s180 + $0x3a8] sm:$0xff] %v6384
        %6513 = vst [vmem:[%s180 + $0x3b0] sm:$0xff] %v6385
        %6514 = vst [vmem:[%s180 + $0x3b8] sm:$0xff] %v6386
        %6515 = vst [vmem:[%s180 + $0x3c0] sm:$0xff] %v6387
        %6516 = vst [vmem:[%s180 + $0x3c8] sm:$0xff] %v6388
        %6517 = vst [vmem:[%s180 + $0x3d0] sm:$0xff] %v6389
        %6518 = vst [vmem:[%s180 + $0x3d8] sm:$0xff] %v6390
        %6519 = vst [vmem:[%s180 + $0x3e0] sm:$0xff] %v6391
        %6520 = vst [vmem:[%s180 + $0x3e8] sm:$0xff] %v6392
        %6521 = vst [vmem:[%s180 + $0x3f0] sm:$0xff] %v6393
        %6522 = vst [vmem:[%s180 + $0x3f8] sm:$0xff] %v6394
        %s6523 = sand.u32 %s98, 1
        %s6524 = scalar_lea.sflag [#allocation3], %s6523
        %s6525 = sand.u32 %s98, 1
        %s6526 = smul.addr %s6525, 1024
        %s6527 = scalar_lea.vmem [#allocation2], %s6526
        // Predicated region
        $region33: #{tpu_custom_call.1} parent=31 // pred_check
          %p6528 = pneg %p108
        $region34: #{tpu_custom_call.1} parent=31 // pred_check_branch
          %6530 = sbr.rel (%p6528) target = $region36
        $region35: #{tpu_custom_call.1} parent=31 // pred_region
          %s6531 = smul.u32 128, %s17
          %6533 = vsyncadd %s6524, 0
          %s6534 = smul.addr %s6531, 8
          %s6535 = scalar_lea.hbm %s3, %s6534
          %s6536 = sshll.u32 %s6527, 4
          %s6537 = int_to_ptr.vmem [resolvable:$true] %s6536
          %s6538 = sshll.u32 %s6535, 4
          %s6539 = int_to_ptr.hbm [resolvable:$true] %s6538
          %6544 = dma.vmem_to_hbm [thread:$0]  %s6537, 16384, %s6539, %s6524, 128, 128, 8
        $region36: #{tpu_custom_call.1} parent=31 // pred_fallthru
          _
      $region32: #{tpu_custom_call.1} parent=5 // pred_fallthru
        _
      %p6545 = scmp.le.s32.totalorder 2, %s12
      // Predicated region
      $region37: #{tpu_custom_call.1} parent=5 // pred_check
        %p6546 = pneg %p6545
      $region38: #{tpu_custom_call.1} parent=5 // pred_check_branch
        %6548 = sbr.rel (%p6546) target = $region40
      $region39: #{tpu_custom_call.1} parent=5 // pred_region
        %s6549 = ssub.s32 %s12, 2
        // Predicated region
        $region41: #{tpu_custom_call.1} parent=39 // pred_check
          %p6550 = pneg %p114
        $region42: #{tpu_custom_call.1} parent=39 // pred_check_branch
          %6552 = sbr.rel (%p6550) target = $region44
        $region43: #{tpu_custom_call.1} parent=39 // pred_region
          %s6553 = sand.u32 %s99, 1
          %s6554 = scalar_lea.sflag [#allocation3], %s6553
          %s6555 = sand.u32 %s99, 1
          %s6556 = smul.addr %s6555, 1024
          %s6557 = scalar_lea.vmem [#allocation2], %s6556
          %6559 = dma.done %s6554, 16384
        $region44: #{tpu_custom_call.1} parent=39 // pred_fallthru
          _
      $region40: #{tpu_custom_call.1} parent=5 // pred_fallthru
        _
    $region6: #{tpu_custom_call.1} parent=1 // loop_footer
      %s16 = sadd.s32 1, %s12
    $region7: #{tpu_custom_call.1} parent=1 // loop_footer_branch
      %11 = sbr.rel target = $region3
    $region8: #{tpu_custom_call.1} parent=1 // loop_exit
      _
    %6560 = vsyncpa [#allocation3], 1
    %s6561 = scalar_lea.sflag [#allocation3], 1
    %6562 = vsyncpa %s6561, 1

</llo_original>
